<compile_context>
chip_gen: v5e
topology: v5e:2x2
jax: 0.10.0
libtpu: 0.0.40
codegen_flags: <defaults>
</compile_context>

<pallas_src>
import numpy as np
import jax
import jax.numpy as jnp
from jax.experimental import pallas as pl
from jax.experimental.pallas import tpu as pltpu


def basic_block_forward(x_ncdhw, params, *, eps=1e-5):
    """Fused BasicBlock forward.  x_ncdhw: (N, C, D, H, W) float32 (PyTorch layout).

    params: w1/w2 in PyTorch OIDHW layout (Co, Ci, 3, 3, 3); g/b/m/v are the
    BatchNorm3d weight/bias/running_mean/running_var vectors (eval mode).
    """
    N, C, D, H, W = x_ncdhw.shape
    planes = params["w1"].shape[0]
    assert params["w1"].shape == (planes, C, 3, 3, 3)
    assert params["w2"].shape == (planes, planes, 3, 3, 3)
    assert C == planes, "downsample=None BasicBlock requires inplanes == planes"
    # TODO(synk): the stride>1 / downsample branch of BasicBlock is not
    # implemented (module defaults stride=1, downsample=None are used).

    Dp, Hp, Wp = D + 2, H + 2, W + 2          # spatial dims incl. 1-voxel halo
    L = Dp * Hp * Wp
    Lp = ((L + 127) // 128) * 128             # lane-dense flattened length

    # ---- fold eval-mode BatchNorm into per-channel scale / bias -------------
    s1 = params["g1"] / jnp.sqrt(params["v1"] + eps)
    b1 = params["b1"] - params["m1"] * s1
    s2 = params["g2"] / jnp.sqrt(params["v2"] + eps)
    b2 = params["b2"] - params["m2"] * s2

    # ---- stack conv weights along the contraction dim: (Co, 27*Ci) ----------
    # column index = ((kd*3 + kh)*3 + kw)*Ci + ci  (must match tap order below)
    def stack_w(w_oidhw):
        co, ci = w_oidhw.shape[:2]
        return jnp.transpose(w_oidhw, (0, 2, 3, 4, 1)).reshape(co, 27 * ci)

    w1 = stack_w(params["w1"]).astype(jnp.float32)
    w2 = stack_w(params["w2"]).astype(jnp.float32)

    # ---- input: zero-pad halo, flatten spatial into the lane axis -----------
    xpad = jnp.pad(x_ncdhw, ((0, 0), (0, 0), (1, 1), (1, 1), (1, 1)))
    xflat = jnp.pad(xpad.reshape(N, C, L), ((0, 0), (0, 0), (0, Lp - L)))

    # ---- interior mask: 1 on real voxels, 0 on halo ring and lane tail ------
    dd, hh, ww = np.arange(Dp), np.arange(Hp), np.arange(Wp)
    inner = (((dd >= 1) & (dd <= D))[:, None, None]
             & ((hh >= 1) & (hh <= H))[None, :, None]
             & ((ww >= 1) & (ww <= W))[None, None, :])
    mask_np = np.zeros((1, Lp), np.float32)
    mask_np[0, :L] = inner.reshape(-1).astype(np.float32)
    mask = jnp.asarray(mask_np)

    # ---- per-tap lane shifts on the flattened padded grid -------------------
    # tap (kd,kh,kw) reads the neighbour at linear offset
    #   o = (kd-1)*Hp*Wp + (kh-1)*Wp + (kw-1);  roll by -o brings it to lane l.
    tap_shifts = tuple(
        (-((kd - 1) * Hp * Wp + (kh - 1) * Wp + (kw - 1))) % Lp
        for kd in range(3) for kh in range(3) for kw in range(3))

    def kernel(x_ref, w1_ref, w2_ref, s1_ref, b1_ref, s2_ref, b2_ref,
               mask_ref, out_ref, stack_ref):
        x = x_ref[0]              # (C, Lp): conv1 input and residual
        m = mask_ref[...]         # (1, Lp)

        def build_taps(v):
            # im2col on the contraction dim: 27 lane-rolled copies of the slab
            # stacked along sublanes -> one K = 27*C matmul per conv.
            for t, sh in enumerate(tap_shifts):
                rolled = v if sh == 0 else pltpu.roll(v, sh, axis=1)
                stack_ref[t * C:(t + 1) * C, :] = rolled

        # conv1 + bn1 + relu; the mask re-zeroes the halo ring (and lane tail)
        # so the intermediate acts as conv2's zero-padded input.
        build_taps(x)
        y = jnp.dot(w1_ref[...], stack_ref[...],
                    preferred_element_type=jnp.float32)
        y = jnp.maximum(y * s1_ref[...] + b1_ref[...], 0.0) * m

        # conv2 + bn2 + residual add + relu (halo lanes are garbage; the
        # wrapper slices them away).
        build_taps(y)
        y = jnp.dot(w2_ref[...], stack_ref[...],
                    preferred_element_type=jnp.float32)
        y = jnp.maximum(y * s2_ref[...] + b2_ref[...] + x, 0.0)
        out_ref[0] = y.astype(out_ref.dtype)

    out_flat = pl.pallas_call(
        kernel,
        out_shape=jax.ShapeDtypeStruct((N, C, Lp), x_ncdhw.dtype),
        grid=(N,),
        in_specs=[
            pl.BlockSpec((1, C, Lp), lambda n: (n, 0, 0)),      # x slab
            pl.BlockSpec((C, 27 * C), lambda n: (0, 0)),        # stacked w1
            pl.BlockSpec((C, 27 * C), lambda n: (0, 0)),        # stacked w2
            pl.BlockSpec((C, 1), lambda n: (0, 0)),             # bn1 scale
            pl.BlockSpec((C, 1), lambda n: (0, 0)),             # bn1 bias
            pl.BlockSpec((C, 1), lambda n: (0, 0)),             # bn2 scale
            pl.BlockSpec((C, 1), lambda n: (0, 0)),             # bn2 bias
            pl.BlockSpec((1, Lp), lambda n: (0, 0)),            # interior mask
        ],
        out_specs=pl.BlockSpec((1, C, Lp), lambda n: (n, 0, 0)),
        scratch_shapes=[pltpu.VMEM((27 * C, Lp), jnp.float32)],  # im2col stack
        compiler_params=pltpu.CompilerParams(
            dimension_semantics=("parallel",)),
    )(xflat, w1, w2,
      s1.reshape(C, 1).astype(jnp.float32), b1.reshape(C, 1).astype(jnp.float32),
      s2.reshape(C, 1).astype(jnp.float32), b2.reshape(C, 1).astype(jnp.float32),
      mask)

    # drop the lane tail and the halo ring -> (N, C, D, H, W), PyTorch layout.
    return out_flat[:, :, :L].reshape(N, C, Dp, Hp, Wp)[:, :, 1:-1, 1:-1, 1:-1]


def _reference_forward(x, params, *, eps=1e-5):
    def conv(v, w):
        return jax.lax.conv_general_dilated(
            v, w, window_strides=(1, 1, 1),
            padding=((1, 1), (1, 1), (1, 1)),
            dimension_numbers=("NCDHW", "OIDHW", "NCDHW"))

    def bn(v, g, b, m, var):
        s = g / jnp.sqrt(var + eps)
        return (v * s[None, :, None, None, None]
                + (b - m * s)[None, :, None, None, None])

    out = jnp.maximum(bn(conv(x, params["w1"]), params["g1"], params["b1"],
                         params["m1"], params["v1"]), 0.0)
    out = jnp.maximum(bn(conv(out, params["w2"]), params["g2"], params["b2"],
                         params["m2"], params["v2"]) + x, 0.0)
    return out


if __name__ == "__main__":
    # BasicBlock(inplanes=8, planes=8, stride=1, downsample=None), small input.
    N, C, D, H, W = 2, 8, 8, 8, 8
    planes = 8

    key = jax.random.PRNGKey(0)
    ks = jax.random.split(key, 11)
    x = jax.random.normal(ks[0], (N, C, D, H, W), jnp.float32)

    params = {
        # conv weights in PyTorch OIDHW layout, kernel_size=3, bias=False
        "w1": 0.1 * jax.random.normal(ks[1], (planes, C, 3, 3, 3), jnp.float32),
        "w2": 0.1 * jax.random.normal(ks[2], (planes, planes, 3, 3, 3), jnp.float32),
        # BatchNorm3d (eval mode): gamma / beta / running_mean / running_var
        "g1": 1.0 + 0.1 * jax.random.normal(ks[3], (planes,), jnp.float32),
        "b1": 0.1 * jax.random.normal(ks[4], (planes,), jnp.float32),
        "m1": 0.1 * jax.random.normal(ks[5], (planes,), jnp.float32),
        "v1": 1.0 + 0.1 * jax.random.uniform(ks[6], (planes,), jnp.float32),
        "g2": 1.0 + 0.1 * jax.random.normal(ks[7], (planes,), jnp.float32),
        "b2": 0.1 * jax.random.normal(ks[8], (planes,), jnp.float32),
        "m2": 0.1 * jax.random.normal(ks[9], (planes,), jnp.float32),
        "v2": 1.0 + 0.1 * jax.random.uniform(ks[10], (planes,), jnp.float32),
    }

    out = jax.block_until_ready(jax.jit(basic_block_forward)(x, params))
    ref = jax.block_until_ready(_reference_forward(x, params))

    assert out.shape == (N, planes, D, H, W)
    np.testing.assert_allclose(np.asarray(out), np.asarray(ref),
                               rtol=1e-3, atol=1e-3)
    print("KERNEL_OK")
</pallas_src>

<mosaic_0001>
module attributes {stable_mosaic.version = 11 : i64} {
  func.func @kernel(%arg0: i32, %arg1: memref<1x8x1024xf32, #tpu.memory_space<vmem>>, %arg2: memref<8x216xf32, #tpu.memory_space<vmem>>, %arg3: memref<8x216xf32, #tpu.memory_space<vmem>>, %arg4: memref<8x1xf32, #tpu.memory_space<vmem>>, %arg5: memref<8x1xf32, #tpu.memory_space<vmem>>, %arg6: memref<8x1xf32, #tpu.memory_space<vmem>>, %arg7: memref<8x1xf32, #tpu.memory_space<vmem>>, %arg8: memref<1x1024xf32, #tpu.memory_space<vmem>>, %arg9: memref<1x8x1024xf32, #tpu.memory_space<vmem>>, %arg10: memref<216x1024xf32, #tpu.memory_space<vmem>>) attributes {dimension_semantics = [#tpu.dimension_semantics<parallel>], iteration_bounds = array<i64: 2>, scalar_prefetch = 0 : i64, scratch_operands = 1 : i64, tpu.core_type = #tpu.core_type<tc>, window_params = [{transform_indices = @transform_0, window_bounds = array<i64: 1, 8, 1024>}, {pipeline_mode = #tpu.pipeline_mode<synchronous>, transform_indices = @transform_1, window_bounds = array<i64: 8, 216>}, {pipeline_mode = #tpu.pipeline_mode<synchronous>, transform_indices = @transform_2, window_bounds = array<i64: 8, 216>}, {pipeline_mode = #tpu.pipeline_mode<synchronous>, transform_indices = @transform_3, window_bounds = array<i64: 8, 1>}, {pipeline_mode = #tpu.pipeline_mode<synchronous>, transform_indices = @transform_4, window_bounds = array<i64: 8, 1>}, {pipeline_mode = #tpu.pipeline_mode<synchronous>, transform_indices = @transform_5, window_bounds = array<i64: 8, 1>}, {pipeline_mode = #tpu.pipeline_mode<synchronous>, transform_indices = @transform_6, window_bounds = array<i64: 8, 1>}, {pipeline_mode = #tpu.pipeline_mode<synchronous>, transform_indices = @transform_7, window_bounds = array<i64: 1, 1024>}, {transform_indices = @transform_8, window_bounds = array<i64: 1, 8, 1024>}]} {
    %c0 = arith.constant 0 : index
    %c0_0 = arith.constant 0 : index
    %c0_1 = arith.constant 0 : index
    %0 = vector.load %arg1[%c0, %c0_0, %c0_1] : memref<1x8x1024xf32, #tpu.memory_space<vmem>>, vector<1x8x1024xf32>
    %1 = vector.shape_cast %0 : vector<1x8x1024xf32> to vector<8x1024xf32>
    %c0_2 = arith.constant 0 : index
    %c0_3 = arith.constant 0 : index
    %2 = vector.load %arg8[%c0_2, %c0_3] : memref<1x1024xf32, #tpu.memory_space<vmem>>, vector<1x1024xf32>
    %c111_i32 = arith.constant 111 : i32
    %3 = tpu.dynamic_rotate %1 by %c111_i32 dim 1 : vector<8x1024xf32>, i32 -> vector<8x1024xf32>
    %c0_4 = arith.constant 0 : index
    %c0_5 = arith.constant 0 : index
    %4 = vector.load %arg10[%c0_4, %c0_5] : memref<216x1024xf32, #tpu.memory_space<vmem>>, vector<8x1024xf32>
    tpu.vector_store %arg10[%c0_4, %c0_5], %3 {strides = array<i32>} : memref<216x1024xf32, #tpu.memory_space<vmem>>, vector<8x1024xf32>,
    %c110_i32 = arith.constant 110 : i32
    %5 = tpu.dynamic_rotate %1 by %c110_i32 dim 1 : vector<8x1024xf32>, i32 -> vector<8x1024xf32>
    %c8 = arith.constant 8 : index
    %c0_6 = arith.constant 0 : index
    %6 = vector.load %arg10[%c8, %c0_6] : memref<216x1024xf32, #tpu.memory_space<vmem>>, vector<8x1024xf32>
    tpu.vector_store %arg10[%c8, %c0_6], %5 {strides = array<i32>} : memref<216x1024xf32, #tpu.memory_space<vmem>>, vector<8x1024xf32>,
    %c109_i32 = arith.constant 109 : i32
    %7 = tpu.dynamic_rotate %1 by %c109_i32 dim 1 : vector<8x1024xf32>, i32 -> vector<8x1024xf32>
    %c16 = arith.constant 16 : index
    %c0_7 = arith.constant 0 : index
    %8 = vector.load %arg10[%c16, %c0_7] : memref<216x1024xf32, #tpu.memory_space<vmem>>, vector<8x1024xf32>
    tpu.vector_store %arg10[%c16, %c0_7], %7 {strides = array<i32>} : memref<216x1024xf32, #tpu.memory_space<vmem>>, vector<8x1024xf32>,
    %c101_i32 = arith.constant 101 : i32
    %9 = tpu.dynamic_rotate %1 by %c101_i32 dim 1 : vector<8x1024xf32>, i32 -> vector<8x1024xf32>
    %c24 = arith.constant 24 : index
    %c0_8 = arith.constant 0 : index
    %10 = vector.load %arg10[%c24, %c0_8] : memref<216x1024xf32, #tpu.memory_space<vmem>>, vector<8x1024xf32>
    tpu.vector_store %arg10[%c24, %c0_8], %9 {strides = array<i32>} : memref<216x1024xf32, #tpu.memory_space<vmem>>, vector<8x1024xf32>,
    %c100_i32 = arith.constant 100 : i32
    %11 = tpu.dynamic_rotate %1 by %c100_i32 dim 1 : vector<8x1024xf32>, i32 -> vector<8x1024xf32>
    %c32 = arith.constant 32 : index
    %c0_9 = arith.constant 0 : index
    %12 = vector.load %arg10[%c32, %c0_9] : memref<216x1024xf32, #tpu.memory_space<vmem>>, vector<8x1024xf32>
    tpu.vector_store %arg10[%c32, %c0_9], %11 {strides = array<i32>} : memref<216x1024xf32, #tpu.memory_space<vmem>>, vector<8x1024xf32>,
    %c99_i32 = arith.constant 99 : i32
    %13 = tpu.dynamic_rotate %1 by %c99_i32 dim 1 : vector<8x1024xf32>, i32 -> vector<8x1024xf32>
    %c40 = arith.constant 40 : index
    %c0_10 = arith.constant 0 : index
    %14 = vector.load %arg10[%c40, %c0_10] : memref<216x1024xf32, #tpu.memory_space<vmem>>, vector<8x1024xf32>
    tpu.vector_store %arg10[%c40, %c0_10], %13 {strides = array<i32>} : memref<216x1024xf32, #tpu.memory_space<vmem>>, vector<8x1024xf32>,
    %c91_i32 = arith.constant 91 : i32
    %15 = tpu.dynamic_rotate %1 by %c91_i32 dim 1 : vector<8x1024xf32>, i32 -> vector<8x1024xf32>
    %c48 = arith.constant 48 : index
    %c0_11 = arith.constant 0 : index
    %16 = vector.load %arg10[%c48, %c0_11] : memref<216x1024xf32, #tpu.memory_space<vmem>>, vector<8x1024xf32>
    tpu.vector_store %arg10[%c48, %c0_11], %15 {strides = array<i32>} : memref<216x1024xf32, #tpu.memory_space<vmem>>, vector<8x1024xf32>,
    %c90_i32 = arith.constant 90 : i32
    %17 = tpu.dynamic_rotate %1 by %c90_i32 dim 1 : vector<8x1024xf32>, i32 -> vector<8x1024xf32>
    %c56 = arith.constant 56 : index
    %c0_12 = arith.constant 0 : index
    %18 = vector.load %arg10[%c56, %c0_12] : memref<216x1024xf32, #tpu.memory_space<vmem>>, vector<8x1024xf32>
    tpu.vector_store %arg10[%c56, %c0_12], %17 {strides = array<i32>} : memref<216x1024xf32, #tpu.memory_space<vmem>>, vector<8x1024xf32>,
    %c89_i32 = arith.constant 89 : i32
    %19 = tpu.dynamic_rotate %1 by %c89_i32 dim 1 : vector<8x1024xf32>, i32 -> vector<8x1024xf32>
    %c64 = arith.constant 64 : index
    %c0_13 = arith.constant 0 : index
    %20 = vector.load %arg10[%c64, %c0_13] : memref<216x1024xf32, #tpu.memory_space<vmem>>, vector<8x1024xf32>
    tpu.vector_store %arg10[%c64, %c0_13], %19 {strides = array<i32>} : memref<216x1024xf32, #tpu.memory_space<vmem>>, vector<8x1024xf32>,
    %c11_i32 = arith.constant 11 : i32
    %21 = tpu.dynamic_rotate %1 by %c11_i32 dim 1 : vector<8x1024xf32>, i32 -> vector<8x1024xf32>
    %c72 = arith.constant 72 : index
    %c0_14 = arith.constant 0 : index
    %22 = vector.load %arg10[%c72, %c0_14] : memref<216x1024xf32, #tpu.memory_space<vmem>>, vector<8x1024xf32>
    tpu.vector_store %arg10[%c72, %c0_14], %21 {strides = array<i32>} : memref<216x1024xf32, #tpu.memory_space<vmem>>, vector<8x1024xf32>,
    %c10_i32 = arith.constant 10 : i32
    %23 = tpu.dynamic_rotate %1 by %c10_i32 dim 1 : vector<8x1024xf32>, i32 -> vector<8x1024xf32>
    %c80 = arith.constant 80 : index
    %c0_15 = arith.constant 0 : index
    %24 = vector.load %arg10[%c80, %c0_15] : memref<216x1024xf32, #tpu.memory_space<vmem>>, vector<8x1024xf32>
    tpu.vector_store %arg10[%c80, %c0_15], %23 {strides = array<i32>} : memref<216x1024xf32, #tpu.memory_space<vmem>>, vector<8x1024xf32>,
    %c9_i32 = arith.constant 9 : i32
    %25 = tpu.dynamic_rotate %1 by %c9_i32 dim 1 : vector<8x1024xf32>, i32 -> vector<8x1024xf32>
    %c88 = arith.constant 88 : index
    %c0_16 = arith.constant 0 : index
    %26 = vector.load %arg10[%c88, %c0_16] : memref<216x1024xf32, #tpu.memory_space<vmem>>, vector<8x1024xf32>
    tpu.vector_store %arg10[%c88, %c0_16], %25 {strides = array<i32>} : memref<216x1024xf32, #tpu.memory_space<vmem>>, vector<8x1024xf32>,
    %c1_i32 = arith.constant 1 : i32
    %27 = tpu.dynamic_rotate %1 by %c1_i32 dim 1 : vector<8x1024xf32>, i32 -> vector<8x1024xf32>
    %c96 = arith.constant 96 : index
    %c0_17 = arith.constant 0 : index
    %28 = vector.load %arg10[%c96, %c0_17] : memref<216x1024xf32, #tpu.memory_space<vmem>>, vector<8x1024xf32>
    tpu.vector_store %arg10[%c96, %c0_17], %27 {strides = array<i32>} : memref<216x1024xf32, #tpu.memory_space<vmem>>, vector<8x1024xf32>,
    %c104 = arith.constant 104 : index
    %c0_18 = arith.constant 0 : index
    %29 = vector.load %arg10[%c104, %c0_18] : memref<216x1024xf32, #tpu.memory_space<vmem>>, vector<8x1024xf32>
    tpu.vector_store %arg10[%c104, %c0_18], %1 {strides = array<i32>} : memref<216x1024xf32, #tpu.memory_space<vmem>>, vector<8x1024xf32>,
    %c1023_i32 = arith.constant 1023 : i32
    %30 = tpu.dynamic_rotate %1 by %c1023_i32 dim 1 : vector<8x1024xf32>, i32 -> vector<8x1024xf32>
    %c112 = arith.constant 112 : index
    %c0_19 = arith.constant 0 : index
    %31 = vector.load %arg10[%c112, %c0_19] : memref<216x1024xf32, #tpu.memory_space<vmem>>, vector<8x1024xf32>
    tpu.vector_store %arg10[%c112, %c0_19], %30 {strides = array<i32>} : memref<216x1024xf32, #tpu.memory_space<vmem>>, vector<8x1024xf32>,
    %c1015_i32 = arith.constant 1015 : i32
    %32 = tpu.dynamic_rotate %1 by %c1015_i32 dim 1 : vector<8x1024xf32>, i32 -> vector<8x1024xf32>
    %c120 = arith.constant 120 : index
    %c0_20 = arith.constant 0 : index
    %33 = vector.load %arg10[%c120, %c0_20] : memref<216x1024xf32, #tpu.memory_space<vmem>>, vector<8x1024xf32>
    tpu.vector_store %arg10[%c120, %c0_20], %32 {strides = array<i32>} : memref<216x1024xf32, #tpu.memory_space<vmem>>, vector<8x1024xf32>,
    %c1014_i32 = arith.constant 1014 : i32
    %34 = tpu.dynamic_rotate %1 by %c1014_i32 dim 1 : vector<8x1024xf32>, i32 -> vector<8x1024xf32>
    %c128 = arith.constant 128 : index
    %c0_21 = arith.constant 0 : index
    %35 = vector.load %arg10[%c128, %c0_21] : memref<216x1024xf32, #tpu.memory_space<vmem>>, vector<8x1024xf32>
    tpu.vector_store %arg10[%c128, %c0_21], %34 {strides = array<i32>} : memref<216x1024xf32, #tpu.memory_space<vmem>>, vector<8x1024xf32>,
    %c1013_i32 = arith.constant 1013 : i32
    %36 = tpu.dynamic_rotate %1 by %c1013_i32 dim 1 : vector<8x1024xf32>, i32 -> vector<8x1024xf32>
    %c136 = arith.constant 136 : index
    %c0_22 = arith.constant 0 : index
    %37 = vector.load %arg10[%c136, %c0_22] : memref<216x1024xf32, #tpu.memory_space<vmem>>, vector<8x1024xf32>
    tpu.vector_store %arg10[%c136, %c0_22], %36 {strides = array<i32>} : memref<216x1024xf32, #tpu.memory_space<vmem>>, vector<8x1024xf32>,
    %c935_i32 = arith.constant 935 : i32
    %38 = tpu.dynamic_rotate %1 by %c935_i32 dim 1 : vector<8x1024xf32>, i32 -> vector<8x1024xf32>
    %c144 = arith.constant 144 : index
    %c0_23 = arith.constant 0 : index
    %39 = vector.load %arg10[%c144, %c0_23] : memref<216x1024xf32, #tpu.memory_space<vmem>>, vector<8x1024xf32>
    tpu.vector_store %arg10[%c144, %c0_23], %38 {strides = array<i32>} : memref<216x1024xf32, #tpu.memory_space<vmem>>, vector<8x1024xf32>,
    %c934_i32 = arith.constant 934 : i32
    %40 = tpu.dynamic_rotate %1 by %c934_i32 dim 1 : vector<8x1024xf32>, i32 -> vector<8x1024xf32>
    %c152 = arith.constant 152 : index
    %c0_24 = arith.constant 0 : index
    %41 = vector.load %arg10[%c152, %c0_24] : memref<216x1024xf32, #tpu.memory_space<vmem>>, vector<8x1024xf32>
    tpu.vector_store %arg10[%c152, %c0_24], %40 {strides = array<i32>} : memref<216x1024xf32, #tpu.memory_space<vmem>>, vector<8x1024xf32>,
    %c933_i32 = arith.constant 933 : i32
    %42 = tpu.dynamic_rotate %1 by %c933_i32 dim 1 : vector<8x1024xf32>, i32 -> vector<8x1024xf32>
    %c160 = arith.constant 160 : index
    %c0_25 = arith.constant 0 : index
    %43 = vector.load %arg10[%c160, %c0_25] : memref<216x1024xf32, #tpu.memory_space<vmem>>, vector<8x1024xf32>
    tpu.vector_store %arg10[%c160, %c0_25], %42 {strides = array<i32>} : memref<216x1024xf32, #tpu.memory_space<vmem>>, vector<8x1024xf32>,
    %c925_i32 = arith.constant 925 : i32
    %44 = tpu.dynamic_rotate %1 by %c925_i32 dim 1 : vector<8x1024xf32>, i32 -> vector<8x1024xf32>
    %c168 = arith.constant 168 : index
    %c0_26 = arith.constant 0 : index
    %45 = vector.load %arg10[%c168, %c0_26] : memref<216x1024xf32, #tpu.memory_space<vmem>>, vector<8x1024xf32>
    tpu.vector_store %arg10[%c168, %c0_26], %44 {strides = array<i32>} : memref<216x1024xf32, #tpu.memory_space<vmem>>, vector<8x1024xf32>,
    %c924_i32 = arith.constant 924 : i32
    %46 = tpu.dynamic_rotate %1 by %c924_i32 dim 1 : vector<8x1024xf32>, i32 -> vector<8x1024xf32>
    %c176 = arith.constant 176 : index
    %c0_27 = arith.constant 0 : index
    %47 = vector.load %arg10[%c176, %c0_27] : memref<216x1024xf32, #tpu.memory_space<vmem>>, vector<8x1024xf32>
    tpu.vector_store %arg10[%c176, %c0_27], %46 {strides = array<i32>} : memref<216x1024xf32, #tpu.memory_space<vmem>>, vector<8x1024xf32>,
    %c923_i32 = arith.constant 923 : i32
    %48 = tpu.dynamic_rotate %1 by %c923_i32 dim 1 : vector<8x1024xf32>, i32 -> vector<8x1024xf32>
    %c184 = arith.constant 184 : index
    %c0_28 = arith.constant 0 : index
    %49 = vector.load %arg10[%c184, %c0_28] : memref<216x1024xf32, #tpu.memory_space<vmem>>, vector<8x1024xf32>
    tpu.vector_store %arg10[%c184, %c0_28], %48 {strides = array<i32>} : memref<216x1024xf32, #tpu.memory_space<vmem>>, vector<8x1024xf32>,
    %c915_i32 = arith.constant 915 : i32
    %50 = tpu.dynamic_rotate %1 by %c915_i32 dim 1 : vector<8x1024xf32>, i32 -> vector<8x1024xf32>
    %c192 = arith.constant 192 : index
    %c0_29 = arith.constant 0 : index
    %51 = vector.load %arg10[%c192, %c0_29] : memref<216x1024xf32, #tpu.memory_space<vmem>>, vector<8x1024xf32>
    tpu.vector_store %arg10[%c192, %c0_29], %50 {strides = array<i32>} : memref<216x1024xf32, #tpu.memory_space<vmem>>, vector<8x1024xf32>,
    %c914_i32 = arith.constant 914 : i32
    %52 = tpu.dynamic_rotate %1 by %c914_i32 dim 1 : vector<8x1024xf32>, i32 -> vector<8x1024xf32>
    %c200 = arith.constant 200 : index
    %c0_30 = arith.constant 0 : index
    %53 = vector.load %arg10[%c200, %c0_30] : memref<216x1024xf32, #tpu.memory_space<vmem>>, vector<8x1024xf32>
    tpu.vector_store %arg10[%c200, %c0_30], %52 {strides = array<i32>} : memref<216x1024xf32, #tpu.memory_space<vmem>>, vector<8x1024xf32>,
    %c913_i32 = arith.constant 913 : i32
    %54 = tpu.dynamic_rotate %1 by %c913_i32 dim 1 : vector<8x1024xf32>, i32 -> vector<8x1024xf32>
    %c208 = arith.constant 208 : index
    %c0_31 = arith.constant 0 : index
    %55 = vector.load %arg10[%c208, %c0_31] : memref<216x1024xf32, #tpu.memory_space<vmem>>, vector<8x1024xf32>
    tpu.vector_store %arg10[%c208, %c0_31], %54 {strides = array<i32>} : memref<216x1024xf32, #tpu.memory_space<vmem>>, vector<8x1024xf32>,
    %c0_32 = arith.constant 0 : index
    %c0_33 = arith.constant 0 : index
    %56 = vector.load %arg2[%c0_32, %c0_33] : memref<8x216xf32, #tpu.memory_space<vmem>>, vector<8x216xf32>
    %c0_34 = arith.constant 0 : index
    %c0_35 = arith.constant 0 : index
    %57 = vector.load %arg10[%c0_34, %c0_35] : memref<216x1024xf32, #tpu.memory_space<vmem>>, vector<216x1024xf32>
    %cst = arith.constant dense<0.000000e+00> : vector<8x1024xf32>
    %58 = tpu.matmul %56, %57, %cst {dimension_numbers = #tpu.dot_dimension_numbers<[1], [0], [0], [1], [0, 0, 1, 1], [], []>} : vector<8x216xf32>, vector<216x1024xf32>, vector<8x1024xf32> -> vector<8x1024xf32>
    %c0_36 = arith.constant 0 : index
    %c0_37 = arith.constant 0 : index
    %59 = vector.load %arg4[%c0_36, %c0_37] : memref<8x1xf32, #tpu.memory_space<vmem>>, vector<8x1xf32>
    %60 = vector.broadcast %59 : vector<8x1xf32> to vector<8x1024xf32>
    %61 = arith.mulf %58, %60 : vector<8x1024xf32>
    %c0_38 = arith.constant 0 : index
    %c0_39 = arith.constant 0 : index
    %62 = vector.load %arg5[%c0_38, %c0_39] : memref<8x1xf32, #tpu.memory_space<vmem>>, vector<8x1xf32>
    %63 = vector.broadcast %62 : vector<8x1xf32> to vector<8x1024xf32>
    %64 = arith.addf %61, %63 : vector<8x1024xf32>
    %cst_40 = arith.constant 0.000000e+00 : f32
    %65 = vector.broadcast %cst_40 : f32 to vector<8x1024xf32>
    %66 = arith.maximumf %64, %65 : vector<8x1024xf32>
    %67 = vector.broadcast %2 : vector<1x1024xf32> to vector<8x1024xf32>
    %68 = arith.mulf %66, %67 : vector<8x1024xf32>
    %c111_i32_41 = arith.constant 111 : i32
    %69 = tpu.dynamic_rotate %68 by %c111_i32_41 dim 1 : vector<8x1024xf32>, i32 -> vector<8x1024xf32>
    %c0_42 = arith.constant 0 : index
    %c0_43 = arith.constant 0 : index
    %70 = vector.load %arg10[%c0_42, %c0_43] : memref<216x1024xf32, #tpu.memory_space<vmem>>, vector<8x1024xf32>
    tpu.vector_store %arg10[%c0_42, %c0_43], %69 {strides = array<i32>} : memref<216x1024xf32, #tpu.memory_space<vmem>>, vector<8x1024xf32>,
    %c110_i32_44 = arith.constant 110 : i32
    %71 = tpu.dynamic_rotate %68 by %c110_i32_44 dim 1 : vector<8x1024xf32>, i32 -> vector<8x1024xf32>
    %c8_45 = arith.constant 8 : index
    %c0_46 = arith.constant 0 : index
    %72 = vector.load %arg10[%c8_45, %c0_46] : memref<216x1024xf32, #tpu.memory_space<vmem>>, vector<8x1024xf32>
    tpu.vector_store %arg10[%c8_45, %c0_46], %71 {strides = array<i32>} : memref<216x1024xf32, #tpu.memory_space<vmem>>, vector<8x1024xf32>,
    %c109_i32_47 = arith.constant 109 : i32
    %73 = tpu.dynamic_rotate %68 by %c109_i32_47 dim 1 : vector<8x1024xf32>, i32 -> vector<8x1024xf32>
    %c16_48 = arith.constant 16 : index
    %c0_49 = arith.constant 0 : index
    %74 = vector.load %arg10[%c16_48, %c0_49] : memref<216x1024xf32, #tpu.memory_space<vmem>>, vector<8x1024xf32>
    tpu.vector_store %arg10[%c16_48, %c0_49], %73 {strides = array<i32>} : memref<216x1024xf32, #tpu.memory_space<vmem>>, vector<8x1024xf32>,
    %c101_i32_50 = arith.constant 101 : i32
    %75 = tpu.dynamic_rotate %68 by %c101_i32_50 dim 1 : vector<8x1024xf32>, i32 -> vector<8x1024xf32>
    %c24_51 = arith.constant 24 : index
    %c0_52 = arith.constant 0 : index
    %76 = vector.load %arg10[%c24_51, %c0_52] : memref<216x1024xf32, #tpu.memory_space<vmem>>, vector<8x1024xf32>
    tpu.vector_store %arg10[%c24_51, %c0_52], %75 {strides = array<i32>} : memref<216x1024xf32, #tpu.memory_space<vmem>>, vector<8x1024xf32>,
    %c100_i32_53 = arith.constant 100 : i32
    %77 = tpu.dynamic_rotate %68 by %c100_i32_53 dim 1 : vector<8x1024xf32>, i32 -> vector<8x1024xf32>
    %c32_54 = arith.constant 32 : index
    %c0_55 = arith.constant 0 : index
    %78 = vector.load %arg10[%c32_54, %c0_55] : memref<216x1024xf32, #tpu.memory_space<vmem>>, vector<8x1024xf32>
    tpu.vector_store %arg10[%c32_54, %c0_55], %77 {strides = array<i32>} : memref<216x1024xf32, #tpu.memory_space<vmem>>, vector<8x1024xf32>,
    %c99_i32_56 = arith.constant 99 : i32
    %79 = tpu.dynamic_rotate %68 by %c99_i32_56 dim 1 : vector<8x1024xf32>, i32 -> vector<8x1024xf32>
    %c40_57 = arith.constant 40 : index
    %c0_58 = arith.constant 0 : index
    %80 = vector.load %arg10[%c40_57, %c0_58] : memref<216x1024xf32, #tpu.memory_space<vmem>>, vector<8x1024xf32>
    tpu.vector_store %arg10[%c40_57, %c0_58], %79 {strides = array<i32>} : memref<216x1024xf32, #tpu.memory_space<vmem>>, vector<8x1024xf32>,
    %c91_i32_59 = arith.constant 91 : i32
    %81 = tpu.dynamic_rotate %68 by %c91_i32_59 dim 1 : vector<8x1024xf32>, i32 -> vector<8x1024xf32>
    %c48_60 = arith.constant 48 : index
    %c0_61 = arith.constant 0 : index
    %82 = vector.load %arg10[%c48_60, %c0_61] : memref<216x1024xf32, #tpu.memory_space<vmem>>, vector<8x1024xf32>
    tpu.vector_store %arg10[%c48_60, %c0_61], %81 {strides = array<i32>} : memref<216x1024xf32, #tpu.memory_space<vmem>>, vector<8x1024xf32>,
    %c90_i32_62 = arith.constant 90 : i32
    %83 = tpu.dynamic_rotate %68 by %c90_i32_62 dim 1 : vector<8x1024xf32>, i32 -> vector<8x1024xf32>
    %c56_63 = arith.constant 56 : index
    %c0_64 = arith.constant 0 : index
    %84 = vector.load %arg10[%c56_63, %c0_64] : memref<216x1024xf32, #tpu.memory_space<vmem>>, vector<8x1024xf32>
    tpu.vector_store %arg10[%c56_63, %c0_64], %83 {strides = array<i32>} : memref<216x1024xf32, #tpu.memory_space<vmem>>, vector<8x1024xf32>,
    %c89_i32_65 = arith.constant 89 : i32
    %85 = tpu.dynamic_rotate %68 by %c89_i32_65 dim 1 : vector<8x1024xf32>, i32 -> vector<8x1024xf32>
    %c64_66 = arith.constant 64 : index
    %c0_67 = arith.constant 0 : index
    %86 = vector.load %arg10[%c64_66, %c0_67] : memref<216x1024xf32, #tpu.memory_space<vmem>>, vector<8x1024xf32>
    tpu.vector_store %arg10[%c64_66, %c0_67], %85 {strides = array<i32>} : memref<216x1024xf32, #tpu.memory_space<vmem>>, vector<8x1024xf32>,
    %c11_i32_68 = arith.constant 11 : i32
    %87 = tpu.dynamic_rotate %68 by %c11_i32_68 dim 1 : vector<8x1024xf32>, i32 -> vector<8x1024xf32>
    %c72_69 = arith.constant 72 : index
    %c0_70 = arith.constant 0 : index
    %88 = vector.load %arg10[%c72_69, %c0_70] : memref<216x1024xf32, #tpu.memory_space<vmem>>, vector<8x1024xf32>
    tpu.vector_store %arg10[%c72_69, %c0_70], %87 {strides = array<i32>} : memref<216x1024xf32, #tpu.memory_space<vmem>>, vector<8x1024xf32>,
    %c10_i32_71 = arith.constant 10 : i32
    %89 = tpu.dynamic_rotate %68 by %c10_i32_71 dim 1 : vector<8x1024xf32>, i32 -> vector<8x1024xf32>
    %c80_72 = arith.constant 80 : index
    %c0_73 = arith.constant 0 : index
    %90 = vector.load %arg10[%c80_72, %c0_73] : memref<216x1024xf32, #tpu.memory_space<vmem>>, vector<8x1024xf32>
    tpu.vector_store %arg10[%c80_72, %c0_73], %89 {strides = array<i32>} : memref<216x1024xf32, #tpu.memory_space<vmem>>, vector<8x1024xf32>,
    %c9_i32_74 = arith.constant 9 : i32
    %91 = tpu.dynamic_rotate %68 by %c9_i32_74 dim 1 : vector<8x1024xf32>, i32 -> vector<8x1024xf32>
    %c88_75 = arith.constant 88 : index
    %c0_76 = arith.constant 0 : index
    %92 = vector.load %arg10[%c88_75, %c0_76] : memref<216x1024xf32, #tpu.memory_space<vmem>>, vector<8x1024xf32>
    tpu.vector_store %arg10[%c88_75, %c0_76], %91 {strides = array<i32>} : memref<216x1024xf32, #tpu.memory_space<vmem>>, vector<8x1024xf32>,
    %c1_i32_77 = arith.constant 1 : i32
    %93 = tpu.dynamic_rotate %68 by %c1_i32_77 dim 1 : vector<8x1024xf32>, i32 -> vector<8x1024xf32>
    %c96_78 = arith.constant 96 : index
    %c0_79 = arith.constant 0 : index
    %94 = vector.load %arg10[%c96_78, %c0_79] : memref<216x1024xf32, #tpu.memory_space<vmem>>, vector<8x1024xf32>
    tpu.vector_store %arg10[%c96_78, %c0_79], %93 {strides = array<i32>} : memref<216x1024xf32, #tpu.memory_space<vmem>>, vector<8x1024xf32>,
    %c104_80 = arith.constant 104 : index
    %c0_81 = arith.constant 0 : index
    %95 = vector.load %arg10[%c104_80, %c0_81] : memref<216x1024xf32, #tpu.memory_space<vmem>>, vector<8x1024xf32>
    tpu.vector_store %arg10[%c104_80, %c0_81], %68 {strides = array<i32>} : memref<216x1024xf32, #tpu.memory_space<vmem>>, vector<8x1024xf32>,
    %c1023_i32_82 = arith.constant 1023 : i32
    %96 = tpu.dynamic_rotate %68 by %c1023_i32_82 dim 1 : vector<8x1024xf32>, i32 -> vector<8x1024xf32>
    %c112_83 = arith.constant 112 : index
    %c0_84 = arith.constant 0 : index
    %97 = vector.load %arg10[%c112_83, %c0_84] : memref<216x1024xf32, #tpu.memory_space<vmem>>, vector<8x1024xf32>
    tpu.vector_store %arg10[%c112_83, %c0_84], %96 {strides = array<i32>} : memref<216x1024xf32, #tpu.memory_space<vmem>>, vector<8x1024xf32>,
    %c1015_i32_85 = arith.constant 1015 : i32
    %98 = tpu.dynamic_rotate %68 by %c1015_i32_85 dim 1 : vector<8x1024xf32>, i32 -> vector<8x1024xf32>
    %c120_86 = arith.constant 120 : index
    %c0_87 = arith.constant 0 : index
    %99 = vector.load %arg10[%c120_86, %c0_87] : memref<216x1024xf32, #tpu.memory_space<vmem>>, vector<8x1024xf32>
    tpu.vector_store %arg10[%c120_86, %c0_87], %98 {strides = array<i32>} : memref<216x1024xf32, #tpu.memory_space<vmem>>, vector<8x1024xf32>,
    %c1014_i32_88 = arith.constant 1014 : i32
    %100 = tpu.dynamic_rotate %68 by %c1014_i32_88 dim 1 : vector<8x1024xf32>, i32 -> vector<8x1024xf32>
    %c128_89 = arith.constant 128 : index
    %c0_90 = arith.constant 0 : index
    %101 = vector.load %arg10[%c128_89, %c0_90] : memref<216x1024xf32, #tpu.memory_space<vmem>>, vector<8x1024xf32>
    tpu.vector_store %arg10[%c128_89, %c0_90], %100 {strides = array<i32>} : memref<216x1024xf32, #tpu.memory_space<vmem>>, vector<8x1024xf32>,
    %c1013_i32_91 = arith.constant 1013 : i32
    %102 = tpu.dynamic_rotate %68 by %c1013_i32_91 dim 1 : vector<8x1024xf32>, i32 -> vector<8x1024xf32>
    %c136_92 = arith.constant 136 : index
    %c0_93 = arith.constant 0 : index
    %103 = vector.load %arg10[%c136_92, %c0_93] : memref<216x1024xf32, #tpu.memory_space<vmem>>, vector<8x1024xf32>
    tpu.vector_store %arg10[%c136_92, %c0_93], %102 {strides = array<i32>} : memref<216x1024xf32, #tpu.memory_space<vmem>>, vector<8x1024xf32>,
    %c935_i32_94 = arith.constant 935 : i32
    %104 = tpu.dynamic_rotate %68 by %c935_i32_94 dim 1 : vector<8x1024xf32>, i32 -> vector<8x1024xf32>
    %c144_95 = arith.constant 144 : index
    %c0_96 = arith.constant 0 : index
    %105 = vector.load %arg10[%c144_95, %c0_96] : memref<216x1024xf32, #tpu.memory_space<vmem>>, vector<8x1024xf32>
    tpu.vector_store %arg10[%c144_95, %c0_96], %104 {strides = array<i32>} : memref<216x1024xf32, #tpu.memory_space<vmem>>, vector<8x1024xf32>,
    %c934_i32_97 = arith.constant 934 : i32
    %106 = tpu.dynamic_rotate %68 by %c934_i32_97 dim 1 : vector<8x1024xf32>, i32 -> vector<8x1024xf32>
    %c152_98 = arith.constant 152 : index
    %c0_99 = arith.constant 0 : index
    %107 = vector.load %arg10[%c152_98, %c0_99] : memref<216x1024xf32, #tpu.memory_space<vmem>>, vector<8x1024xf32>
    tpu.vector_store %arg10[%c152_98, %c0_99], %106 {strides = array<i32>} : memref<216x1024xf32, #tpu.memory_space<vmem>>, vector<8x1024xf32>,
    %c933_i32_100 = arith.constant 933 : i32
    %108 = tpu.dynamic_rotate %68 by %c933_i32_100 dim 1 : vector<8x1024xf32>, i32 -> vector<8x1024xf32>
    %c160_101 = arith.constant 160 : index
    %c0_102 = arith.constant 0 : index
    %109 = vector.load %arg10[%c160_101, %c0_102] : memref<216x1024xf32, #tpu.memory_space<vmem>>, vector<8x1024xf32>
    tpu.vector_store %arg10[%c160_101, %c0_102], %108 {strides = array<i32>} : memref<216x1024xf32, #tpu.memory_space<vmem>>, vector<8x1024xf32>,
    %c925_i32_103 = arith.constant 925 : i32
    %110 = tpu.dynamic_rotate %68 by %c925_i32_103 dim 1 : vector<8x1024xf32>, i32 -> vector<8x1024xf32>
    %c168_104 = arith.constant 168 : index
    %c0_105 = arith.constant 0 : index
    %111 = vector.load %arg10[%c168_104, %c0_105] : memref<216x1024xf32, #tpu.memory_space<vmem>>, vector<8x1024xf32>
    tpu.vector_store %arg10[%c168_104, %c0_105], %110 {strides = array<i32>} : memref<216x1024xf32, #tpu.memory_space<vmem>>, vector<8x1024xf32>,
    %c924_i32_106 = arith.constant 924 : i32
    %112 = tpu.dynamic_rotate %68 by %c924_i32_106 dim 1 : vector<8x1024xf32>, i32 -> vector<8x1024xf32>
    %c176_107 = arith.constant 176 : index
    %c0_108 = arith.constant 0 : index
    %113 = vector.load %arg10[%c176_107, %c0_108] : memref<216x1024xf32, #tpu.memory_space<vmem>>, vector<8x1024xf32>
    tpu.vector_store %arg10[%c176_107, %c0_108], %112 {strides = array<i32>} : memref<216x1024xf32, #tpu.memory_space<vmem>>, vector<8x1024xf32>,
    %c923_i32_109 = arith.constant 923 : i32
    %114 = tpu.dynamic_rotate %68 by %c923_i32_109 dim 1 : vector<8x1024xf32>, i32 -> vector<8x1024xf32>
    %c184_110 = arith.constant 184 : index
    %c0_111 = arith.constant 0 : index
    %115 = vector.load %arg10[%c184_110, %c0_111] : memref<216x1024xf32, #tpu.memory_space<vmem>>, vector<8x1024xf32>
    tpu.vector_store %arg10[%c184_110, %c0_111], %114 {strides = array<i32>} : memref<216x1024xf32, #tpu.memory_space<vmem>>, vector<8x1024xf32>,
    %c915_i32_112 = arith.constant 915 : i32
    %116 = tpu.dynamic_rotate %68 by %c915_i32_112 dim 1 : vector<8x1024xf32>, i32 -> vector<8x1024xf32>
    %c192_113 = arith.constant 192 : index
    %c0_114 = arith.constant 0 : index
    %117 = vector.load %arg10[%c192_113, %c0_114] : memref<216x1024xf32, #tpu.memory_space<vmem>>, vector<8x1024xf32>
    tpu.vector_store %arg10[%c192_113, %c0_114], %116 {strides = array<i32>} : memref<216x1024xf32, #tpu.memory_space<vmem>>, vector<8x1024xf32>,
    %c914_i32_115 = arith.constant 914 : i32
    %118 = tpu.dynamic_rotate %68 by %c914_i32_115 dim 1 : vector<8x1024xf32>, i32 -> vector<8x1024xf32>
    %c200_116 = arith.constant 200 : index
    %c0_117 = arith.constant 0 : index
    %119 = vector.load %arg10[%c200_116, %c0_117] : memref<216x1024xf32, #tpu.memory_space<vmem>>, vector<8x1024xf32>
    tpu.vector_store %arg10[%c200_116, %c0_117], %118 {strides = array<i32>} : memref<216x1024xf32, #tpu.memory_space<vmem>>, vector<8x1024xf32>,
    %c913_i32_118 = arith.constant 913 : i32
    %120 = tpu.dynamic_rotate %68 by %c913_i32_118 dim 1 : vector<8x1024xf32>, i32 -> vector<8x1024xf32>
    %c208_119 = arith.constant 208 : index
    %c0_120 = arith.constant 0 : index
    %121 = vector.load %arg10[%c208_119, %c0_120] : memref<216x1024xf32, #tpu.memory_space<vmem>>, vector<8x1024xf32>
    tpu.vector_store %arg10[%c208_119, %c0_120], %120 {strides = array<i32>} : memref<216x1024xf32, #tpu.memory_space<vmem>>, vector<8x1024xf32>,
    %c0_121 = arith.constant 0 : index
    %c0_122 = arith.constant 0 : index
    %122 = vector.load %arg3[%c0_121, %c0_122] : memref<8x216xf32, #tpu.memory_space<vmem>>, vector<8x216xf32>
    %c0_123 = arith.constant 0 : index
    %c0_124 = arith.constant 0 : index
    %123 = vector.load %arg10[%c0_123, %c0_124] : memref<216x1024xf32, #tpu.memory_space<vmem>>, vector<216x1024xf32>
    %cst_125 = arith.constant dense<0.000000e+00> : vector<8x1024xf32>
    %124 = tpu.matmul %122, %123, %cst_125 {dimension_numbers = #tpu.dot_dimension_numbers<[1], [0], [0], [1], [0, 0, 1, 1], [], []>} : vector<8x216xf32>, vector<216x1024xf32>, vector<8x1024xf32> -> vector<8x1024xf32>
    %c0_126 = arith.constant 0 : index
    %c0_127 = arith.constant 0 : index
    %125 = vector.load %arg6[%c0_126, %c0_127] : memref<8x1xf32, #tpu.memory_space<vmem>>, vector<8x1xf32>
    %126 = vector.broadcast %125 : vector<8x1xf32> to vector<8x1024xf32>
    %127 = arith.mulf %124, %126 : vector<8x1024xf32>
    %c0_128 = arith.constant 0 : index
    %c0_129 = arith.constant 0 : index
    %128 = vector.load %arg7[%c0_128, %c0_129] : memref<8x1xf32, #tpu.memory_space<vmem>>, vector<8x1xf32>
    %129 = vector.broadcast %128 : vector<8x1xf32> to vector<8x1024xf32>
    %130 = arith.addf %127, %129 : vector<8x1024xf32>
    %131 = arith.addf %130, %1 : vector<8x1024xf32>
    %cst_130 = arith.constant 0.000000e+00 : f32
    %132 = vector.broadcast %cst_130 : f32 to vector<8x1024xf32>
    %133 = arith.maximumf %131, %132 : vector<8x1024xf32>
    %c0_131 = arith.constant 0 : index
    %c0_132 = arith.constant 0 : index
    %c0_133 = arith.constant 0 : index
    %134 = vector.load %arg9[%c0_131, %c0_132, %c0_133] : memref<1x8x1024xf32, #tpu.memory_space<vmem>>, vector<1x8x1024xf32>
    %135 = vector.shape_cast %134 : vector<1x8x1024xf32> to vector<8x1024xf32>
    %136 = vector.shape_cast %133 : vector<8x1024xf32> to vector<1x8x1024xf32>
    tpu.vector_store %arg9[%c0_131, %c0_132, %c0_133], %136 {strides = array<i32>} : memref<1x8x1024xf32, #tpu.memory_space<vmem>>, vector<1x8x1024xf32>,
    return
  }
  func.func @transform_0(%arg0: i32) -> (i32, i32, i32) {
    %c0_i32 = arith.constant 0 : i32
    %c0_i32_0 = arith.constant 0 : i32
    %c0_i32_1 = arith.constant 0 : i32
    return %arg0, %c0_i32, %c0_i32_0 : i32, i32, i32
  }
  func.func @transform_1(%arg0: i32) -> (i32, i32) {
    %c0_i32 = arith.constant 0 : i32
    %c0_i32_0 = arith.constant 0 : i32
    %c0_i32_1 = arith.constant 0 : i32
    return %c0_i32, %c0_i32_0 : i32, i32
  }
  func.func @transform_2(%arg0: i32) -> (i32, i32) {
    %c0_i32 = arith.constant 0 : i32
    %c0_i32_0 = arith.constant 0 : i32
    %c0_i32_1 = arith.constant 0 : i32
    return %c0_i32, %c0_i32_0 : i32, i32
  }
  func.func @transform_3(%arg0: i32) -> (i32, i32) {
    %c0_i32 = arith.constant 0 : i32
    %c0_i32_0 = arith.constant 0 : i32
    %c0_i32_1 = arith.constant 0 : i32
    return %c0_i32, %c0_i32_0 : i32, i32
  }
  func.func @transform_4(%arg0: i32) -> (i32, i32) {
    %c0_i32 = arith.constant 0 : i32
    %c0_i32_0 = arith.constant 0 : i32
    %c0_i32_1 = arith.constant 0 : i32
    return %c0_i32, %c0_i32_0 : i32, i32
  }
  func.func @transform_5(%arg0: i32) -> (i32, i32) {
    %c0_i32 = arith.constant 0 : i32
    %c0_i32_0 = arith.constant 0 : i32
    %c0_i32_1 = arith.constant 0 : i32
    return %c0_i32, %c0_i32_0 : i32, i32
  }
  func.func @transform_6(%arg0: i32) -> (i32, i32) {
    %c0_i32 = arith.constant 0 : i32
    %c0_i32_0 = arith.constant 0 : i32
    %c0_i32_1 = arith.constant 0 : i32
    return %c0_i32, %c0_i32_0 : i32, i32
  }
  func.func @transform_7(%arg0: i32) -> (i32, i32) {
    %c0_i32 = arith.constant 0 : i32
    %c0_i32_0 = arith.constant 0 : i32
    %c0_i32_1 = arith.constant 0 : i32
    return %c0_i32, %c0_i32_0 : i32, i32
  }
  func.func @transform_8(%arg0: i32) -> (i32, i32, i32) {
    %c0_i32 = arith.constant 0 : i32
    %c0_i32_0 = arith.constant 0 : i32
    %c0_i32_1 = arith.constant 0 : i32
    return %arg0, %c0_i32, %c0_i32_0 : i32, i32, i32
  }
}

</mosaic_0001>

<llo_original>
// kernel: basic_block_forward.1
$region0: #{basic_block_forward.1}
  #allocation0 [shape = 'u32[]', space=smem, size = 0x4, offset = 0x4, fixed_abs, tag = 'smem constant byte address 0x4 - core index']
  #allocation1 [shape = 'u32[72,128]{1,0:T(1,128)}', space=vmem, size = 0x9000, scoped, tag = 'internal scratch']
  #allocation2 [shape = 'f32[216,1024]{1,0:T(8,128)}', space=vmem, size = 0xd8000, scoped, tag = 'scratch operand']
  %s0 = inlined_call_operand.vmem [shape: f32[2,8,1024], index: 0, kind: input, shape index: {}]
  %s1 = inlined_call_operand.vmem [shape: f32[8,216], index: 1, kind: input, shape index: {}]
  %s2 = inlined_call_operand.vmem [shape: f32[8,216], index: 2, kind: input, shape index: {}]
  %s3 = inlined_call_operand.vmem [shape: f32[8,1], index: 3, kind: input, shape index: {}]
  %s4 = inlined_call_operand.vmem [shape: f32[8,1], index: 4, kind: input, shape index: {}]
  %s5 = inlined_call_operand.vmem [shape: f32[8,1], index: 5, kind: input, shape index: {}]
  %s6 = inlined_call_operand.vmem [shape: f32[8,1], index: 6, kind: input, shape index: {}]
  %s7 = inlined_call_operand.vmem [shape: f32[1,1024], index: 7, kind: input, shape index: {}]
  %s8 = inlined_call_operand.vmem [shape: f32[2,8,1024], index: 8, kind: output, shape index: {}]
  %s9 = sld [smem:[#allocation0]]
  $region65: #{basic_block_forward.1} parent=0
    _
  %s11 = ssub.s32 1, %s9
  %s12 = scalar_select 0, %s11, %s9
  loop: start=0, step=1, limit=4
  $region2: #{basic_block_forward.1} parent=0 // loop_pre_header
    _
  $region3: #{basic_block_forward.1} parent=0 // loop_header
    %s14 = sphi 0, %s18
    %p15 = scmp.ge.s32.totalorder %s14, 4
    %s24 = sphi 0, %s26
    %s27 = sphi 0, %s24
    %s28 = sphi 0, %s27
    %s44 = sphi 0, %s28
    %s48 = sphi 0, %s48
    %s50 = sphi 0, %s48
    %s51 = sphi 0, %s50
    %s65 = sphi 0, %s51
    %s69 = sphi 0, %s69
    %s71 = sphi 0, %s69
    %s72 = sphi 0, %s71
    %s86 = sphi 0, %s72
    %s90 = sphi 0, %s90
    %s92 = sphi 0, %s90
    %s93 = sphi 0, %s92
    %s107 = sphi 0, %s93
    %s111 = sphi 0, %s111
    %s113 = sphi 0, %s111
    %s114 = sphi 0, %s113
    %s128 = sphi 0, %s114
    %s132 = sphi 0, %s132
    %s134 = sphi 0, %s132
    %s135 = sphi 0, %s134
    %s149 = sphi 0, %s135
    %s153 = sphi 0, %s153
    %s155 = sphi 0, %s153
    %s156 = sphi 0, %s155
    %s170 = sphi 0, %s156
    %s174 = sphi 0, %s174
    %s176 = sphi 0, %s174
    %s177 = sphi 0, %s176
    %s191 = sphi 0, %s177
    %s197 = sphi 0, %s199
    %s200 = sphi 0, %s197
    %s201 = sphi 0, %s200
    %s217 = sphi 0, %s201
  $region4: #{basic_block_forward.1} parent=0 // loop_header_branch
    %17 = sbr.rel (%p15) target = $region8
  $region5: #{basic_block_forward.1} parent=0 // loop_body
    %s19 = ssub.s32 %s14, 1
    %s20 = ssub.s32 %s14, 2
    %s21 = sadd.s32 %s14, 1
    %s22 = ssub.s32 %s14, %s21
    %p23 = scmp.eq.s32.totalorder %s22, 0
    %s25 = sadd.s32 %s24, 1
    %s26 = scalar_select %p23, %s24, %s25
    %p29 = pneg %p23
    %p30 = scmp.eq.s32.totalorder %s14, 1
    %p31 = por %p29, %p30
    %p32 = scmp.ne.s32.totalorder %s24, %s27
    %p33 = scmp.eq.s32.totalorder %s14, 0
    %p34 = por %p32, %p33
    %p35 = scmp.ne.s32.totalorder %s24, %s27
    %p36 = scmp.eq.s32.totalorder %s19, 1
    %p37 = por %p35, %p36
    %p38 = scmp.ne.s32.totalorder %s27, %s28
    %p39 = scmp.eq.s32.totalorder %s19, 0
    %p40 = por %p38, %p39
    %p41 = scmp.ne.s32.totalorder %s27, %s28
    %p42 = scmp.eq.s32.totalorder %s20, 1
    %p43 = por %p41, %p42
    %p45 = scmp.ne.s32.totalorder %s28, %s44
    %p46 = scmp.eq.s32.totalorder %s20, 0
    %p47 = por %p45, %p46
    %s49 = sadd.s32 %s48, 1
    %p52 = scmp.eq.s32.totalorder %s14, 1
    %p53 = scmp.ne.s32.totalorder %s48, %s50
    %p54 = scmp.eq.s32.totalorder %s14, 0
    %p55 = por %p53, %p54
    %p56 = scmp.ne.s32.totalorder %s48, %s50
    %p57 = scmp.eq.s32.totalorder %s19, 1
    %p58 = por %p56, %p57
    %p59 = scmp.ne.s32.totalorder %s50, %s51
    %p60 = scmp.eq.s32.totalorder %s19, 0
    %p61 = por %p59, %p60
    %p62 = scmp.ne.s32.totalorder %s50, %s51
    %p63 = scmp.eq.s32.totalorder %s20, 1
    %p64 = por %p62, %p63
    %p66 = scmp.ne.s32.totalorder %s51, %s65
    %p67 = scmp.eq.s32.totalorder %s20, 0
    %p68 = por %p66, %p67
    %s70 = sadd.s32 %s69, 1
    %p73 = scmp.eq.s32.totalorder %s14, 1
    %p74 = scmp.ne.s32.totalorder %s69, %s71
    %p75 = scmp.eq.s32.totalorder %s14, 0
    %p76 = por %p74, %p75
    %p77 = scmp.ne.s32.totalorder %s69, %s71
    %p78 = scmp.eq.s32.totalorder %s19, 1
    %p79 = por %p77, %p78
    %p80 = scmp.ne.s32.totalorder %s71, %s72
    %p81 = scmp.eq.s32.totalorder %s19, 0
    %p82 = por %p80, %p81
    %p83 = scmp.ne.s32.totalorder %s71, %s72
    %p84 = scmp.eq.s32.totalorder %s20, 1
    %p85 = por %p83, %p84
    %p87 = scmp.ne.s32.totalorder %s72, %s86
    %p88 = scmp.eq.s32.totalorder %s20, 0
    %p89 = por %p87, %p88
    %s91 = sadd.s32 %s90, 1
    %p94 = scmp.eq.s32.totalorder %s14, 1
    %p95 = scmp.ne.s32.totalorder %s90, %s92
    %p96 = scmp.eq.s32.totalorder %s14, 0
    %p97 = por %p95, %p96
    %p98 = scmp.ne.s32.totalorder %s90, %s92
    %p99 = scmp.eq.s32.totalorder %s19, 1
    %p100 = por %p98, %p99
    %p101 = scmp.ne.s32.totalorder %s92, %s93
    %p102 = scmp.eq.s32.totalorder %s19, 0
    %p103 = por %p101, %p102
    %p104 = scmp.ne.s32.totalorder %s92, %s93
    %p105 = scmp.eq.s32.totalorder %s20, 1
    %p106 = por %p104, %p105
    %p108 = scmp.ne.s32.totalorder %s93, %s107
    %p109 = scmp.eq.s32.totalorder %s20, 0
    %p110 = por %p108, %p109
    %s112 = sadd.s32 %s111, 1
    %p115 = scmp.eq.s32.totalorder %s14, 1
    %p116 = scmp.ne.s32.totalorder %s111, %s113
    %p117 = scmp.eq.s32.totalorder %s14, 0
    %p118 = por %p116, %p117
    %p119 = scmp.ne.s32.totalorder %s111, %s113
    %p120 = scmp.eq.s32.totalorder %s19, 1
    %p121 = por %p119, %p120
    %p122 = scmp.ne.s32.totalorder %s113, %s114
    %p123 = scmp.eq.s32.totalorder %s19, 0
    %p124 = por %p122, %p123
    %p125 = scmp.ne.s32.totalorder %s113, %s114
    %p126 = scmp.eq.s32.totalorder %s20, 1
    %p127 = por %p125, %p126
    %p129 = scmp.ne.s32.totalorder %s114, %s128
    %p130 = scmp.eq.s32.totalorder %s20, 0
    %p131 = por %p129, %p130
    %s133 = sadd.s32 %s132, 1
    %p136 = scmp.eq.s32.totalorder %s14, 1
    %p137 = scmp.ne.s32.totalorder %s132, %s134
    %p138 = scmp.eq.s32.totalorder %s14, 0
    %p139 = por %p137, %p138
    %p140 = scmp.ne.s32.totalorder %s132, %s134
    %p141 = scmp.eq.s32.totalorder %s19, 1
    %p142 = por %p140, %p141
    %p143 = scmp.ne.s32.totalorder %s134, %s135
    %p144 = scmp.eq.s32.totalorder %s19, 0
    %p145 = por %p143, %p144
    %p146 = scmp.ne.s32.totalorder %s134, %s135
    %p147 = scmp.eq.s32.totalorder %s20, 1
    %p148 = por %p146, %p147
    %p150 = scmp.ne.s32.totalorder %s135, %s149
    %p151 = scmp.eq.s32.totalorder %s20, 0
    %p152 = por %p150, %p151
    %s154 = sadd.s32 %s153, 1
    %p157 = scmp.eq.s32.totalorder %s14, 1
    %p158 = scmp.ne.s32.totalorder %s153, %s155
    %p159 = scmp.eq.s32.totalorder %s14, 0
    %p160 = por %p158, %p159
    %p161 = scmp.ne.s32.totalorder %s153, %s155
    %p162 = scmp.eq.s32.totalorder %s19, 1
    %p163 = por %p161, %p162
    %p164 = scmp.ne.s32.totalorder %s155, %s156
    %p165 = scmp.eq.s32.totalorder %s19, 0
    %p166 = por %p164, %p165
    %p167 = scmp.ne.s32.totalorder %s155, %s156
    %p168 = scmp.eq.s32.totalorder %s20, 1
    %p169 = por %p167, %p168
    %p171 = scmp.ne.s32.totalorder %s156, %s170
    %p172 = scmp.eq.s32.totalorder %s20, 0
    %p173 = por %p171, %p172
    %s175 = sadd.s32 %s174, 1
    %p178 = scmp.eq.s32.totalorder %s14, 1
    %p179 = scmp.ne.s32.totalorder %s174, %s176
    %p180 = scmp.eq.s32.totalorder %s14, 0
    %p181 = por %p179, %p180
    %p182 = scmp.ne.s32.totalorder %s174, %s176
    %p183 = scmp.eq.s32.totalorder %s19, 1
    %p184 = por %p182, %p183
    %p185 = scmp.ne.s32.totalorder %s176, %s177
    %p186 = scmp.eq.s32.totalorder %s19, 0
    %p187 = por %p185, %p186
    %p188 = scmp.ne.s32.totalorder %s176, %s177
    %p189 = scmp.eq.s32.totalorder %s20, 1
    %p190 = por %p188, %p189
    %p192 = scmp.ne.s32.totalorder %s177, %s191
    %p193 = scmp.eq.s32.totalorder %s20, 0
    %p194 = por %p192, %p193
    %s195 = ssub.s32 %s14, %s21
    %p196 = scmp.eq.s32.totalorder %s195, 0
    %s198 = sadd.s32 %s197, 1
    %s199 = scalar_select %p196, %s197, %s198
    %p202 = pneg %p196
    %p203 = scmp.eq.s32.totalorder %s14, 1
    %p204 = por %p202, %p203
    %p205 = scmp.ne.s32.totalorder %s197, %s200
    %p206 = scmp.eq.s32.totalorder %s14, 0
    %p207 = por %p205, %p206
    %p208 = scmp.ne.s32.totalorder %s197, %s200
    %p209 = scmp.eq.s32.totalorder %s19, 1
    %p210 = por %p208, %p209
    %p211 = scmp.ne.s32.totalorder %s200, %s201
    %p212 = scmp.eq.s32.totalorder %s19, 0
    %p213 = por %p211, %p212
    %p214 = scmp.ne.s32.totalorder %s200, %s201
    %p215 = scmp.eq.s32.totalorder %s20, 1
    %p216 = por %p214, %p215
    %p218 = scmp.ne.s32.totalorder %s201, %s217
    %p219 = scmp.eq.s32.totalorder %s20, 0
    %p220 = por %p218, %p219
    %p221 = scmp.le.s32.totalorder 1, %s14
    %p222 = scmp.lt.s32.totalorder %s14, 3
    %p223 = pnand %p221, %p222
    %p224 = pneg %p223
    // Predicated region
    $region9: #{basic_block_forward.1} parent=5 // pred_check
      _
    $region10: #{basic_block_forward.1} parent=5 // pred_check_branch
      %226 = sbr.rel (%p223) target = $region12
    $region11: #{basic_block_forward.1} parent=5 // pred_region
      %s227 = ssub.s32 %s14, 1
      // Predicated region
      $region13: #{basic_block_forward.1} parent=11 // pred_check
        %p228 = pneg %p61
      $region14: #{basic_block_forward.1} parent=11 // pred_check_branch
        %230 = sbr.rel (%p228) target = $region16
      $region15: #{basic_block_forward.1} parent=11 // pred_region
        _
      $region16: #{basic_block_forward.1} parent=11 // pred_fallthru
        _
      // Predicated region
      $region17: #{basic_block_forward.1} parent=11 // pred_check
        %p231 = pneg %p82
      $region18: #{basic_block_forward.1} parent=11 // pred_check_branch
        %233 = sbr.rel (%p231) target = $region20
      $region19: #{basic_block_forward.1} parent=11 // pred_region
        _
      $region20: #{basic_block_forward.1} parent=11 // pred_fallthru
        _
      // Predicated region
      $region21: #{basic_block_forward.1} parent=11 // pred_check
        %p234 = pneg %p103
      $region22: #{basic_block_forward.1} parent=11 // pred_check_branch
        %236 = sbr.rel (%p234) target = $region24
      $region23: #{basic_block_forward.1} parent=11 // pred_region
        _
      $region24: #{basic_block_forward.1} parent=11 // pred_fallthru
        _
      // Predicated region
      $region25: #{basic_block_forward.1} parent=11 // pred_check
        %p237 = pneg %p124
      $region26: #{basic_block_forward.1} parent=11 // pred_check_branch
        %239 = sbr.rel (%p237) target = $region28
      $region27: #{basic_block_forward.1} parent=11 // pred_region
        _
      $region28: #{basic_block_forward.1} parent=11 // pred_fallthru
        _
      // Predicated region
      $region29: #{basic_block_forward.1} parent=11 // pred_check
        %p240 = pneg %p145
      $region30: #{basic_block_forward.1} parent=11 // pred_check_branch
        %242 = sbr.rel (%p240) target = $region32
      $region31: #{basic_block_forward.1} parent=11 // pred_region
        _
      $region32: #{basic_block_forward.1} parent=11 // pred_fallthru
        _
      // Predicated region
      $region33: #{basic_block_forward.1} parent=11 // pred_check
        %p243 = pneg %p166
      $region34: #{basic_block_forward.1} parent=11 // pred_check_branch
        %245 = sbr.rel (%p243) target = $region36
      $region35: #{basic_block_forward.1} parent=11 // pred_region
        _
      $region36: #{basic_block_forward.1} parent=11 // pred_fallthru
        _
      // Predicated region
      $region37: #{basic_block_forward.1} parent=11 // pred_check
        %p246 = pneg %p187
      $region38: #{basic_block_forward.1} parent=11 // pred_check_branch
        %248 = sbr.rel (%p246) target = $region40
      $region39: #{basic_block_forward.1} parent=11 // pred_region
        _
      $region40: #{basic_block_forward.1} parent=11 // pred_fallthru
        _
    $region12: #{basic_block_forward.1} parent=5 // pred_fallthru
      _
    %p249 = scmp.lt.s32.totalorder %s14, 2
    // Predicated region
    $region41: #{basic_block_forward.1} parent=5 // pred_check
      %p250 = pneg %p249
    $region42: #{basic_block_forward.1} parent=5 // pred_check_branch
      %252 = sbr.rel (%p250) target = $region44
    $region43: #{basic_block_forward.1} parent=5 // pred_region
      // Predicated region
      $region45: #{basic_block_forward.1} parent=43 // pred_check
        %p253 = pneg %p34
      $region46: #{basic_block_forward.1} parent=43 // pred_check_branch
        %255 = sbr.rel (%p253) target = $region48
      $region47: #{basic_block_forward.1} parent=43 // pred_region
        %p256 = scmp.lt.s32.totalorder %s14, 1
        %s257 = scalar_select %p256, %s14, 1
        %s258 = smul.addr %s257, 8
        %s259 = smul.addr %s258, 8
        %s260 = scalar_lea.vmem %s0, %s259
      $region48: #{basic_block_forward.1} parent=43 // pred_fallthru
        _
    $region44: #{basic_block_forward.1} parent=5 // pred_fallthru
      _
    %p261 = scmp.le.s32.totalorder 1, %s14
    %p262 = scmp.lt.s32.totalorder %s14, 3
    %p263 = pnand %p261, %p262
    %p264 = pneg %p263
    // Predicated region
    $region49: #{basic_block_forward.1} parent=5 // pred_check
      _
    $region50: #{basic_block_forward.1} parent=5 // pred_check_branch
      %266 = sbr.rel (%p263) target = $region52
    $region51: #{basic_block_forward.1} parent=5 // pred_region
      %s267 = ssub.s32 %s14, 1
      %p268 = scmp.lt.s32.totalorder %s19, 1
      %s269 = scalar_select %p268, %s19, 1
      %s270 = smul.addr %s269, 8
      %s271 = smul.addr %s270, 8
      %s272 = scalar_lea.vmem %s0, %s271
      %p273 = pneg %p40
      %p274 = pneg %p37
      %p275 = pneg %p61
      %p276 = pneg %p58
      %p277 = pneg %p82
      %p278 = pneg %p79
      %p279 = pneg %p103
      %p280 = pneg %p100
      %p281 = pneg %p124
      %p282 = pneg %p121
      %p283 = pneg %p145
      %p284 = pneg %p142
      %p285 = pneg %p166
      %p286 = pneg %p163
      %p287 = pneg %p187
      %p288 = pneg %p184
      %p289 = pneg %p213
      %p290 = pneg %p210
      %p291 = scmp.lt.s32.totalorder %s19, 1
      %s292 = scalar_select %p291, %s19, 1
      %s293 = smul.addr %s292, 8
      %s294 = smul.addr %s293, 8
      %s295 = scalar_lea.vmem %s8, %s294
      %p296 = scmp.lt.s32.totalorder %s19, 1
      %s297 = scalar_select %p296, %s19, 1
      %s298 = smul.addr %s297, 8
      %s299 = smul.addr %s298, 8
      %s300 = scalar_lea.vmem %s0, %s299
      %p301 = scmp.lt.s32.totalorder %s19, 1
      %s302 = scalar_select %p301, %s19, 1
      %s303 = smul.addr %s302, 8
      %s304 = smul.addr %s303, 8
      %s305 = scalar_lea.vmem %s8, %s304
      %v306 = vld [vmem:[%s300] sm:$0xff]
      %v307 = vld [vmem:[%s300 + $0x8] sm:$0xff]
      %v308 = vld [vmem:[%s300 + $0x10] sm:$0xff]
      %v309 = vld [vmem:[%s300 + $0x18] sm:$0xff]
      %v310 = vld [vmem:[%s300 + $0x20] sm:$0xff]
      %v311 = vld [vmem:[%s300 + $0x28] sm:$0xff]
      %v312 = vld [vmem:[%s300 + $0x30] sm:$0xff]
      %v313 = vld [vmem:[%s300 + $0x38] sm:$0xff]
      %v314 = vld [vmem:[%s7] sm:$0xff]
      %315 = vrot.lane.b32.xlu0 %v306, 111
      %v316 = vpop.permute.xlu0 %315
      %317 = vrot.lane.b32.xlu0 %v307, 111
      %v318 = vpop.permute.xlu0 %317
      %319 = vrot.lane.b32.xlu0 %v308, 111
      %v320 = vpop.permute.xlu0 %319
      %321 = vrot.lane.b32.xlu0 %v309, 111
      %v322 = vpop.permute.xlu0 %321
      %323 = vrot.lane.b32.xlu0 %v310, 111
      %v324 = vpop.permute.xlu0 %323
      %325 = vrot.lane.b32.xlu0 %v311, 111
      %v326 = vpop.permute.xlu0 %325
      %327 = vrot.lane.b32.xlu0 %v312, 111
      %v328 = vpop.permute.xlu0 %327
      %329 = vrot.lane.b32.xlu0 %v313, 111
      %v330 = vpop.permute.xlu0 %329
      %v331 = vlaneseq
      %v332 = vand.u32 %v331, 127
      %vm333 = vcmp.lt.s32.totalorder %v332, 111
      %v334 = vsel %vm333, %v328, %v330
      %v335 = vsel %vm333, %v326, %v328
      %v336 = vsel %vm333, %v324, %v326
      %v337 = vsel %vm333, %v322, %v324
      %v338 = vsel %vm333, %v320, %v322
      %v339 = vsel %vm333, %v318, %v320
      %v340 = vsel %vm333, %v316, %v318
      %v341 = vsel %vm333, %v330, %v316
      %342 = vst [vmem:[#allocation2] sm:$0xff] %v341
      %343 = vst [vmem:[#allocation2 + $0x8] sm:$0xff] %v340
      %344 = vst [vmem:[#allocation2 + $0x10] sm:$0xff] %v339
      %345 = vst [vmem:[#allocation2 + $0x18] sm:$0xff] %v338
      %346 = vst [vmem:[#allocation2 + $0x20] sm:$0xff] %v337
      %347 = vst [vmem:[#allocation2 + $0x28] sm:$0xff] %v336
      %348 = vst [vmem:[#allocation2 + $0x30] sm:$0xff] %v335
      %349 = vst [vmem:[#allocation2 + $0x38] sm:$0xff] %v334
      %350 = vrot.lane.b32.xlu0 %v306, 110
      %v351 = vpop.permute.xlu0 %350
      %352 = vrot.lane.b32.xlu0 %v307, 110
      %v353 = vpop.permute.xlu0 %352
      %354 = vrot.lane.b32.xlu0 %v308, 110
      %v355 = vpop.permute.xlu0 %354
      %356 = vrot.lane.b32.xlu0 %v309, 110
      %v357 = vpop.permute.xlu0 %356
      %358 = vrot.lane.b32.xlu0 %v310, 110
      %v359 = vpop.permute.xlu0 %358
      %360 = vrot.lane.b32.xlu0 %v311, 110
      %v361 = vpop.permute.xlu0 %360
      %362 = vrot.lane.b32.xlu0 %v312, 110
      %v363 = vpop.permute.xlu0 %362
      %364 = vrot.lane.b32.xlu0 %v313, 110
      %v365 = vpop.permute.xlu0 %364
      %vm366 = vcmp.lt.s32.totalorder %v332, 110
      %v367 = vsel %vm366, %v363, %v365
      %v368 = vsel %vm366, %v361, %v363
      %v369 = vsel %vm366, %v359, %v361
      %v370 = vsel %vm366, %v357, %v359
      %v371 = vsel %vm366, %v355, %v357
      %v372 = vsel %vm366, %v353, %v355
      %v373 = vsel %vm366, %v351, %v353
      %v374 = vsel %vm366, %v365, %v351
      %375 = vst [vmem:[#allocation2 + $0x40] sm:$0xff] %v374
      %376 = vst [vmem:[#allocation2 + $0x48] sm:$0xff] %v373
      %377 = vst [vmem:[#allocation2 + $0x50] sm:$0xff] %v372
      %378 = vst [vmem:[#allocation2 + $0x58] sm:$0xff] %v371
      %379 = vst [vmem:[#allocation2 + $0x60] sm:$0xff] %v370
      %380 = vst [vmem:[#allocation2 + $0x68] sm:$0xff] %v369
      %381 = vst [vmem:[#allocation2 + $0x70] sm:$0xff] %v368
      %382 = vst [vmem:[#allocation2 + $0x78] sm:$0xff] %v367
      %383 = vrot.lane.b32.xlu0 %v306, 109
      %v384 = vpop.permute.xlu0 %383
      %385 = vrot.lane.b32.xlu0 %v307, 109
      %v386 = vpop.permute.xlu0 %385
      %387 = vrot.lane.b32.xlu0 %v308, 109
      %v388 = vpop.permute.xlu0 %387
      %389 = vrot.lane.b32.xlu0 %v309, 109
      %v390 = vpop.permute.xlu0 %389
      %391 = vrot.lane.b32.xlu0 %v310, 109
      %v392 = vpop.permute.xlu0 %391
      %393 = vrot.lane.b32.xlu0 %v311, 109
      %v394 = vpop.permute.xlu0 %393
      %395 = vrot.lane.b32.xlu0 %v312, 109
      %v396 = vpop.permute.xlu0 %395
      %397 = vrot.lane.b32.xlu0 %v313, 109
      %v398 = vpop.permute.xlu0 %397
      %vm399 = vcmp.lt.s32.totalorder %v332, 109
      %v400 = vsel %vm399, %v396, %v398
      %v401 = vsel %vm399, %v394, %v396
      %v402 = vsel %vm399, %v392, %v394
      %v403 = vsel %vm399, %v390, %v392
      %v404 = vsel %vm399, %v388, %v390
      %v405 = vsel %vm399, %v386, %v388
      %v406 = vsel %vm399, %v384, %v386
      %v407 = vsel %vm399, %v398, %v384
      %408 = vst [vmem:[#allocation2 + $0x80] sm:$0xff] %v407
      %409 = vst [vmem:[#allocation2 + $0x88] sm:$0xff] %v406
      %410 = vst [vmem:[#allocation2 + $0x90] sm:$0xff] %v405
      %411 = vst [vmem:[#allocation2 + $0x98] sm:$0xff] %v404
      %412 = vst [vmem:[#allocation2 + $0xa0] sm:$0xff] %v403
      %413 = vst [vmem:[#allocation2 + $0xa8] sm:$0xff] %v402
      %414 = vst [vmem:[#allocation2 + $0xb0] sm:$0xff] %v401
      %415 = vst [vmem:[#allocation2 + $0xb8] sm:$0xff] %v400
      %416 = vrot.lane.b32.xlu0 %v306, 101
      %v417 = vpop.permute.xlu0 %416
      %418 = vrot.lane.b32.xlu0 %v307, 101
      %v419 = vpop.permute.xlu0 %418
      %420 = vrot.lane.b32.xlu0 %v308, 101
      %v421 = vpop.permute.xlu0 %420
      %422 = vrot.lane.b32.xlu0 %v309, 101
      %v423 = vpop.permute.xlu0 %422
      %424 = vrot.lane.b32.xlu0 %v310, 101
      %v425 = vpop.permute.xlu0 %424
      %426 = vrot.lane.b32.xlu0 %v311, 101
      %v427 = vpop.permute.xlu0 %426
      %428 = vrot.lane.b32.xlu0 %v312, 101
      %v429 = vpop.permute.xlu0 %428
      %430 = vrot.lane.b32.xlu0 %v313, 101
      %v431 = vpop.permute.xlu0 %430
      %vm432 = vcmp.lt.s32.totalorder %v332, 101
      %v433 = vsel %vm432, %v429, %v431
      %v434 = vsel %vm432, %v427, %v429
      %v435 = vsel %vm432, %v425, %v427
      %v436 = vsel %vm432, %v423, %v425
      %v437 = vsel %vm432, %v421, %v423
      %v438 = vsel %vm432, %v419, %v421
      %v439 = vsel %vm432, %v417, %v419
      %v440 = vsel %vm432, %v431, %v417
      %441 = vst [vmem:[#allocation2 + $0xc0] sm:$0xff] %v440
      %442 = vst [vmem:[#allocation2 + $0xc8] sm:$0xff] %v439
      %443 = vst [vmem:[#allocation2 + $0xd0] sm:$0xff] %v438
      %444 = vst [vmem:[#allocation2 + $0xd8] sm:$0xff] %v437
      %445 = vst [vmem:[#allocation2 + $0xe0] sm:$0xff] %v436
      %446 = vst [vmem:[#allocation2 + $0xe8] sm:$0xff] %v435
      %447 = vst [vmem:[#allocation2 + $0xf0] sm:$0xff] %v434
      %448 = vst [vmem:[#allocation2 + $0xf8] sm:$0xff] %v433
      %449 = vrot.lane.b32.xlu0 %v306, 100
      %v450 = vpop.permute.xlu0 %449
      %451 = vrot.lane.b32.xlu0 %v307, 100
      %v452 = vpop.permute.xlu0 %451
      %453 = vrot.lane.b32.xlu0 %v308, 100
      %v454 = vpop.permute.xlu0 %453
      %455 = vrot.lane.b32.xlu0 %v309, 100
      %v456 = vpop.permute.xlu0 %455
      %457 = vrot.lane.b32.xlu0 %v310, 100
      %v458 = vpop.permute.xlu0 %457
      %459 = vrot.lane.b32.xlu0 %v311, 100
      %v460 = vpop.permute.xlu0 %459
      %461 = vrot.lane.b32.xlu0 %v312, 100
      %v462 = vpop.permute.xlu0 %461
      %463 = vrot.lane.b32.xlu0 %v313, 100
      %v464 = vpop.permute.xlu0 %463
      %vm465 = vcmp.lt.s32.totalorder %v332, 100
      %v466 = vsel %vm465, %v462, %v464
      %v467 = vsel %vm465, %v460, %v462
      %v468 = vsel %vm465, %v458, %v460
      %v469 = vsel %vm465, %v456, %v458
      %v470 = vsel %vm465, %v454, %v456
      %v471 = vsel %vm465, %v452, %v454
      %v472 = vsel %vm465, %v450, %v452
      %v473 = vsel %vm465, %v464, %v450
      %474 = vst [vmem:[#allocation2 + $0x100] sm:$0xff] %v473
      %475 = vst [vmem:[#allocation2 + $0x108] sm:$0xff] %v472
      %476 = vst [vmem:[#allocation2 + $0x110] sm:$0xff] %v471
      %477 = vst [vmem:[#allocation2 + $0x118] sm:$0xff] %v470
      %478 = vst [vmem:[#allocation2 + $0x120] sm:$0xff] %v469
      %479 = vst [vmem:[#allocation2 + $0x128] sm:$0xff] %v468
      %480 = vst [vmem:[#allocation2 + $0x130] sm:$0xff] %v467
      %481 = vst [vmem:[#allocation2 + $0x138] sm:$0xff] %v466
      %482 = vrot.lane.b32.xlu0 %v306, 99
      %v483 = vpop.permute.xlu0 %482
      %484 = vrot.lane.b32.xlu0 %v307, 99
      %v485 = vpop.permute.xlu0 %484
      %486 = vrot.lane.b32.xlu0 %v308, 99
      %v487 = vpop.permute.xlu0 %486
      %488 = vrot.lane.b32.xlu0 %v309, 99
      %v489 = vpop.permute.xlu0 %488
      %490 = vrot.lane.b32.xlu0 %v310, 99
      %v491 = vpop.permute.xlu0 %490
      %492 = vrot.lane.b32.xlu0 %v311, 99
      %v493 = vpop.permute.xlu0 %492
      %494 = vrot.lane.b32.xlu0 %v312, 99
      %v495 = vpop.permute.xlu0 %494
      %496 = vrot.lane.b32.xlu0 %v313, 99
      %v497 = vpop.permute.xlu0 %496
      %vm498 = vcmp.lt.s32.totalorder %v332, 99
      %v499 = vsel %vm498, %v495, %v497
      %v500 = vsel %vm498, %v493, %v495
      %v501 = vsel %vm498, %v491, %v493
      %v502 = vsel %vm498, %v489, %v491
      %v503 = vsel %vm498, %v487, %v489
      %v504 = vsel %vm498, %v485, %v487
      %v505 = vsel %vm498, %v483, %v485
      %v506 = vsel %vm498, %v497, %v483
      %507 = vst [vmem:[#allocation2 + $0x140] sm:$0xff] %v506
      %508 = vst [vmem:[#allocation2 + $0x148] sm:$0xff] %v505
      %509 = vst [vmem:[#allocation2 + $0x150] sm:$0xff] %v504
      %510 = vst [vmem:[#allocation2 + $0x158] sm:$0xff] %v503
      %511 = vst [vmem:[#allocation2 + $0x160] sm:$0xff] %v502
      %512 = vst [vmem:[#allocation2 + $0x168] sm:$0xff] %v501
      %513 = vst [vmem:[#allocation2 + $0x170] sm:$0xff] %v500
      %514 = vst [vmem:[#allocation2 + $0x178] sm:$0xff] %v499
      %515 = vrot.lane.b32.xlu0 %v306, 91
      %v516 = vpop.permute.xlu0 %515
      %517 = vrot.lane.b32.xlu0 %v307, 91
      %v518 = vpop.permute.xlu0 %517
      %519 = vrot.lane.b32.xlu0 %v308, 91
      %v520 = vpop.permute.xlu0 %519
      %521 = vrot.lane.b32.xlu0 %v309, 91
      %v522 = vpop.permute.xlu0 %521
      %523 = vrot.lane.b32.xlu0 %v310, 91
      %v524 = vpop.permute.xlu0 %523
      %525 = vrot.lane.b32.xlu0 %v311, 91
      %v526 = vpop.permute.xlu0 %525
      %527 = vrot.lane.b32.xlu0 %v312, 91
      %v528 = vpop.permute.xlu0 %527
      %529 = vrot.lane.b32.xlu0 %v313, 91
      %v530 = vpop.permute.xlu0 %529
      %vm531 = vcmp.lt.s32.totalorder %v332, 91
      %v532 = vsel %vm531, %v528, %v530
      %v533 = vsel %vm531, %v526, %v528
      %v534 = vsel %vm531, %v524, %v526
      %v535 = vsel %vm531, %v522, %v524
      %v536 = vsel %vm531, %v520, %v522
      %v537 = vsel %vm531, %v518, %v520
      %v538 = vsel %vm531, %v516, %v518
      %v539 = vsel %vm531, %v530, %v516
      %540 = vst [vmem:[#allocation2 + $0x180] sm:$0xff] %v539
      %541 = vst [vmem:[#allocation2 + $0x188] sm:$0xff] %v538
      %542 = vst [vmem:[#allocation2 + $0x190] sm:$0xff] %v537
      %543 = vst [vmem:[#allocation2 + $0x198] sm:$0xff] %v536
      %544 = vst [vmem:[#allocation2 + $0x1a0] sm:$0xff] %v535
      %545 = vst [vmem:[#allocation2 + $0x1a8] sm:$0xff] %v534
      %546 = vst [vmem:[#allocation2 + $0x1b0] sm:$0xff] %v533
      %547 = vst [vmem:[#allocation2 + $0x1b8] sm:$0xff] %v532
      %548 = vrot.lane.b32.xlu0 %v306, 90
      %v549 = vpop.permute.xlu0 %548
      %550 = vrot.lane.b32.xlu0 %v307, 90
      %v551 = vpop.permute.xlu0 %550
      %552 = vrot.lane.b32.xlu0 %v308, 90
      %v553 = vpop.permute.xlu0 %552
      %554 = vrot.lane.b32.xlu0 %v309, 90
      %v555 = vpop.permute.xlu0 %554
      %556 = vrot.lane.b32.xlu0 %v310, 90
      %v557 = vpop.permute.xlu0 %556
      %558 = vrot.lane.b32.xlu0 %v311, 90
      %v559 = vpop.permute.xlu0 %558
      %560 = vrot.lane.b32.xlu0 %v312, 90
      %v561 = vpop.permute.xlu0 %560
      %562 = vrot.lane.b32.xlu0 %v313, 90
      %v563 = vpop.permute.xlu0 %562
      %vm564 = vcmp.lt.s32.totalorder %v332, 90
      %v565 = vsel %vm564, %v561, %v563
      %v566 = vsel %vm564, %v559, %v561
      %v567 = vsel %vm564, %v557, %v559
      %v568 = vsel %vm564, %v555, %v557
      %v569 = vsel %vm564, %v553, %v555
      %v570 = vsel %vm564, %v551, %v553
      %v571 = vsel %vm564, %v549, %v551
      %v572 = vsel %vm564, %v563, %v549
      %573 = vst [vmem:[#allocation2 + $0x1c0] sm:$0xff] %v572
      %574 = vst [vmem:[#allocation2 + $0x1c8] sm:$0xff] %v571
      %575 = vst [vmem:[#allocation2 + $0x1d0] sm:$0xff] %v570
      %576 = vst [vmem:[#allocation2 + $0x1d8] sm:$0xff] %v569
      %577 = vst [vmem:[#allocation2 + $0x1e0] sm:$0xff] %v568
      %578 = vst [vmem:[#allocation2 + $0x1e8] sm:$0xff] %v567
      %579 = vst [vmem:[#allocation2 + $0x1f0] sm:$0xff] %v566
      %580 = vst [vmem:[#allocation2 + $0x1f8] sm:$0xff] %v565
      %581 = vrot.lane.b32.xlu0 %v306, 89
      %v582 = vpop.permute.xlu0 %581
      %583 = vrot.lane.b32.xlu0 %v307, 89
      %v584 = vpop.permute.xlu0 %583
      %585 = vrot.lane.b32.xlu0 %v308, 89
      %v586 = vpop.permute.xlu0 %585
      %587 = vrot.lane.b32.xlu0 %v309, 89
      %v588 = vpop.permute.xlu0 %587
      %589 = vrot.lane.b32.xlu0 %v310, 89
      %v590 = vpop.permute.xlu0 %589
      %591 = vrot.lane.b32.xlu0 %v311, 89
      %v592 = vpop.permute.xlu0 %591
      %593 = vrot.lane.b32.xlu0 %v312, 89
      %v594 = vpop.permute.xlu0 %593
      %595 = vrot.lane.b32.xlu0 %v313, 89
      %v596 = vpop.permute.xlu0 %595
      %vm597 = vcmp.lt.s32.totalorder %v332, 89
      %v598 = vsel %vm597, %v594, %v596
      %v599 = vsel %vm597, %v592, %v594
      %v600 = vsel %vm597, %v590, %v592
      %v601 = vsel %vm597, %v588, %v590
      %v602 = vsel %vm597, %v586, %v588
      %v603 = vsel %vm597, %v584, %v586
      %v604 = vsel %vm597, %v582, %v584
      %v605 = vsel %vm597, %v596, %v582
      %606 = vst [vmem:[#allocation2 + $0x200] sm:$0xff] %v605
      %607 = vst [vmem:[#allocation2 + $0x208] sm:$0xff] %v604
      %608 = vst [vmem:[#allocation2 + $0x210] sm:$0xff] %v603
      %609 = vst [vmem:[#allocation2 + $0x218] sm:$0xff] %v602
      %610 = vst [vmem:[#allocation2 + $0x220] sm:$0xff] %v601
      %611 = vst [vmem:[#allocation2 + $0x228] sm:$0xff] %v600
      %612 = vst [vmem:[#allocation2 + $0x230] sm:$0xff] %v599
      %613 = vst [vmem:[#allocation2 + $0x238] sm:$0xff] %v598
      %614 = vrot.lane.b32.xlu0 %v306, 11
      %v615 = vpop.permute.xlu0 %614
      %616 = vrot.lane.b32.xlu0 %v307, 11
      %v617 = vpop.permute.xlu0 %616
      %618 = vrot.lane.b32.xlu0 %v308, 11
      %v619 = vpop.permute.xlu0 %618
      %620 = vrot.lane.b32.xlu0 %v309, 11
      %v621 = vpop.permute.xlu0 %620
      %622 = vrot.lane.b32.xlu0 %v310, 11
      %v623 = vpop.permute.xlu0 %622
      %624 = vrot.lane.b32.xlu0 %v311, 11
      %v625 = vpop.permute.xlu0 %624
      %626 = vrot.lane.b32.xlu0 %v312, 11
      %v627 = vpop.permute.xlu0 %626
      %628 = vrot.lane.b32.xlu0 %v313, 11
      %v629 = vpop.permute.xlu0 %628
      %vm630 = vcmp.lt.s32.totalorder %v332, 11
      %v631 = vsel %vm630, %v627, %v629
      %v632 = vsel %vm630, %v625, %v627
      %v633 = vsel %vm630, %v623, %v625
      %v634 = vsel %vm630, %v621, %v623
      %v635 = vsel %vm630, %v619, %v621
      %v636 = vsel %vm630, %v617, %v619
      %v637 = vsel %vm630, %v615, %v617
      %v638 = vsel %vm630, %v629, %v615
      %639 = vst [vmem:[#allocation2 + $0x240] sm:$0xff] %v638
      %640 = vst [vmem:[#allocation2 + $0x248] sm:$0xff] %v637
      %641 = vst [vmem:[#allocation2 + $0x250] sm:$0xff] %v636
      %642 = vst [vmem:[#allocation2 + $0x258] sm:$0xff] %v635
      %643 = vst [vmem:[#allocation2 + $0x260] sm:$0xff] %v634
      %644 = vst [vmem:[#allocation2 + $0x268] sm:$0xff] %v633
      %645 = vst [vmem:[#allocation2 + $0x270] sm:$0xff] %v632
      %646 = vst [vmem:[#allocation2 + $0x278] sm:$0xff] %v631
      %647 = vrot.lane.b32.xlu0 %v306, 10
      %v648 = vpop.permute.xlu0 %647
      %649 = vrot.lane.b32.xlu0 %v307, 10
      %v650 = vpop.permute.xlu0 %649
      %651 = vrot.lane.b32.xlu0 %v308, 10
      %v652 = vpop.permute.xlu0 %651
      %653 = vrot.lane.b32.xlu0 %v309, 10
      %v654 = vpop.permute.xlu0 %653
      %655 = vrot.lane.b32.xlu0 %v310, 10
      %v656 = vpop.permute.xlu0 %655
      %657 = vrot.lane.b32.xlu0 %v311, 10
      %v658 = vpop.permute.xlu0 %657
      %659 = vrot.lane.b32.xlu0 %v312, 10
      %v660 = vpop.permute.xlu0 %659
      %661 = vrot.lane.b32.xlu0 %v313, 10
      %v662 = vpop.permute.xlu0 %661
      %vm663 = vcmp.lt.s32.totalorder %v332, 10
      %v664 = vsel %vm663, %v660, %v662
      %v665 = vsel %vm663, %v658, %v660
      %v666 = vsel %vm663, %v656, %v658
      %v667 = vsel %vm663, %v654, %v656
      %v668 = vsel %vm663, %v652, %v654
      %v669 = vsel %vm663, %v650, %v652
      %v670 = vsel %vm663, %v648, %v650
      %v671 = vsel %vm663, %v662, %v648
      %672 = vst [vmem:[#allocation2 + $0x280] sm:$0xff] %v671
      %673 = vst [vmem:[#allocation2 + $0x288] sm:$0xff] %v670
      %674 = vst [vmem:[#allocation2 + $0x290] sm:$0xff] %v669
      %675 = vst [vmem:[#allocation2 + $0x298] sm:$0xff] %v668
      %676 = vst [vmem:[#allocation2 + $0x2a0] sm:$0xff] %v667
      %677 = vst [vmem:[#allocation2 + $0x2a8] sm:$0xff] %v666
      %678 = vst [vmem:[#allocation2 + $0x2b0] sm:$0xff] %v665
      %679 = vst [vmem:[#allocation2 + $0x2b8] sm:$0xff] %v664
      %680 = vrot.lane.b32.xlu0 %v306, 9
      %v681 = vpop.permute.xlu0 %680
      %682 = vrot.lane.b32.xlu0 %v307, 9
      %v683 = vpop.permute.xlu0 %682
      %684 = vrot.lane.b32.xlu0 %v308, 9
      %v685 = vpop.permute.xlu0 %684
      %686 = vrot.lane.b32.xlu0 %v309, 9
      %v687 = vpop.permute.xlu0 %686
      %688 = vrot.lane.b32.xlu0 %v310, 9
      %v689 = vpop.permute.xlu0 %688
      %690 = vrot.lane.b32.xlu0 %v311, 9
      %v691 = vpop.permute.xlu0 %690
      %692 = vrot.lane.b32.xlu0 %v312, 9
      %v693 = vpop.permute.xlu0 %692
      %694 = vrot.lane.b32.xlu0 %v313, 9
      %v695 = vpop.permute.xlu0 %694
      %vm696 = vcmp.lt.s32.totalorder %v332, 9
      %v697 = vsel %vm696, %v693, %v695
      %v698 = vsel %vm696, %v691, %v693
      %v699 = vsel %vm696, %v689, %v691
      %v700 = vsel %vm696, %v687, %v689
      %v701 = vsel %vm696, %v685, %v687
      %v702 = vsel %vm696, %v683, %v685
      %v703 = vsel %vm696, %v681, %v683
      %v704 = vsel %vm696, %v695, %v681
      %705 = vst [vmem:[#allocation2 + $0x2c0] sm:$0xff] %v704
      %706 = vst [vmem:[#allocation2 + $0x2c8] sm:$0xff] %v703
      %707 = vst [vmem:[#allocation2 + $0x2d0] sm:$0xff] %v702
      %708 = vst [vmem:[#allocation2 + $0x2d8] sm:$0xff] %v701
      %709 = vst [vmem:[#allocation2 + $0x2e0] sm:$0xff] %v700
      %710 = vst [vmem:[#allocation2 + $0x2e8] sm:$0xff] %v699
      %711 = vst [vmem:[#allocation2 + $0x2f0] sm:$0xff] %v698
      %712 = vst [vmem:[#allocation2 + $0x2f8] sm:$0xff] %v697
      %713 = vrot.lane.b32.xlu0 %v306, 1
      %v714 = vpop.permute.xlu0 %713
      %715 = vrot.lane.b32.xlu0 %v307, 1
      %v716 = vpop.permute.xlu0 %715
      %717 = vrot.lane.b32.xlu0 %v308, 1
      %v718 = vpop.permute.xlu0 %717
      %719 = vrot.lane.b32.xlu0 %v309, 1
      %v720 = vpop.permute.xlu0 %719
      %721 = vrot.lane.b32.xlu0 %v310, 1
      %v722 = vpop.permute.xlu0 %721
      %723 = vrot.lane.b32.xlu0 %v311, 1
      %v724 = vpop.permute.xlu0 %723
      %725 = vrot.lane.b32.xlu0 %v312, 1
      %v726 = vpop.permute.xlu0 %725
      %727 = vrot.lane.b32.xlu0 %v313, 1
      %v728 = vpop.permute.xlu0 %727
      %vm729 = vcmp.lt.s32.totalorder %v332, 1
      %v730 = vsel %vm729, %v726, %v728
      %v731 = vsel %vm729, %v724, %v726
      %v732 = vsel %vm729, %v722, %v724
      %v733 = vsel %vm729, %v720, %v722
      %v734 = vsel %vm729, %v718, %v720
      %v735 = vsel %vm729, %v716, %v718
      %v736 = vsel %vm729, %v714, %v716
      %v737 = vsel %vm729, %v728, %v714
      %738 = vst [vmem:[#allocation2 + $0x300] sm:$0xff] %v737
      %739 = vst [vmem:[#allocation2 + $0x308] sm:$0xff] %v736
      %740 = vst [vmem:[#allocation2 + $0x310] sm:$0xff] %v735
      %741 = vst [vmem:[#allocation2 + $0x318] sm:$0xff] %v734
      %742 = vst [vmem:[#allocation2 + $0x320] sm:$0xff] %v733
      %743 = vst [vmem:[#allocation2 + $0x328] sm:$0xff] %v732
      %744 = vst [vmem:[#allocation2 + $0x330] sm:$0xff] %v731
      %745 = vst [vmem:[#allocation2 + $0x338] sm:$0xff] %v730
      %746 = vst [vmem:[#allocation2 + $0x340] sm:$0xff] %v306
      %747 = vst [vmem:[#allocation2 + $0x348] sm:$0xff] %v307
      %748 = vst [vmem:[#allocation2 + $0x350] sm:$0xff] %v308
      %749 = vst [vmem:[#allocation2 + $0x358] sm:$0xff] %v309
      %750 = vst [vmem:[#allocation2 + $0x360] sm:$0xff] %v310
      %751 = vst [vmem:[#allocation2 + $0x368] sm:$0xff] %v311
      %752 = vst [vmem:[#allocation2 + $0x370] sm:$0xff] %v312
      %753 = vst [vmem:[#allocation2 + $0x378] sm:$0xff] %v313
      %754 = vrot.lane.b32.xlu0 %v306, 127
      %v755 = vpop.permute.xlu0 %754
      %756 = vrot.lane.b32.xlu0 %v307, 127
      %v757 = vpop.permute.xlu0 %756
      %758 = vrot.lane.b32.xlu0 %v308, 127
      %v759 = vpop.permute.xlu0 %758
      %760 = vrot.lane.b32.xlu0 %v309, 127
      %v761 = vpop.permute.xlu0 %760
      %762 = vrot.lane.b32.xlu0 %v310, 127
      %v763 = vpop.permute.xlu0 %762
      %764 = vrot.lane.b32.xlu0 %v311, 127
      %v765 = vpop.permute.xlu0 %764
      %766 = vrot.lane.b32.xlu0 %v312, 127
      %v767 = vpop.permute.xlu0 %766
      %768 = vrot.lane.b32.xlu0 %v313, 127
      %v769 = vpop.permute.xlu0 %768
      %vm770 = vcmp.lt.s32.totalorder %v332, 127
      %v771 = vsel %vm770, %v767, %v769
      %v772 = vsel %vm770, %v765, %v767
      %v773 = vsel %vm770, %v763, %v765
      %v774 = vsel %vm770, %v761, %v763
      %v775 = vsel %vm770, %v759, %v761
      %v776 = vsel %vm770, %v757, %v759
      %v777 = vsel %vm770, %v755, %v757
      %v778 = vsel %vm770, %v769, %v755
      %779 = vst [vmem:[#allocation2 + $0x380] sm:$0xff] %v777
      %780 = vst [vmem:[#allocation2 + $0x388] sm:$0xff] %v776
      %781 = vst [vmem:[#allocation2 + $0x390] sm:$0xff] %v775
      %782 = vst [vmem:[#allocation2 + $0x398] sm:$0xff] %v774
      %783 = vst [vmem:[#allocation2 + $0x3a0] sm:$0xff] %v773
      %784 = vst [vmem:[#allocation2 + $0x3a8] sm:$0xff] %v772
      %785 = vst [vmem:[#allocation2 + $0x3b0] sm:$0xff] %v771
      %786 = vst [vmem:[#allocation2 + $0x3b8] sm:$0xff] %v778
      %787 = vrot.lane.b32.xlu0 %v306, 119
      %v788 = vpop.permute.xlu0 %787
      %789 = vrot.lane.b32.xlu0 %v307, 119
      %v790 = vpop.permute.xlu0 %789
      %791 = vrot.lane.b32.xlu0 %v308, 119
      %v792 = vpop.permute.xlu0 %791
      %793 = vrot.lane.b32.xlu0 %v309, 119
      %v794 = vpop.permute.xlu0 %793
      %795 = vrot.lane.b32.xlu0 %v310, 119
      %v796 = vpop.permute.xlu0 %795
      %797 = vrot.lane.b32.xlu0 %v311, 119
      %v798 = vpop.permute.xlu0 %797
      %799 = vrot.lane.b32.xlu0 %v312, 119
      %v800 = vpop.permute.xlu0 %799
      %801 = vrot.lane.b32.xlu0 %v313, 119
      %v802 = vpop.permute.xlu0 %801
      %vm803 = vcmp.lt.s32.totalorder %v332, 119
      %v804 = vsel %vm803, %v800, %v802
      %v805 = vsel %vm803, %v798, %v800
      %v806 = vsel %vm803, %v796, %v798
      %v807 = vsel %vm803, %v794, %v796
      %v808 = vsel %vm803, %v792, %v794
      %v809 = vsel %vm803, %v790, %v792
      %v810 = vsel %vm803, %v788, %v790
      %v811 = vsel %vm803, %v802, %v788
      %812 = vst [vmem:[#allocation2 + $0x3c0] sm:$0xff] %v810
      %813 = vst [vmem:[#allocation2 + $0x3c8] sm:$0xff] %v809
      %814 = vst [vmem:[#allocation2 + $0x3d0] sm:$0xff] %v808
      %815 = vst [vmem:[#allocation2 + $0x3d8] sm:$0xff] %v807
      %816 = vst [vmem:[#allocation2 + $0x3e0] sm:$0xff] %v806
      %817 = vst [vmem:[#allocation2 + $0x3e8] sm:$0xff] %v805
      %818 = vst [vmem:[#allocation2 + $0x3f0] sm:$0xff] %v804
      %819 = vst [vmem:[#allocation2 + $0x3f8] sm:$0xff] %v811
      %820 = vrot.lane.b32.xlu0 %v306, 118
      %v821 = vpop.permute.xlu0 %820
      %822 = vrot.lane.b32.xlu0 %v307, 118
      %v823 = vpop.permute.xlu0 %822
      %824 = vrot.lane.b32.xlu0 %v308, 118
      %v825 = vpop.permute.xlu0 %824
      %826 = vrot.lane.b32.xlu0 %v309, 118
      %v827 = vpop.permute.xlu0 %826
      %828 = vrot.lane.b32.xlu0 %v310, 118
      %v829 = vpop.permute.xlu0 %828
      %830 = vrot.lane.b32.xlu0 %v311, 118
      %v831 = vpop.permute.xlu0 %830
      %832 = vrot.lane.b32.xlu0 %v312, 118
      %v833 = vpop.permute.xlu0 %832
      %834 = vrot.lane.b32.xlu0 %v313, 118
      %v835 = vpop.permute.xlu0 %834
      %vm836 = vcmp.lt.s32.totalorder %v332, 118
      %v837 = vsel %vm836, %v833, %v835
      %v838 = vsel %vm836, %v831, %v833
      %v839 = vsel %vm836, %v829, %v831
      %v840 = vsel %vm836, %v827, %v829
      %v841 = vsel %vm836, %v825, %v827
      %v842 = vsel %vm836, %v823, %v825
      %v843 = vsel %vm836, %v821, %v823
      %v844 = vsel %vm836, %v835, %v821
      %845 = vst [vmem:[#allocation2 + $0x400] sm:$0xff] %v843
      %846 = vst [vmem:[#allocation2 + $0x408] sm:$0xff] %v842
      %847 = vst [vmem:[#allocation2 + $0x410] sm:$0xff] %v841
      %848 = vst [vmem:[#allocation2 + $0x418] sm:$0xff] %v840
      %849 = vst [vmem:[#allocation2 + $0x420] sm:$0xff] %v839
      %850 = vst [vmem:[#allocation2 + $0x428] sm:$0xff] %v838
      %851 = vst [vmem:[#allocation2 + $0x430] sm:$0xff] %v837
      %852 = vst [vmem:[#allocation2 + $0x438] sm:$0xff] %v844
      %853 = vrot.lane.b32.xlu0 %v306, 117
      %v854 = vpop.permute.xlu0 %853
      %855 = vrot.lane.b32.xlu0 %v307, 117
      %v856 = vpop.permute.xlu0 %855
      %857 = vrot.lane.b32.xlu0 %v308, 117
      %v858 = vpop.permute.xlu0 %857
      %859 = vrot.lane.b32.xlu0 %v309, 117
      %v860 = vpop.permute.xlu0 %859
      %861 = vrot.lane.b32.xlu0 %v310, 117
      %v862 = vpop.permute.xlu0 %861
      %863 = vrot.lane.b32.xlu0 %v311, 117
      %v864 = vpop.permute.xlu0 %863
      %865 = vrot.lane.b32.xlu0 %v312, 117
      %v866 = vpop.permute.xlu0 %865
      %867 = vrot.lane.b32.xlu0 %v313, 117
      %v868 = vpop.permute.xlu0 %867
      %vm869 = vcmp.lt.s32.totalorder %v332, 117
      %v870 = vsel %vm869, %v866, %v868
      %v871 = vsel %vm869, %v864, %v866
      %v872 = vsel %vm869, %v862, %v864
      %v873 = vsel %vm869, %v860, %v862
      %v874 = vsel %vm869, %v858, %v860
      %v875 = vsel %vm869, %v856, %v858
      %v876 = vsel %vm869, %v854, %v856
      %v877 = vsel %vm869, %v868, %v854
      %878 = vst [vmem:[#allocation2 + $0x440] sm:$0xff] %v876
      %879 = vst [vmem:[#allocation2 + $0x448] sm:$0xff] %v875
      %880 = vst [vmem:[#allocation2 + $0x450] sm:$0xff] %v874
      %881 = vst [vmem:[#allocation2 + $0x458] sm:$0xff] %v873
      %882 = vst [vmem:[#allocation2 + $0x460] sm:$0xff] %v872
      %883 = vst [vmem:[#allocation2 + $0x468] sm:$0xff] %v871
      %884 = vst [vmem:[#allocation2 + $0x470] sm:$0xff] %v870
      %885 = vst [vmem:[#allocation2 + $0x478] sm:$0xff] %v877
      %886 = vrot.lane.b32.xlu0 %v306, 39
      %v887 = vpop.permute.xlu0 %886
      %888 = vrot.lane.b32.xlu0 %v307, 39
      %v889 = vpop.permute.xlu0 %888
      %890 = vrot.lane.b32.xlu0 %v308, 39
      %v891 = vpop.permute.xlu0 %890
      %892 = vrot.lane.b32.xlu0 %v309, 39
      %v893 = vpop.permute.xlu0 %892
      %894 = vrot.lane.b32.xlu0 %v310, 39
      %v895 = vpop.permute.xlu0 %894
      %896 = vrot.lane.b32.xlu0 %v311, 39
      %v897 = vpop.permute.xlu0 %896
      %898 = vrot.lane.b32.xlu0 %v312, 39
      %v899 = vpop.permute.xlu0 %898
      %900 = vrot.lane.b32.xlu0 %v313, 39
      %v901 = vpop.permute.xlu0 %900
      %vm902 = vcmp.lt.s32.totalorder %v332, 39
      %v903 = vsel %vm902, %v899, %v901
      %v904 = vsel %vm902, %v897, %v899
      %v905 = vsel %vm902, %v895, %v897
      %v906 = vsel %vm902, %v893, %v895
      %v907 = vsel %vm902, %v891, %v893
      %v908 = vsel %vm902, %v889, %v891
      %v909 = vsel %vm902, %v887, %v889
      %v910 = vsel %vm902, %v901, %v887
      %911 = vst [vmem:[#allocation2 + $0x480] sm:$0xff] %v909
      %912 = vst [vmem:[#allocation2 + $0x488] sm:$0xff] %v908
      %913 = vst [vmem:[#allocation2 + $0x490] sm:$0xff] %v907
      %914 = vst [vmem:[#allocation2 + $0x498] sm:$0xff] %v906
      %915 = vst [vmem:[#allocation2 + $0x4a0] sm:$0xff] %v905
      %916 = vst [vmem:[#allocation2 + $0x4a8] sm:$0xff] %v904
      %917 = vst [vmem:[#allocation2 + $0x4b0] sm:$0xff] %v903
      %918 = vst [vmem:[#allocation2 + $0x4b8] sm:$0xff] %v910
      %919 = vrot.lane.b32.xlu0 %v306, 38
      %v920 = vpop.permute.xlu0 %919
      %921 = vrot.lane.b32.xlu0 %v307, 38
      %v922 = vpop.permute.xlu0 %921
      %923 = vrot.lane.b32.xlu0 %v308, 38
      %v924 = vpop.permute.xlu0 %923
      %925 = vrot.lane.b32.xlu0 %v309, 38
      %v926 = vpop.permute.xlu0 %925
      %927 = vrot.lane.b32.xlu0 %v310, 38
      %v928 = vpop.permute.xlu0 %927
      %929 = vrot.lane.b32.xlu0 %v311, 38
      %v930 = vpop.permute.xlu0 %929
      %931 = vrot.lane.b32.xlu0 %v312, 38
      %v932 = vpop.permute.xlu0 %931
      %933 = vrot.lane.b32.xlu0 %v313, 38
      %v934 = vpop.permute.xlu0 %933
      %vm935 = vcmp.lt.s32.totalorder %v332, 38
      %v936 = vsel %vm935, %v932, %v934
      %v937 = vsel %vm935, %v930, %v932
      %v938 = vsel %vm935, %v928, %v930
      %v939 = vsel %vm935, %v926, %v928
      %v940 = vsel %vm935, %v924, %v926
      %v941 = vsel %vm935, %v922, %v924
      %v942 = vsel %vm935, %v920, %v922
      %v943 = vsel %vm935, %v934, %v920
      %944 = vst [vmem:[#allocation2 + $0x4c0] sm:$0xff] %v942
      %945 = vst [vmem:[#allocation2 + $0x4c8] sm:$0xff] %v941
      %946 = vst [vmem:[#allocation2 + $0x4d0] sm:$0xff] %v940
      %947 = vst [vmem:[#allocation2 + $0x4d8] sm:$0xff] %v939
      %948 = vst [vmem:[#allocation2 + $0x4e0] sm:$0xff] %v938
      %949 = vst [vmem:[#allocation2 + $0x4e8] sm:$0xff] %v937
      %950 = vst [vmem:[#allocation2 + $0x4f0] sm:$0xff] %v936
      %951 = vst [vmem:[#allocation2 + $0x4f8] sm:$0xff] %v943
      %952 = vrot.lane.b32.xlu0 %v306, 37
      %v953 = vpop.permute.xlu0 %952
      %954 = vrot.lane.b32.xlu0 %v307, 37
      %v955 = vpop.permute.xlu0 %954
      %956 = vrot.lane.b32.xlu0 %v308, 37
      %v957 = vpop.permute.xlu0 %956
      %958 = vrot.lane.b32.xlu0 %v309, 37
      %v959 = vpop.permute.xlu0 %958
      %960 = vrot.lane.b32.xlu0 %v310, 37
      %v961 = vpop.permute.xlu0 %960
      %962 = vrot.lane.b32.xlu0 %v311, 37
      %v963 = vpop.permute.xlu0 %962
      %964 = vrot.lane.b32.xlu0 %v312, 37
      %v965 = vpop.permute.xlu0 %964
      %966 = vrot.lane.b32.xlu0 %v313, 37
      %v967 = vpop.permute.xlu0 %966
      %vm968 = vcmp.lt.s32.totalorder %v332, 37
      %v969 = vsel %vm968, %v965, %v967
      %v970 = vsel %vm968, %v963, %v965
      %v971 = vsel %vm968, %v961, %v963
      %v972 = vsel %vm968, %v959, %v961
      %v973 = vsel %vm968, %v957, %v959
      %v974 = vsel %vm968, %v955, %v957
      %v975 = vsel %vm968, %v953, %v955
      %v976 = vsel %vm968, %v967, %v953
      %977 = vst [vmem:[#allocation2 + $0x500] sm:$0xff] %v975
      %978 = vst [vmem:[#allocation2 + $0x508] sm:$0xff] %v974
      %979 = vst [vmem:[#allocation2 + $0x510] sm:$0xff] %v973
      %980 = vst [vmem:[#allocation2 + $0x518] sm:$0xff] %v972
      %981 = vst [vmem:[#allocation2 + $0x520] sm:$0xff] %v971
      %982 = vst [vmem:[#allocation2 + $0x528] sm:$0xff] %v970
      %983 = vst [vmem:[#allocation2 + $0x530] sm:$0xff] %v969
      %984 = vst [vmem:[#allocation2 + $0x538] sm:$0xff] %v976
      %985 = vrot.lane.b32.xlu0 %v306, 29
      %v986 = vpop.permute.xlu0 %985
      %987 = vrot.lane.b32.xlu0 %v307, 29
      %v988 = vpop.permute.xlu0 %987
      %989 = vrot.lane.b32.xlu0 %v308, 29
      %v990 = vpop.permute.xlu0 %989
      %991 = vrot.lane.b32.xlu0 %v309, 29
      %v992 = vpop.permute.xlu0 %991
      %993 = vrot.lane.b32.xlu0 %v310, 29
      %v994 = vpop.permute.xlu0 %993
      %995 = vrot.lane.b32.xlu0 %v311, 29
      %v996 = vpop.permute.xlu0 %995
      %997 = vrot.lane.b32.xlu0 %v312, 29
      %v998 = vpop.permute.xlu0 %997
      %999 = vrot.lane.b32.xlu0 %v313, 29
      %v1000 = vpop.permute.xlu0 %999
      %vm1001 = vcmp.lt.s32.totalorder %v332, 29
      %v1002 = vsel %vm1001, %v998, %v1000
      %v1003 = vsel %vm1001, %v996, %v998
      %v1004 = vsel %vm1001, %v994, %v996
      %v1005 = vsel %vm1001, %v992, %v994
      %v1006 = vsel %vm1001, %v990, %v992
      %v1007 = vsel %vm1001, %v988, %v990
      %v1008 = vsel %vm1001, %v986, %v988
      %v1009 = vsel %vm1001, %v1000, %v986
      %1010 = vst [vmem:[#allocation2 + $0x540] sm:$0xff] %v1008
      %1011 = vst [vmem:[#allocation2 + $0x548] sm:$0xff] %v1007
      %1012 = vst [vmem:[#allocation2 + $0x550] sm:$0xff] %v1006
      %1013 = vst [vmem:[#allocation2 + $0x558] sm:$0xff] %v1005
      %1014 = vst [vmem:[#allocation2 + $0x560] sm:$0xff] %v1004
      %1015 = vst [vmem:[#allocation2 + $0x568] sm:$0xff] %v1003
      %1016 = vst [vmem:[#allocation2 + $0x570] sm:$0xff] %v1002
      %1017 = vst [vmem:[#allocation2 + $0x578] sm:$0xff] %v1009
      %1018 = vrot.lane.b32.xlu0 %v306, 28
      %v1019 = vpop.permute.xlu0 %1018
      %1020 = vrot.lane.b32.xlu0 %v307, 28
      %v1021 = vpop.permute.xlu0 %1020
      %1022 = vrot.lane.b32.xlu0 %v308, 28
      %v1023 = vpop.permute.xlu0 %1022
      %1024 = vrot.lane.b32.xlu0 %v309, 28
      %v1025 = vpop.permute.xlu0 %1024
      %1026 = vrot.lane.b32.xlu0 %v310, 28
      %v1027 = vpop.permute.xlu0 %1026
      %1028 = vrot.lane.b32.xlu0 %v311, 28
      %v1029 = vpop.permute.xlu0 %1028
      %1030 = vrot.lane.b32.xlu0 %v312, 28
      %v1031 = vpop.permute.xlu0 %1030
      %1032 = vrot.lane.b32.xlu0 %v313, 28
      %v1033 = vpop.permute.xlu0 %1032
      %vm1034 = vcmp.lt.s32.totalorder %v332, 28
      %v1035 = vsel %vm1034, %v1031, %v1033
      %v1036 = vsel %vm1034, %v1029, %v1031
      %v1037 = vsel %vm1034, %v1027, %v1029
      %v1038 = vsel %vm1034, %v1025, %v1027
      %v1039 = vsel %vm1034, %v1023, %v1025
      %v1040 = vsel %vm1034, %v1021, %v1023
      %v1041 = vsel %vm1034, %v1019, %v1021
      %v1042 = vsel %vm1034, %v1033, %v1019
      %1043 = vst [vmem:[#allocation2 + $0x580] sm:$0xff] %v1041
      %1044 = vst [vmem:[#allocation2 + $0x588] sm:$0xff] %v1040
      %1045 = vst [vmem:[#allocation2 + $0x590] sm:$0xff] %v1039
      %1046 = vst [vmem:[#allocation2 + $0x598] sm:$0xff] %v1038
      %1047 = vst [vmem:[#allocation2 + $0x5a0] sm:$0xff] %v1037
      %1048 = vst [vmem:[#allocation2 + $0x5a8] sm:$0xff] %v1036
      %1049 = vst [vmem:[#allocation2 + $0x5b0] sm:$0xff] %v1035
      %1050 = vst [vmem:[#allocation2 + $0x5b8] sm:$0xff] %v1042
      %1051 = vrot.lane.b32.xlu0 %v306, 27
      %v1052 = vpop.permute.xlu0 %1051
      %1053 = vrot.lane.b32.xlu0 %v307, 27
      %v1054 = vpop.permute.xlu0 %1053
      %1055 = vrot.lane.b32.xlu0 %v308, 27
      %v1056 = vpop.permute.xlu0 %1055
      %1057 = vrot.lane.b32.xlu0 %v309, 27
      %v1058 = vpop.permute.xlu0 %1057
      %1059 = vrot.lane.b32.xlu0 %v310, 27
      %v1060 = vpop.permute.xlu0 %1059
      %1061 = vrot.lane.b32.xlu0 %v311, 27
      %v1062 = vpop.permute.xlu0 %1061
      %1063 = vrot.lane.b32.xlu0 %v312, 27
      %v1064 = vpop.permute.xlu0 %1063
      %1065 = vrot.lane.b32.xlu0 %v313, 27
      %v1066 = vpop.permute.xlu0 %1065
      %vm1067 = vcmp.lt.s32.totalorder %v332, 27
      %v1068 = vsel %vm1067, %v1064, %v1066
      %v1069 = vsel %vm1067, %v1062, %v1064
      %v1070 = vsel %vm1067, %v1060, %v1062
      %v1071 = vsel %vm1067, %v1058, %v1060
      %v1072 = vsel %vm1067, %v1056, %v1058
      %v1073 = vsel %vm1067, %v1054, %v1056
      %v1074 = vsel %vm1067, %v1052, %v1054
      %v1075 = vsel %vm1067, %v1066, %v1052
      %1076 = vst [vmem:[#allocation2 + $0x5c0] sm:$0xff] %v1074
      %1077 = vst [vmem:[#allocation2 + $0x5c8] sm:$0xff] %v1073
      %1078 = vst [vmem:[#allocation2 + $0x5d0] sm:$0xff] %v1072
      %1079 = vst [vmem:[#allocation2 + $0x5d8] sm:$0xff] %v1071
      %1080 = vst [vmem:[#allocation2 + $0x5e0] sm:$0xff] %v1070
      %1081 = vst [vmem:[#allocation2 + $0x5e8] sm:$0xff] %v1069
      %1082 = vst [vmem:[#allocation2 + $0x5f0] sm:$0xff] %v1068
      %1083 = vst [vmem:[#allocation2 + $0x5f8] sm:$0xff] %v1075
      %1084 = vrot.lane.b32.xlu0 %v306, 19
      %v1085 = vpop.permute.xlu0 %1084
      %1086 = vrot.lane.b32.xlu0 %v307, 19
      %v1087 = vpop.permute.xlu0 %1086
      %1088 = vrot.lane.b32.xlu0 %v308, 19
      %v1089 = vpop.permute.xlu0 %1088
      %1090 = vrot.lane.b32.xlu0 %v309, 19
      %v1091 = vpop.permute.xlu0 %1090
      %1092 = vrot.lane.b32.xlu0 %v310, 19
      %v1093 = vpop.permute.xlu0 %1092
      %1094 = vrot.lane.b32.xlu0 %v311, 19
      %v1095 = vpop.permute.xlu0 %1094
      %1096 = vrot.lane.b32.xlu0 %v312, 19
      %v1097 = vpop.permute.xlu0 %1096
      %1098 = vrot.lane.b32.xlu0 %v313, 19
      %v1099 = vpop.permute.xlu0 %1098
      %vm1100 = vcmp.lt.s32.totalorder %v332, 19
      %v1101 = vsel %vm1100, %v1097, %v1099
      %v1102 = vsel %vm1100, %v1095, %v1097
      %v1103 = vsel %vm1100, %v1093, %v1095
      %v1104 = vsel %vm1100, %v1091, %v1093
      %v1105 = vsel %vm1100, %v1089, %v1091
      %v1106 = vsel %vm1100, %v1087, %v1089
      %v1107 = vsel %vm1100, %v1085, %v1087
      %v1108 = vsel %vm1100, %v1099, %v1085
      %1109 = vst [vmem:[#allocation2 + $0x600] sm:$0xff] %v1107
      %1110 = vst [vmem:[#allocation2 + $0x608] sm:$0xff] %v1106
      %1111 = vst [vmem:[#allocation2 + $0x610] sm:$0xff] %v1105
      %1112 = vst [vmem:[#allocation2 + $0x618] sm:$0xff] %v1104
      %1113 = vst [vmem:[#allocation2 + $0x620] sm:$0xff] %v1103
      %1114 = vst [vmem:[#allocation2 + $0x628] sm:$0xff] %v1102
      %1115 = vst [vmem:[#allocation2 + $0x630] sm:$0xff] %v1101
      %1116 = vst [vmem:[#allocation2 + $0x638] sm:$0xff] %v1108
      %1117 = vrot.lane.b32.xlu0 %v306, 18
      %v1118 = vpop.permute.xlu0 %1117
      %1119 = vrot.lane.b32.xlu0 %v307, 18
      %v1120 = vpop.permute.xlu0 %1119
      %1121 = vrot.lane.b32.xlu0 %v308, 18
      %v1122 = vpop.permute.xlu0 %1121
      %1123 = vrot.lane.b32.xlu0 %v309, 18
      %v1124 = vpop.permute.xlu0 %1123
      %1125 = vrot.lane.b32.xlu0 %v310, 18
      %v1126 = vpop.permute.xlu0 %1125
      %1127 = vrot.lane.b32.xlu0 %v311, 18
      %v1128 = vpop.permute.xlu0 %1127
      %1129 = vrot.lane.b32.xlu0 %v312, 18
      %v1130 = vpop.permute.xlu0 %1129
      %1131 = vrot.lane.b32.xlu0 %v313, 18
      %v1132 = vpop.permute.xlu0 %1131
      %vm1133 = vcmp.lt.s32.totalorder %v332, 18
      %v1134 = vsel %vm1133, %v1130, %v1132
      %v1135 = vsel %vm1133, %v1128, %v1130
      %v1136 = vsel %vm1133, %v1126, %v1128
      %v1137 = vsel %vm1133, %v1124, %v1126
      %v1138 = vsel %vm1133, %v1122, %v1124
      %v1139 = vsel %vm1133, %v1120, %v1122
      %v1140 = vsel %vm1133, %v1118, %v1120
      %v1141 = vsel %vm1133, %v1132, %v1118
      %1142 = vst [vmem:[#allocation2 + $0x640] sm:$0xff] %v1140
      %1143 = vst [vmem:[#allocation2 + $0x648] sm:$0xff] %v1139
      %1144 = vst [vmem:[#allocation2 + $0x650] sm:$0xff] %v1138
      %1145 = vst [vmem:[#allocation2 + $0x658] sm:$0xff] %v1137
      %1146 = vst [vmem:[#allocation2 + $0x660] sm:$0xff] %v1136
      %1147 = vst [vmem:[#allocation2 + $0x668] sm:$0xff] %v1135
      %1148 = vst [vmem:[#allocation2 + $0x670] sm:$0xff] %v1134
      %1149 = vst [vmem:[#allocation2 + $0x678] sm:$0xff] %v1141
      %1150 = vrot.lane.b32.xlu0 %v306, 17
      %v1151 = vpop.permute.xlu0 %1150
      %1152 = vrot.lane.b32.xlu0 %v307, 17
      %v1153 = vpop.permute.xlu0 %1152
      %1154 = vrot.lane.b32.xlu0 %v308, 17
      %v1155 = vpop.permute.xlu0 %1154
      %1156 = vrot.lane.b32.xlu0 %v309, 17
      %v1157 = vpop.permute.xlu0 %1156
      %1158 = vrot.lane.b32.xlu0 %v310, 17
      %v1159 = vpop.permute.xlu0 %1158
      %1160 = vrot.lane.b32.xlu0 %v311, 17
      %v1161 = vpop.permute.xlu0 %1160
      %1162 = vrot.lane.b32.xlu0 %v312, 17
      %v1163 = vpop.permute.xlu0 %1162
      %1164 = vrot.lane.b32.xlu0 %v313, 17
      %v1165 = vpop.permute.xlu0 %1164
      %vm1166 = vcmp.lt.s32.totalorder %v332, 17
      %v1167 = vsel %vm1166, %v1163, %v1165
      %v1168 = vsel %vm1166, %v1161, %v1163
      %v1169 = vsel %vm1166, %v1159, %v1161
      %v1170 = vsel %vm1166, %v1157, %v1159
      %v1171 = vsel %vm1166, %v1155, %v1157
      %v1172 = vsel %vm1166, %v1153, %v1155
      %v1173 = vsel %vm1166, %v1151, %v1153
      %v1174 = vsel %vm1166, %v1165, %v1151
      %1175 = vst [vmem:[#allocation2 + $0x680] sm:$0xff] %v1173
      %1176 = vst [vmem:[#allocation2 + $0x688] sm:$0xff] %v1172
      %1177 = vst [vmem:[#allocation2 + $0x690] sm:$0xff] %v1171
      %1178 = vst [vmem:[#allocation2 + $0x698] sm:$0xff] %v1170
      %1179 = vst [vmem:[#allocation2 + $0x6a0] sm:$0xff] %v1169
      %1180 = vst [vmem:[#allocation2 + $0x6a8] sm:$0xff] %v1168
      %1181 = vst [vmem:[#allocation2 + $0x6b0] sm:$0xff] %v1167
      %1182 = vst [vmem:[#allocation2 + $0x6b8] sm:$0xff] %v1174
      %v1183 = vld [vmem:[%s1] sm:$0xff]
      %v1184 = vld [vmem:[%s1 + $0x8] sm:$0xff]
      %v1185 = vld [vmem:[#allocation2] sm:$0xff]
      %v1186 = vld [vmem:[#allocation2 + $0x8] sm:$0xff]
      %v1187 = vld [vmem:[#allocation2 + $0x10] sm:$0xff]
      %v1188 = vld [vmem:[#allocation2 + $0x18] sm:$0xff]
      %v1189 = vld [vmem:[#allocation2 + $0x20] sm:$0xff]
      %v1190 = vld [vmem:[#allocation2 + $0x28] sm:$0xff]
      %v1191 = vld [vmem:[#allocation2 + $0x30] sm:$0xff]
      %v1192 = vld [vmem:[#allocation2 + $0x38] sm:$0xff]
      %v1193 = vld [vmem:[#allocation2 + $0x40] sm:$0xff]
      %v1194 = vld [vmem:[#allocation2 + $0x48] sm:$0xff]
      %v1195 = vld [vmem:[#allocation2 + $0x50] sm:$0xff]
      %v1196 = vld [vmem:[#allocation2 + $0x58] sm:$0xff]
      %v1197 = vld [vmem:[#allocation2 + $0x60] sm:$0xff]
      %v1198 = vld [vmem:[#allocation2 + $0x68] sm:$0xff]
      %v1199 = vld [vmem:[#allocation2 + $0x70] sm:$0xff]
      %v1200 = vld [vmem:[#allocation2 + $0x78] sm:$0xff]
      %v1201 = vld [vmem:[#allocation2 + $0x80] sm:$0xff]
      %v1202 = vld [vmem:[#allocation2 + $0x88] sm:$0xff]
      %v1203 = vld [vmem:[#allocation2 + $0x90] sm:$0xff]
      %v1204 = vld [vmem:[#allocation2 + $0x98] sm:$0xff]
      %v1205 = vld [vmem:[#allocation2 + $0xa0] sm:$0xff]
      %v1206 = vld [vmem:[#allocation2 + $0xa8] sm:$0xff]
      %v1207 = vld [vmem:[#allocation2 + $0xb0] sm:$0xff]
      %v1208 = vld [vmem:[#allocation2 + $0xb8] sm:$0xff]
      %v1209 = vld [vmem:[#allocation2 + $0xc0] sm:$0xff]
      %v1210 = vld [vmem:[#allocation2 + $0xc8] sm:$0xff]
      %v1211 = vld [vmem:[#allocation2 + $0xd0] sm:$0xff]
      %v1212 = vld [vmem:[#allocation2 + $0xd8] sm:$0xff]
      %v1213 = vld [vmem:[#allocation2 + $0xe0] sm:$0xff]
      %v1214 = vld [vmem:[#allocation2 + $0xe8] sm:$0xff]
      %v1215 = vld [vmem:[#allocation2 + $0xf0] sm:$0xff]
      %v1216 = vld [vmem:[#allocation2 + $0xf8] sm:$0xff]
      %v1217 = vld [vmem:[#allocation2 + $0x100] sm:$0xff]
      %v1218 = vld [vmem:[#allocation2 + $0x108] sm:$0xff]
      %v1219 = vld [vmem:[#allocation2 + $0x110] sm:$0xff]
      %v1220 = vld [vmem:[#allocation2 + $0x118] sm:$0xff]
      %v1221 = vld [vmem:[#allocation2 + $0x120] sm:$0xff]
      %v1222 = vld [vmem:[#allocation2 + $0x128] sm:$0xff]
      %v1223 = vld [vmem:[#allocation2 + $0x130] sm:$0xff]
      %v1224 = vld [vmem:[#allocation2 + $0x138] sm:$0xff]
      %v1225 = vld [vmem:[#allocation2 + $0x140] sm:$0xff]
      %v1226 = vld [vmem:[#allocation2 + $0x148] sm:$0xff]
      %v1227 = vld [vmem:[#allocation2 + $0x150] sm:$0xff]
      %v1228 = vld [vmem:[#allocation2 + $0x158] sm:$0xff]
      %v1229 = vld [vmem:[#allocation2 + $0x160] sm:$0xff]
      %v1230 = vld [vmem:[#allocation2 + $0x168] sm:$0xff]
      %v1231 = vld [vmem:[#allocation2 + $0x170] sm:$0xff]
      %v1232 = vld [vmem:[#allocation2 + $0x178] sm:$0xff]
      %v1233 = vld [vmem:[#allocation2 + $0x180] sm:$0xff]
      %v1234 = vld [vmem:[#allocation2 + $0x188] sm:$0xff]
      %v1235 = vld [vmem:[#allocation2 + $0x190] sm:$0xff]
      %v1236 = vld [vmem:[#allocation2 + $0x198] sm:$0xff]
      %v1237 = vld [vmem:[#allocation2 + $0x1a0] sm:$0xff]
      %v1238 = vld [vmem:[#allocation2 + $0x1a8] sm:$0xff]
      %v1239 = vld [vmem:[#allocation2 + $0x1b0] sm:$0xff]
      %v1240 = vld [vmem:[#allocation2 + $0x1b8] sm:$0xff]
      %v1241 = vld [vmem:[#allocation2 + $0x1c0] sm:$0xff]
      %v1242 = vld [vmem:[#allocation2 + $0x1c8] sm:$0xff]
      %v1243 = vld [vmem:[#allocation2 + $0x1d0] sm:$0xff]
      %v1244 = vld [vmem:[#allocation2 + $0x1d8] sm:$0xff]
      %v1245 = vld [vmem:[#allocation2 + $0x1e0] sm:$0xff]
      %v1246 = vld [vmem:[#allocation2 + $0x1e8] sm:$0xff]
      %v1247 = vld [vmem:[#allocation2 + $0x1f0] sm:$0xff]
      %v1248 = vld [vmem:[#allocation2 + $0x1f8] sm:$0xff]
      %v1249 = vld [vmem:[#allocation2 + $0x200] sm:$0xff]
      %v1250 = vld [vmem:[#allocation2 + $0x208] sm:$0xff]
      %v1251 = vld [vmem:[#allocation2 + $0x210] sm:$0xff]
      %v1252 = vld [vmem:[#allocation2 + $0x218] sm:$0xff]
      %v1253 = vld [vmem:[#allocation2 + $0x220] sm:$0xff]
      %v1254 = vld [vmem:[#allocation2 + $0x228] sm:$0xff]
      %v1255 = vld [vmem:[#allocation2 + $0x230] sm:$0xff]
      %v1256 = vld [vmem:[#allocation2 + $0x238] sm:$0xff]
      %v1257 = vld [vmem:[#allocation2 + $0x240] sm:$0xff]
      %v1258 = vld [vmem:[#allocation2 + $0x248] sm:$0xff]
      %v1259 = vld [vmem:[#allocation2 + $0x250] sm:$0xff]
      %v1260 = vld [vmem:[#allocation2 + $0x258] sm:$0xff]
      %v1261 = vld [vmem:[#allocation2 + $0x260] sm:$0xff]
      %v1262 = vld [vmem:[#allocation2 + $0x268] sm:$0xff]
      %v1263 = vld [vmem:[#allocation2 + $0x270] sm:$0xff]
      %v1264 = vld [vmem:[#allocation2 + $0x278] sm:$0xff]
      %v1265 = vld [vmem:[#allocation2 + $0x280] sm:$0xff]
      %v1266 = vld [vmem:[#allocation2 + $0x288] sm:$0xff]
      %v1267 = vld [vmem:[#allocation2 + $0x290] sm:$0xff]
      %v1268 = vld [vmem:[#allocation2 + $0x298] sm:$0xff]
      %v1269 = vld [vmem:[#allocation2 + $0x2a0] sm:$0xff]
      %v1270 = vld [vmem:[#allocation2 + $0x2a8] sm:$0xff]
      %v1271 = vld [vmem:[#allocation2 + $0x2b0] sm:$0xff]
      %v1272 = vld [vmem:[#allocation2 + $0x2b8] sm:$0xff]
      %v1273 = vld [vmem:[#allocation2 + $0x2c0] sm:$0xff]
      %v1274 = vld [vmem:[#allocation2 + $0x2c8] sm:$0xff]
      %v1275 = vld [vmem:[#allocation2 + $0x2d0] sm:$0xff]
      %v1276 = vld [vmem:[#allocation2 + $0x2d8] sm:$0xff]
      %v1277 = vld [vmem:[#allocation2 + $0x2e0] sm:$0xff]
      %v1278 = vld [vmem:[#allocation2 + $0x2e8] sm:$0xff]
      %v1279 = vld [vmem:[#allocation2 + $0x2f0] sm:$0xff]
      %v1280 = vld [vmem:[#allocation2 + $0x2f8] sm:$0xff]
      %v1281 = vld [vmem:[#allocation2 + $0x300] sm:$0xff]
      %v1282 = vld [vmem:[#allocation2 + $0x308] sm:$0xff]
      %v1283 = vld [vmem:[#allocation2 + $0x310] sm:$0xff]
      %v1284 = vld [vmem:[#allocation2 + $0x318] sm:$0xff]
      %v1285 = vld [vmem:[#allocation2 + $0x320] sm:$0xff]
      %v1286 = vld [vmem:[#allocation2 + $0x328] sm:$0xff]
      %v1287 = vld [vmem:[#allocation2 + $0x330] sm:$0xff]
      %v1288 = vld [vmem:[#allocation2 + $0x338] sm:$0xff]
      %v1289 = vld [vmem:[#allocation2 + $0x340] sm:$0xff]
      %v1290 = vld [vmem:[#allocation2 + $0x348] sm:$0xff]
      %v1291 = vld [vmem:[#allocation2 + $0x350] sm:$0xff]
      %v1292 = vld [vmem:[#allocation2 + $0x358] sm:$0xff]
      %v1293 = vld [vmem:[#allocation2 + $0x360] sm:$0xff]
      %v1294 = vld [vmem:[#allocation2 + $0x368] sm:$0xff]
      %v1295 = vld [vmem:[#allocation2 + $0x370] sm:$0xff]
      %v1296 = vld [vmem:[#allocation2 + $0x378] sm:$0xff]
      %v1297 = vld [vmem:[#allocation2 + $0x380] sm:$0xff]
      %v1298 = vld [vmem:[#allocation2 + $0x388] sm:$0xff]
      %v1299 = vld [vmem:[#allocation2 + $0x390] sm:$0xff]
      %v1300 = vld [vmem:[#allocation2 + $0x398] sm:$0xff]
      %v1301 = vld [vmem:[#allocation2 + $0x3a0] sm:$0xff]
      %v1302 = vld [vmem:[#allocation2 + $0x3a8] sm:$0xff]
      %v1303 = vld [vmem:[#allocation2 + $0x3b0] sm:$0xff]
      %v1304 = vld [vmem:[#allocation2 + $0x3b8] sm:$0xff]
      %v1305 = vld [vmem:[#allocation2 + $0x3c0] sm:$0xff]
      %v1306 = vld [vmem:[#allocation2 + $0x3c8] sm:$0xff]
      %v1307 = vld [vmem:[#allocation2 + $0x3d0] sm:$0xff]
      %v1308 = vld [vmem:[#allocation2 + $0x3d8] sm:$0xff]
      %v1309 = vld [vmem:[#allocation2 + $0x3e0] sm:$0xff]
      %v1310 = vld [vmem:[#allocation2 + $0x3e8] sm:$0xff]
      %v1311 = vld [vmem:[#allocation2 + $0x3f0] sm:$0xff]
      %v1312 = vld [vmem:[#allocation2 + $0x3f8] sm:$0xff]
      %v1313 = vld [vmem:[#allocation2 + $0x400] sm:$0xff]
      %v1314 = vld [vmem:[#allocation2 + $0x408] sm:$0xff]
      %v1315 = vld [vmem:[#allocation2 + $0x410] sm:$0xff]
      %v1316 = vld [vmem:[#allocation2 + $0x418] sm:$0xff]
      %v1317 = vld [vmem:[#allocation2 + $0x420] sm:$0xff]
      %v1318 = vld [vmem:[#allocation2 + $0x428] sm:$0xff]
      %v1319 = vld [vmem:[#allocation2 + $0x430] sm:$0xff]
      %v1320 = vld [vmem:[#allocation2 + $0x438] sm:$0xff]
      %v1321 = vld [vmem:[#allocation2 + $0x440] sm:$0xff]
      %v1322 = vld [vmem:[#allocation2 + $0x448] sm:$0xff]
      %v1323 = vld [vmem:[#allocation2 + $0x450] sm:$0xff]
      %v1324 = vld [vmem:[#allocation2 + $0x458] sm:$0xff]
      %v1325 = vld [vmem:[#allocation2 + $0x460] sm:$0xff]
      %v1326 = vld [vmem:[#allocation2 + $0x468] sm:$0xff]
      %v1327 = vld [vmem:[#allocation2 + $0x470] sm:$0xff]
      %v1328 = vld [vmem:[#allocation2 + $0x478] sm:$0xff]
      %v1329 = vld [vmem:[#allocation2 + $0x480] sm:$0xff]
      %v1330 = vld [vmem:[#allocation2 + $0x488] sm:$0xff]
      %v1331 = vld [vmem:[#allocation2 + $0x490] sm:$0xff]
      %v1332 = vld [vmem:[#allocation2 + $0x498] sm:$0xff]
      %v1333 = vld [vmem:[#allocation2 + $0x4a0] sm:$0xff]
      %v1334 = vld [vmem:[#allocation2 + $0x4a8] sm:$0xff]
      %v1335 = vld [vmem:[#allocation2 + $0x4b0] sm:$0xff]
      %v1336 = vld [vmem:[#allocation2 + $0x4b8] sm:$0xff]
      %v1337 = vld [vmem:[#allocation2 + $0x4c0] sm:$0xff]
      %v1338 = vld [vmem:[#allocation2 + $0x4c8] sm:$0xff]
      %v1339 = vld [vmem:[#allocation2 + $0x4d0] sm:$0xff]
      %v1340 = vld [vmem:[#allocation2 + $0x4d8] sm:$0xff]
      %v1341 = vld [vmem:[#allocation2 + $0x4e0] sm:$0xff]
      %v1342 = vld [vmem:[#allocation2 + $0x4e8] sm:$0xff]
      %v1343 = vld [vmem:[#allocation2 + $0x4f0] sm:$0xff]
      %v1344 = vld [vmem:[#allocation2 + $0x4f8] sm:$0xff]
      %v1345 = vld [vmem:[#allocation2 + $0x500] sm:$0xff]
      %v1346 = vld [vmem:[#allocation2 + $0x508] sm:$0xff]
      %v1347 = vld [vmem:[#allocation2 + $0x510] sm:$0xff]
      %v1348 = vld [vmem:[#allocation2 + $0x518] sm:$0xff]
      %v1349 = vld [vmem:[#allocation2 + $0x520] sm:$0xff]
      %v1350 = vld [vmem:[#allocation2 + $0x528] sm:$0xff]
      %v1351 = vld [vmem:[#allocation2 + $0x530] sm:$0xff]
      %v1352 = vld [vmem:[#allocation2 + $0x538] sm:$0xff]
      %v1353 = vld [vmem:[#allocation2 + $0x540] sm:$0xff]
      %v1354 = vld [vmem:[#allocation2 + $0x548] sm:$0xff]
      %v1355 = vld [vmem:[#allocation2 + $0x550] sm:$0xff]
      %v1356 = vld [vmem:[#allocation2 + $0x558] sm:$0xff]
      %v1357 = vld [vmem:[#allocation2 + $0x560] sm:$0xff]
      %v1358 = vld [vmem:[#allocation2 + $0x568] sm:$0xff]
      %v1359 = vld [vmem:[#allocation2 + $0x570] sm:$0xff]
      %v1360 = vld [vmem:[#allocation2 + $0x578] sm:$0xff]
      %v1361 = vld [vmem:[#allocation2 + $0x580] sm:$0xff]
      %v1362 = vld [vmem:[#allocation2 + $0x588] sm:$0xff]
      %v1363 = vld [vmem:[#allocation2 + $0x590] sm:$0xff]
      %v1364 = vld [vmem:[#allocation2 + $0x598] sm:$0xff]
      %v1365 = vld [vmem:[#allocation2 + $0x5a0] sm:$0xff]
      %v1366 = vld [vmem:[#allocation2 + $0x5a8] sm:$0xff]
      %v1367 = vld [vmem:[#allocation2 + $0x5b0] sm:$0xff]
      %v1368 = vld [vmem:[#allocation2 + $0x5b8] sm:$0xff]
      %v1369 = vld [vmem:[#allocation2 + $0x5c0] sm:$0xff]
      %v1370 = vld [vmem:[#allocation2 + $0x5c8] sm:$0xff]
      %v1371 = vld [vmem:[#allocation2 + $0x5d0] sm:$0xff]
      %v1372 = vld [vmem:[#allocation2 + $0x5d8] sm:$0xff]
      %v1373 = vld [vmem:[#allocation2 + $0x5e0] sm:$0xff]
      %v1374 = vld [vmem:[#allocation2 + $0x5e8] sm:$0xff]
      %v1375 = vld [vmem:[#allocation2 + $0x5f0] sm:$0xff]
      %v1376 = vld [vmem:[#allocation2 + $0x5f8] sm:$0xff]
      %v1377 = vld [vmem:[#allocation2 + $0x600] sm:$0xff]
      %v1378 = vld [vmem:[#allocation2 + $0x608] sm:$0xff]
      %v1379 = vld [vmem:[#allocation2 + $0x610] sm:$0xff]
      %v1380 = vld [vmem:[#allocation2 + $0x618] sm:$0xff]
      %v1381 = vld [vmem:[#allocation2 + $0x620] sm:$0xff]
      %v1382 = vld [vmem:[#allocation2 + $0x628] sm:$0xff]
      %v1383 = vld [vmem:[#allocation2 + $0x630] sm:$0xff]
      %v1384 = vld [vmem:[#allocation2 + $0x638] sm:$0xff]
      %v1385 = vld [vmem:[#allocation2 + $0x640] sm:$0xff]
      %v1386 = vld [vmem:[#allocation2 + $0x648] sm:$0xff]
      %v1387 = vld [vmem:[#allocation2 + $0x650] sm:$0xff]
      %v1388 = vld [vmem:[#allocation2 + $0x658] sm:$0xff]
      %v1389 = vld [vmem:[#allocation2 + $0x660] sm:$0xff]
      %v1390 = vld [vmem:[#allocation2 + $0x668] sm:$0xff]
      %v1391 = vld [vmem:[#allocation2 + $0x670] sm:$0xff]
      %v1392 = vld [vmem:[#allocation2 + $0x678] sm:$0xff]
      %v1393 = vld [vmem:[#allocation2 + $0x680] sm:$0xff]
      %v1394 = vld [vmem:[#allocation2 + $0x688] sm:$0xff]
      %v1395 = vld [vmem:[#allocation2 + $0x690] sm:$0xff]
      %v1396 = vld [vmem:[#allocation2 + $0x698] sm:$0xff]
      %v1397 = vld [vmem:[#allocation2 + $0x6a0] sm:$0xff]
      %v1398 = vld [vmem:[#allocation2 + $0x6a8] sm:$0xff]
      %v1399 = vld [vmem:[#allocation2 + $0x6b0] sm:$0xff]
      %v1400 = vld [vmem:[#allocation2 + $0x6b8] sm:$0xff]
      %vm1401 = vcmask 719872
      %v1403 = vsel %vm1401, %v1184, 0
      %1405 = vmatpush.msra.mxu0 %v1305
      %1406 = vmatpush.msra.mxu0 %v1297
      %1407 = vmatpush.msra.mxu0 %v1289
      %1408 = vmatpush.msra.mxu0 %v1281
      %1409 = vmatpush.msra.mxu0 %v1273
      %1410 = vmatpush.msra.mxu0 %v1265
      %1411 = vmatpush.msra.mxu0 %v1257
      %1412 = vmatpush.msra.mxu0 %v1249
      %1413 = vmatpush.msra.mxu0 %v1241
      %1414 = vmatpush.msra.mxu0 %v1233
      %1415 = vmatpush.msra.mxu0 %v1225
      %1416 = vmatpush.msra.mxu0 %v1217
      %1417 = vmatpush.msra.mxu0 %v1209
      %1418 = vmatpush.msra.mxu0 %v1201
      %1419 = vmatpush.msra.mxu0 %v1193
      %1420 = vmatpush.msra.mxu0 %v1185
      %1421 = vmatmul.f32.gmra.mxu0 %v1183
      %v1422 = vpop.f32.mrf.mxu0
      %v1423 = vadd.f32 0.0, %v1422
      %1424 = vdwg.mxu0
      %1425 = vmatpush.msra.mxu0 0.0
      %1426 = vmatpush.msra.mxu0 0.0
      %1427 = vmatpush.msra.mxu0 0.0
      %1428 = vmatpush.msra.mxu0 0.0
      %1429 = vmatpush.msra.mxu0 0.0
      %1430 = vmatpush.msra.mxu0 %v1393
      %1431 = vmatpush.msra.mxu0 %v1385
      %1432 = vmatpush.msra.mxu0 %v1377
      %1433 = vmatpush.msra.mxu0 %v1369
      %1434 = vmatpush.msra.mxu0 %v1361
      %1435 = vmatpush.msra.mxu0 %v1353
      %1436 = vmatpush.msra.mxu0 %v1345
      %1437 = vmatpush.msra.mxu0 %v1337
      %1438 = vmatpush.msra.mxu0 %v1329
      %1439 = vmatpush.msra.mxu0 %v1321
      %1440 = vmatpush.msra.mxu0 %v1313
      %1441 = vmatmul.f32.gmra.mxu0 %v1403
      %v1442 = vpop.f32.mrf.mxu0
      %v1443 = vadd.f32 %v1423, %v1442
      %1444 = vdwg.mxu0
      %1445 = vmatpush.msra.mxu0 %v1306
      %1446 = vmatpush.msra.mxu0 %v1298
      %1447 = vmatpush.msra.mxu0 %v1290
      %1448 = vmatpush.msra.mxu0 %v1282
      %1449 = vmatpush.msra.mxu0 %v1274
      %1450 = vmatpush.msra.mxu0 %v1266
      %1451 = vmatpush.msra.mxu0 %v1258
      %1452 = vmatpush.msra.mxu0 %v1250
      %1453 = vmatpush.msra.mxu0 %v1242
      %1454 = vmatpush.msra.mxu0 %v1234
      %1455 = vmatpush.msra.mxu0 %v1226
      %1456 = vmatpush.msra.mxu0 %v1218
      %1457 = vmatpush.msra.mxu0 %v1210
      %1458 = vmatpush.msra.mxu0 %v1202
      %1459 = vmatpush.msra.mxu0 %v1194
      %1460 = vmatpush.msra.mxu0 %v1186
      %1461 = vmatmul.f32.gmra.mxu0 %v1183
      %v1462 = vpop.f32.mrf.mxu0
      %v1463 = vadd.f32 0.0, %v1462
      %1464 = vdwg.mxu0
      %1465 = vmatpush.msra.mxu0 0.0
      %1466 = vmatpush.msra.mxu0 0.0
      %1467 = vmatpush.msra.mxu0 0.0
      %1468 = vmatpush.msra.mxu0 0.0
      %1469 = vmatpush.msra.mxu0 0.0
      %1470 = vmatpush.msra.mxu0 %v1394
      %1471 = vmatpush.msra.mxu0 %v1386
      %1472 = vmatpush.msra.mxu0 %v1378
      %1473 = vmatpush.msra.mxu0 %v1370
      %1474 = vmatpush.msra.mxu0 %v1362
      %1475 = vmatpush.msra.mxu0 %v1354
      %1476 = vmatpush.msra.mxu0 %v1346
      %1477 = vmatpush.msra.mxu0 %v1338
      %1478 = vmatpush.msra.mxu0 %v1330
      %1479 = vmatpush.msra.mxu0 %v1322
      %1480 = vmatpush.msra.mxu0 %v1314
      %1481 = vmatmul.f32.gmra.mxu0 %v1403
      %v1482 = vpop.f32.mrf.mxu0
      %v1483 = vadd.f32 %v1463, %v1482
      %1484 = vdwg.mxu0
      %1485 = vmatpush.msra.mxu0 %v1307
      %1486 = vmatpush.msra.mxu0 %v1299
      %1487 = vmatpush.msra.mxu0 %v1291
      %1488 = vmatpush.msra.mxu0 %v1283
      %1489 = vmatpush.msra.mxu0 %v1275
      %1490 = vmatpush.msra.mxu0 %v1267
      %1491 = vmatpush.msra.mxu0 %v1259
      %1492 = vmatpush.msra.mxu0 %v1251
      %1493 = vmatpush.msra.mxu0 %v1243
      %1494 = vmatpush.msra.mxu0 %v1235
      %1495 = vmatpush.msra.mxu0 %v1227
      %1496 = vmatpush.msra.mxu0 %v1219
      %1497 = vmatpush.msra.mxu0 %v1211
      %1498 = vmatpush.msra.mxu0 %v1203
      %1499 = vmatpush.msra.mxu0 %v1195
      %1500 = vmatpush.msra.mxu0 %v1187
      %1501 = vmatmul.f32.gmra.mxu0 %v1183
      %v1502 = vpop.f32.mrf.mxu0
      %v1503 = vadd.f32 0.0, %v1502
      %1504 = vdwg.mxu0
      %1505 = vmatpush.msra.mxu0 0.0
      %1506 = vmatpush.msra.mxu0 0.0
      %1507 = vmatpush.msra.mxu0 0.0
      %1508 = vmatpush.msra.mxu0 0.0
      %1509 = vmatpush.msra.mxu0 0.0
      %1510 = vmatpush.msra.mxu0 %v1395
      %1511 = vmatpush.msra.mxu0 %v1387
      %1512 = vmatpush.msra.mxu0 %v1379
      %1513 = vmatpush.msra.mxu0 %v1371
      %1514 = vmatpush.msra.mxu0 %v1363
      %1515 = vmatpush.msra.mxu0 %v1355
      %1516 = vmatpush.msra.mxu0 %v1347
      %1517 = vmatpush.msra.mxu0 %v1339
      %1518 = vmatpush.msra.mxu0 %v1331
      %1519 = vmatpush.msra.mxu0 %v1323
      %1520 = vmatpush.msra.mxu0 %v1315
      %1521 = vmatmul.f32.gmra.mxu0 %v1403
      %v1522 = vpop.f32.mrf.mxu0
      %v1523 = vadd.f32 %v1503, %v1522
      %1524 = vdwg.mxu0
      %1525 = vmatpush.msra.mxu0 %v1308
      %1526 = vmatpush.msra.mxu0 %v1300
      %1527 = vmatpush.msra.mxu0 %v1292
      %1528 = vmatpush.msra.mxu0 %v1284
      %1529 = vmatpush.msra.mxu0 %v1276
      %1530 = vmatpush.msra.mxu0 %v1268
      %1531 = vmatpush.msra.mxu0 %v1260
      %1532 = vmatpush.msra.mxu0 %v1252
      %1533 = vmatpush.msra.mxu0 %v1244
      %1534 = vmatpush.msra.mxu0 %v1236
      %1535 = vmatpush.msra.mxu0 %v1228
      %1536 = vmatpush.msra.mxu0 %v1220
      %1537 = vmatpush.msra.mxu0 %v1212
      %1538 = vmatpush.msra.mxu0 %v1204
      %1539 = vmatpush.msra.mxu0 %v1196
      %1540 = vmatpush.msra.mxu0 %v1188
      %1541 = vmatmul.f32.gmra.mxu0 %v1183
      %v1542 = vpop.f32.mrf.mxu0
      %v1543 = vadd.f32 0.0, %v1542
      %1544 = vdwg.mxu0
      %1545 = vmatpush.msra.mxu0 0.0
      %1546 = vmatpush.msra.mxu0 0.0
      %1547 = vmatpush.msra.mxu0 0.0
      %1548 = vmatpush.msra.mxu0 0.0
      %1549 = vmatpush.msra.mxu0 0.0
      %1550 = vmatpush.msra.mxu0 %v1396
      %1551 = vmatpush.msra.mxu0 %v1388
      %1552 = vmatpush.msra.mxu0 %v1380
      %1553 = vmatpush.msra.mxu0 %v1372
      %1554 = vmatpush.msra.mxu0 %v1364
      %1555 = vmatpush.msra.mxu0 %v1356
      %1556 = vmatpush.msra.mxu0 %v1348
      %1557 = vmatpush.msra.mxu0 %v1340
      %1558 = vmatpush.msra.mxu0 %v1332
      %1559 = vmatpush.msra.mxu0 %v1324
      %1560 = vmatpush.msra.mxu0 %v1316
      %1561 = vmatmul.f32.gmra.mxu0 %v1403
      %v1562 = vpop.f32.mrf.mxu0
      %v1563 = vadd.f32 %v1543, %v1562
      %1564 = vdwg.mxu0
      %1565 = vmatpush.msra.mxu0 %v1309
      %1566 = vmatpush.msra.mxu0 %v1301
      %1567 = vmatpush.msra.mxu0 %v1293
      %1568 = vmatpush.msra.mxu0 %v1285
      %1569 = vmatpush.msra.mxu0 %v1277
      %1570 = vmatpush.msra.mxu0 %v1269
      %1571 = vmatpush.msra.mxu0 %v1261
      %1572 = vmatpush.msra.mxu0 %v1253
      %1573 = vmatpush.msra.mxu0 %v1245
      %1574 = vmatpush.msra.mxu0 %v1237
      %1575 = vmatpush.msra.mxu0 %v1229
      %1576 = vmatpush.msra.mxu0 %v1221
      %1577 = vmatpush.msra.mxu0 %v1213
      %1578 = vmatpush.msra.mxu0 %v1205
      %1579 = vmatpush.msra.mxu0 %v1197
      %1580 = vmatpush.msra.mxu0 %v1189
      %1581 = vmatmul.f32.gmra.mxu0 %v1183
      %v1582 = vpop.f32.mrf.mxu0
      %v1583 = vadd.f32 0.0, %v1582
      %1584 = vdwg.mxu0
      %1585 = vmatpush.msra.mxu0 0.0
      %1586 = vmatpush.msra.mxu0 0.0
      %1587 = vmatpush.msra.mxu0 0.0
      %1588 = vmatpush.msra.mxu0 0.0
      %1589 = vmatpush.msra.mxu0 0.0
      %1590 = vmatpush.msra.mxu0 %v1397
      %1591 = vmatpush.msra.mxu0 %v1389
      %1592 = vmatpush.msra.mxu0 %v1381
      %1593 = vmatpush.msra.mxu0 %v1373
      %1594 = vmatpush.msra.mxu0 %v1365
      %1595 = vmatpush.msra.mxu0 %v1357
      %1596 = vmatpush.msra.mxu0 %v1349
      %1597 = vmatpush.msra.mxu0 %v1341
      %1598 = vmatpush.msra.mxu0 %v1333
      %1599 = vmatpush.msra.mxu0 %v1325
      %1600 = vmatpush.msra.mxu0 %v1317
      %1601 = vmatmul.f32.gmra.mxu0 %v1403
      %v1602 = vpop.f32.mrf.mxu0
      %v1603 = vadd.f32 %v1583, %v1602
      %1604 = vdwg.mxu0
      %1605 = vmatpush.msra.mxu0 %v1310
      %1606 = vmatpush.msra.mxu0 %v1302
      %1607 = vmatpush.msra.mxu0 %v1294
      %1608 = vmatpush.msra.mxu0 %v1286
      %1609 = vmatpush.msra.mxu0 %v1278
      %1610 = vmatpush.msra.mxu0 %v1270
      %1611 = vmatpush.msra.mxu0 %v1262
      %1612 = vmatpush.msra.mxu0 %v1254
      %1613 = vmatpush.msra.mxu0 %v1246
      %1614 = vmatpush.msra.mxu0 %v1238
      %1615 = vmatpush.msra.mxu0 %v1230
      %1616 = vmatpush.msra.mxu0 %v1222
      %1617 = vmatpush.msra.mxu0 %v1214
      %1618 = vmatpush.msra.mxu0 %v1206
      %1619 = vmatpush.msra.mxu0 %v1198
      %1620 = vmatpush.msra.mxu0 %v1190
      %1621 = vmatmul.f32.gmra.mxu0 %v1183
      %v1622 = vpop.f32.mrf.mxu0
      %v1623 = vadd.f32 0.0, %v1622
      %1624 = vdwg.mxu0
      %1625 = vmatpush.msra.mxu0 0.0
      %1626 = vmatpush.msra.mxu0 0.0
      %1627 = vmatpush.msra.mxu0 0.0
      %1628 = vmatpush.msra.mxu0 0.0
      %1629 = vmatpush.msra.mxu0 0.0
      %1630 = vmatpush.msra.mxu0 %v1398
      %1631 = vmatpush.msra.mxu0 %v1390
      %1632 = vmatpush.msra.mxu0 %v1382
      %1633 = vmatpush.msra.mxu0 %v1374
      %1634 = vmatpush.msra.mxu0 %v1366
      %1635 = vmatpush.msra.mxu0 %v1358
      %1636 = vmatpush.msra.mxu0 %v1350
      %1637 = vmatpush.msra.mxu0 %v1342
      %1638 = vmatpush.msra.mxu0 %v1334
      %1639 = vmatpush.msra.mxu0 %v1326
      %1640 = vmatpush.msra.mxu0 %v1318
      %1641 = vmatmul.f32.gmra.mxu0 %v1403
      %v1642 = vpop.f32.mrf.mxu0
      %v1643 = vadd.f32 %v1623, %v1642
      %1644 = vdwg.mxu0
      %1645 = vmatpush.msra.mxu0 %v1311
      %1646 = vmatpush.msra.mxu0 %v1303
      %1647 = vmatpush.msra.mxu0 %v1295
      %1648 = vmatpush.msra.mxu0 %v1287
      %1649 = vmatpush.msra.mxu0 %v1279
      %1650 = vmatpush.msra.mxu0 %v1271
      %1651 = vmatpush.msra.mxu0 %v1263
      %1652 = vmatpush.msra.mxu0 %v1255
      %1653 = vmatpush.msra.mxu0 %v1247
      %1654 = vmatpush.msra.mxu0 %v1239
      %1655 = vmatpush.msra.mxu0 %v1231
      %1656 = vmatpush.msra.mxu0 %v1223
      %1657 = vmatpush.msra.mxu0 %v1215
      %1658 = vmatpush.msra.mxu0 %v1207
      %1659 = vmatpush.msra.mxu0 %v1199
      %1660 = vmatpush.msra.mxu0 %v1191
      %1661 = vmatmul.f32.gmra.mxu0 %v1183
      %v1662 = vpop.f32.mrf.mxu0
      %v1663 = vadd.f32 0.0, %v1662
      %1664 = vdwg.mxu0
      %1665 = vmatpush.msra.mxu0 0.0
      %1666 = vmatpush.msra.mxu0 0.0
      %1667 = vmatpush.msra.mxu0 0.0
      %1668 = vmatpush.msra.mxu0 0.0
      %1669 = vmatpush.msra.mxu0 0.0
      %1670 = vmatpush.msra.mxu0 %v1399
      %1671 = vmatpush.msra.mxu0 %v1391
      %1672 = vmatpush.msra.mxu0 %v1383
      %1673 = vmatpush.msra.mxu0 %v1375
      %1674 = vmatpush.msra.mxu0 %v1367
      %1675 = vmatpush.msra.mxu0 %v1359
      %1676 = vmatpush.msra.mxu0 %v1351
      %1677 = vmatpush.msra.mxu0 %v1343
      %1678 = vmatpush.msra.mxu0 %v1335
      %1679 = vmatpush.msra.mxu0 %v1327
      %1680 = vmatpush.msra.mxu0 %v1319
      %1681 = vmatmul.f32.gmra.mxu0 %v1403
      %v1682 = vpop.f32.mrf.mxu0
      %v1683 = vadd.f32 %v1663, %v1682
      %1684 = vdwg.mxu0
      %1685 = vmatpush.msra.mxu0 %v1312
      %1686 = vmatpush.msra.mxu0 %v1304
      %1687 = vmatpush.msra.mxu0 %v1296
      %1688 = vmatpush.msra.mxu0 %v1288
      %1689 = vmatpush.msra.mxu0 %v1280
      %1690 = vmatpush.msra.mxu0 %v1272
      %1691 = vmatpush.msra.mxu0 %v1264
      %1692 = vmatpush.msra.mxu0 %v1256
      %1693 = vmatpush.msra.mxu0 %v1248
      %1694 = vmatpush.msra.mxu0 %v1240
      %1695 = vmatpush.msra.mxu0 %v1232
      %1696 = vmatpush.msra.mxu0 %v1224
      %1697 = vmatpush.msra.mxu0 %v1216
      %1698 = vmatpush.msra.mxu0 %v1208
      %1699 = vmatpush.msra.mxu0 %v1200
      %1700 = vmatpush.msra.mxu0 %v1192
      %1701 = vmatmul.f32.gmra.mxu0 %v1183
      %v1702 = vpop.f32.mrf.mxu0
      %v1703 = vadd.f32 0.0, %v1702
      %1704 = vdwg.mxu0
      %1705 = vmatpush.msra.mxu0 0.0
      %1706 = vmatpush.msra.mxu0 0.0
      %1707 = vmatpush.msra.mxu0 0.0
      %1708 = vmatpush.msra.mxu0 0.0
      %1709 = vmatpush.msra.mxu0 0.0
      %1710 = vmatpush.msra.mxu0 %v1400
      %1711 = vmatpush.msra.mxu0 %v1392
      %1712 = vmatpush.msra.mxu0 %v1384
      %1713 = vmatpush.msra.mxu0 %v1376
      %1714 = vmatpush.msra.mxu0 %v1368
      %1715 = vmatpush.msra.mxu0 %v1360
      %1716 = vmatpush.msra.mxu0 %v1352
      %1717 = vmatpush.msra.mxu0 %v1344
      %1718 = vmatpush.msra.mxu0 %v1336
      %1719 = vmatpush.msra.mxu0 %v1328
      %1720 = vmatpush.msra.mxu0 %v1320
      %1721 = vmatmul.f32.gmra.mxu0 %v1403
      %v1722 = vpop.f32.mrf.mxu0
      %v1723 = vadd.f32 %v1703, %v1722
      %1724 = vdwg.mxu0
      %v1725 = vld [vmem:[%s3] sm:$0xff]
      %1727 = vset.pattern.permute.xlu0 0
      %1728 = vperm.xlu0 %1727, %v1725
      %v1729 = vpop.permute.xlu0 %1728
      %v1731 = vmul.f32 %v1443, %v1729
      %v1732 = vmul.f32 %v1483, %v1729
      %v1733 = vmul.f32 %v1523, %v1729
      %v1734 = vmul.f32 %v1563, %v1729
      %v1735 = vmul.f32 %v1603, %v1729
      %v1736 = vmul.f32 %v1643, %v1729
      %v1737 = vmul.f32 %v1683, %v1729
      %v1738 = vmul.f32 %v1723, %v1729
      %v1739 = vld [vmem:[%s4] sm:$0xff]
      %1741 = vset.pattern.permute.xlu0 0
      %1742 = vperm.xlu0 %1741, %v1739
      %v1743 = vpop.permute.xlu0 %1742
      %v1745 = vadd.f32 %v1731, %v1743
      %v1746 = vadd.f32 %v1732, %v1743
      %v1747 = vadd.f32 %v1733, %v1743
      %v1748 = vadd.f32 %v1734, %v1743
      %v1749 = vadd.f32 %v1735, %v1743
      %v1750 = vadd.f32 %v1736, %v1743
      %v1751 = vadd.f32 %v1737, %v1743
      %v1752 = vadd.f32 %v1738, %v1743
      %v1753 = vmax.f32 %v1745, 0.0
      %v1754 = vmax.f32 %v1746, 0.0
      %v1755 = vmax.f32 %v1747, 0.0
      %v1756 = vmax.f32 %v1748, 0.0
      %v1757 = vmax.f32 %v1749, 0.0
      %v1758 = vmax.f32 %v1750, 0.0
      %v1759 = vmax.f32 %v1751, 0.0
      %v1760 = vmax.f32 %v1752, 0.0
      %v1762 = vperm.slane %v314, 0
      %v1763 = vperm.slane %v314, 1
      %v1764 = vperm.slane %v314, 2
      %v1765 = vperm.slane %v314, 3
      %v1766 = vperm.slane %v314, 4
      %v1767 = vperm.slane %v314, 5
      %v1768 = vperm.slane %v314, 6
      %v1769 = vperm.slane %v314, 7
      %v1778 = vmul.f32 %v1753, %v1762
      %v1779 = vmul.f32 %v1754, %v1763
      %v1780 = vmul.f32 %v1755, %v1764
      %v1781 = vmul.f32 %v1756, %v1765
      %v1782 = vmul.f32 %v1757, %v1766
      %v1783 = vmul.f32 %v1758, %v1767
      %v1784 = vmul.f32 %v1759, %v1768
      %v1785 = vmul.f32 %v1760, %v1769
      %1786 = vrot.lane.b32.xlu0 %v1778, 111
      %v1787 = vpop.permute.xlu0 %1786
      %1788 = vrot.lane.b32.xlu0 %v1779, 111
      %v1789 = vpop.permute.xlu0 %1788
      %1790 = vrot.lane.b32.xlu0 %v1780, 111
      %v1791 = vpop.permute.xlu0 %1790
      %1792 = vrot.lane.b32.xlu0 %v1781, 111
      %v1793 = vpop.permute.xlu0 %1792
      %1794 = vrot.lane.b32.xlu0 %v1782, 111
      %v1795 = vpop.permute.xlu0 %1794
      %1796 = vrot.lane.b32.xlu0 %v1783, 111
      %v1797 = vpop.permute.xlu0 %1796
      %1798 = vrot.lane.b32.xlu0 %v1784, 111
      %v1799 = vpop.permute.xlu0 %1798
      %1800 = vrot.lane.b32.xlu0 %v1785, 111
      %v1801 = vpop.permute.xlu0 %1800
      %v1802 = vsel %vm333, %v1799, %v1801
      %v1803 = vsel %vm333, %v1797, %v1799
      %v1804 = vsel %vm333, %v1795, %v1797
      %v1805 = vsel %vm333, %v1793, %v1795
      %v1806 = vsel %vm333, %v1791, %v1793
      %v1807 = vsel %vm333, %v1789, %v1791
      %v1808 = vsel %vm333, %v1787, %v1789
      %v1809 = vsel %vm333, %v1801, %v1787
      %1810 = vst [vmem:[#allocation2] sm:$0xff] %v1809
      %1811 = vst [vmem:[#allocation2 + $0x8] sm:$0xff] %v1808
      %1812 = vst [vmem:[#allocation2 + $0x10] sm:$0xff] %v1807
      %1813 = vst [vmem:[#allocation2 + $0x18] sm:$0xff] %v1806
      %1814 = vst [vmem:[#allocation2 + $0x20] sm:$0xff] %v1805
      %1815 = vst [vmem:[#allocation2 + $0x28] sm:$0xff] %v1804
      %1816 = vst [vmem:[#allocation2 + $0x30] sm:$0xff] %v1803
      %1817 = vst [vmem:[#allocation2 + $0x38] sm:$0xff] %v1802
      %1818 = vrot.lane.b32.xlu0 %v1778, 110
      %v1819 = vpop.permute.xlu0 %1818
      %1820 = vrot.lane.b32.xlu0 %v1779, 110
      %v1821 = vpop.permute.xlu0 %1820
      %1822 = vrot.lane.b32.xlu0 %v1780, 110
      %v1823 = vpop.permute.xlu0 %1822
      %1824 = vrot.lane.b32.xlu0 %v1781, 110
      %v1825 = vpop.permute.xlu0 %1824
      %1826 = vrot.lane.b32.xlu0 %v1782, 110
      %v1827 = vpop.permute.xlu0 %1826
      %1828 = vrot.lane.b32.xlu0 %v1783, 110
      %v1829 = vpop.permute.xlu0 %1828
      %1830 = vrot.lane.b32.xlu0 %v1784, 110
      %v1831 = vpop.permute.xlu0 %1830
      %1832 = vrot.lane.b32.xlu0 %v1785, 110
      %v1833 = vpop.permute.xlu0 %1832
      %v1834 = vsel %vm366, %v1831, %v1833
      %v1835 = vsel %vm366, %v1829, %v1831
      %v1836 = vsel %vm366, %v1827, %v1829
      %v1837 = vsel %vm366, %v1825, %v1827
      %v1838 = vsel %vm366, %v1823, %v1825
      %v1839 = vsel %vm366, %v1821, %v1823
      %v1840 = vsel %vm366, %v1819, %v1821
      %v1841 = vsel %vm366, %v1833, %v1819
      %1842 = vst [vmem:[#allocation2 + $0x40] sm:$0xff] %v1841
      %1843 = vst [vmem:[#allocation2 + $0x48] sm:$0xff] %v1840
      %1844 = vst [vmem:[#allocation2 + $0x50] sm:$0xff] %v1839
      %1845 = vst [vmem:[#allocation2 + $0x58] sm:$0xff] %v1838
      %1846 = vst [vmem:[#allocation2 + $0x60] sm:$0xff] %v1837
      %1847 = vst [vmem:[#allocation2 + $0x68] sm:$0xff] %v1836
      %1848 = vst [vmem:[#allocation2 + $0x70] sm:$0xff] %v1835
      %1849 = vst [vmem:[#allocation2 + $0x78] sm:$0xff] %v1834
      %1850 = vrot.lane.b32.xlu0 %v1778, 109
      %v1851 = vpop.permute.xlu0 %1850
      %1852 = vrot.lane.b32.xlu0 %v1779, 109
      %v1853 = vpop.permute.xlu0 %1852
      %1854 = vrot.lane.b32.xlu0 %v1780, 109
      %v1855 = vpop.permute.xlu0 %1854
      %1856 = vrot.lane.b32.xlu0 %v1781, 109
      %v1857 = vpop.permute.xlu0 %1856
      %1858 = vrot.lane.b32.xlu0 %v1782, 109
      %v1859 = vpop.permute.xlu0 %1858
      %1860 = vrot.lane.b32.xlu0 %v1783, 109
      %v1861 = vpop.permute.xlu0 %1860
      %1862 = vrot.lane.b32.xlu0 %v1784, 109
      %v1863 = vpop.permute.xlu0 %1862
      %1864 = vrot.lane.b32.xlu0 %v1785, 109
      %v1865 = vpop.permute.xlu0 %1864
      %v1866 = vsel %vm399, %v1863, %v1865
      %v1867 = vsel %vm399, %v1861, %v1863
      %v1868 = vsel %vm399, %v1859, %v1861
      %v1869 = vsel %vm399, %v1857, %v1859
      %v1870 = vsel %vm399, %v1855, %v1857
      %v1871 = vsel %vm399, %v1853, %v1855
      %v1872 = vsel %vm399, %v1851, %v1853
      %v1873 = vsel %vm399, %v1865, %v1851
      %1874 = vst [vmem:[#allocation2 + $0x80] sm:$0xff] %v1873
      %1875 = vst [vmem:[#allocation2 + $0x88] sm:$0xff] %v1872
      %1876 = vst [vmem:[#allocation2 + $0x90] sm:$0xff] %v1871
      %1877 = vst [vmem:[#allocation2 + $0x98] sm:$0xff] %v1870
      %1878 = vst [vmem:[#allocation2 + $0xa0] sm:$0xff] %v1869
      %1879 = vst [vmem:[#allocation2 + $0xa8] sm:$0xff] %v1868
      %1880 = vst [vmem:[#allocation2 + $0xb0] sm:$0xff] %v1867
      %1881 = vst [vmem:[#allocation2 + $0xb8] sm:$0xff] %v1866
      %1882 = vrot.lane.b32.xlu0 %v1778, 101
      %v1883 = vpop.permute.xlu0 %1882
      %1884 = vrot.lane.b32.xlu0 %v1779, 101
      %v1885 = vpop.permute.xlu0 %1884
      %1886 = vrot.lane.b32.xlu0 %v1780, 101
      %v1887 = vpop.permute.xlu0 %1886
      %1888 = vrot.lane.b32.xlu0 %v1781, 101
      %v1889 = vpop.permute.xlu0 %1888
      %1890 = vrot.lane.b32.xlu0 %v1782, 101
      %v1891 = vpop.permute.xlu0 %1890
      %1892 = vrot.lane.b32.xlu0 %v1783, 101
      %v1893 = vpop.permute.xlu0 %1892
      %1894 = vrot.lane.b32.xlu0 %v1784, 101
      %v1895 = vpop.permute.xlu0 %1894
      %1896 = vrot.lane.b32.xlu0 %v1785, 101
      %v1897 = vpop.permute.xlu0 %1896
      %v1898 = vsel %vm432, %v1895, %v1897
      %v1899 = vsel %vm432, %v1893, %v1895
      %v1900 = vsel %vm432, %v1891, %v1893
      %v1901 = vsel %vm432, %v1889, %v1891
      %v1902 = vsel %vm432, %v1887, %v1889
      %v1903 = vsel %vm432, %v1885, %v1887
      %v1904 = vsel %vm432, %v1883, %v1885
      %v1905 = vsel %vm432, %v1897, %v1883
      %1906 = vst [vmem:[#allocation2 + $0xc0] sm:$0xff] %v1905
      %1907 = vst [vmem:[#allocation2 + $0xc8] sm:$0xff] %v1904
      %1908 = vst [vmem:[#allocation2 + $0xd0] sm:$0xff] %v1903
      %1909 = vst [vmem:[#allocation2 + $0xd8] sm:$0xff] %v1902
      %1910 = vst [vmem:[#allocation2 + $0xe0] sm:$0xff] %v1901
      %1911 = vst [vmem:[#allocation2 + $0xe8] sm:$0xff] %v1900
      %1912 = vst [vmem:[#allocation2 + $0xf0] sm:$0xff] %v1899
      %1913 = vst [vmem:[#allocation2 + $0xf8] sm:$0xff] %v1898
      %1914 = vrot.lane.b32.xlu0 %v1778, 100
      %v1915 = vpop.permute.xlu0 %1914
      %1916 = vrot.lane.b32.xlu0 %v1779, 100
      %v1917 = vpop.permute.xlu0 %1916
      %1918 = vrot.lane.b32.xlu0 %v1780, 100
      %v1919 = vpop.permute.xlu0 %1918
      %1920 = vrot.lane.b32.xlu0 %v1781, 100
      %v1921 = vpop.permute.xlu0 %1920
      %1922 = vrot.lane.b32.xlu0 %v1782, 100
      %v1923 = vpop.permute.xlu0 %1922
      %1924 = vrot.lane.b32.xlu0 %v1783, 100
      %v1925 = vpop.permute.xlu0 %1924
      %1926 = vrot.lane.b32.xlu0 %v1784, 100
      %v1927 = vpop.permute.xlu0 %1926
      %1928 = vrot.lane.b32.xlu0 %v1785, 100
      %v1929 = vpop.permute.xlu0 %1928
      %v1930 = vsel %vm465, %v1927, %v1929
      %v1931 = vsel %vm465, %v1925, %v1927
      %v1932 = vsel %vm465, %v1923, %v1925
      %v1933 = vsel %vm465, %v1921, %v1923
      %v1934 = vsel %vm465, %v1919, %v1921
      %v1935 = vsel %vm465, %v1917, %v1919
      %v1936 = vsel %vm465, %v1915, %v1917
      %v1937 = vsel %vm465, %v1929, %v1915
      %1938 = vst [vmem:[#allocation2 + $0x100] sm:$0xff] %v1937
      %1939 = vst [vmem:[#allocation2 + $0x108] sm:$0xff] %v1936
      %1940 = vst [vmem:[#allocation2 + $0x110] sm:$0xff] %v1935
      %1941 = vst [vmem:[#allocation2 + $0x118] sm:$0xff] %v1934
      %1942 = vst [vmem:[#allocation2 + $0x120] sm:$0xff] %v1933
      %1943 = vst [vmem:[#allocation2 + $0x128] sm:$0xff] %v1932
      %1944 = vst [vmem:[#allocation2 + $0x130] sm:$0xff] %v1931
      %1945 = vst [vmem:[#allocation2 + $0x138] sm:$0xff] %v1930
      %1946 = vrot.lane.b32.xlu0 %v1778, 99
      %v1947 = vpop.permute.xlu0 %1946
      %1948 = vrot.lane.b32.xlu0 %v1779, 99
      %v1949 = vpop.permute.xlu0 %1948
      %1950 = vrot.lane.b32.xlu0 %v1780, 99
      %v1951 = vpop.permute.xlu0 %1950
      %1952 = vrot.lane.b32.xlu0 %v1781, 99
      %v1953 = vpop.permute.xlu0 %1952
      %1954 = vrot.lane.b32.xlu0 %v1782, 99
      %v1955 = vpop.permute.xlu0 %1954
      %1956 = vrot.lane.b32.xlu0 %v1783, 99
      %v1957 = vpop.permute.xlu0 %1956
      %1958 = vrot.lane.b32.xlu0 %v1784, 99
      %v1959 = vpop.permute.xlu0 %1958
      %1960 = vrot.lane.b32.xlu0 %v1785, 99
      %v1961 = vpop.permute.xlu0 %1960
      %v1962 = vsel %vm498, %v1959, %v1961
      %v1963 = vsel %vm498, %v1957, %v1959
      %v1964 = vsel %vm498, %v1955, %v1957
      %v1965 = vsel %vm498, %v1953, %v1955
      %v1966 = vsel %vm498, %v1951, %v1953
      %v1967 = vsel %vm498, %v1949, %v1951
      %v1968 = vsel %vm498, %v1947, %v1949
      %v1969 = vsel %vm498, %v1961, %v1947
      %1970 = vst [vmem:[#allocation2 + $0x140] sm:$0xff] %v1969
      %1971 = vst [vmem:[#allocation2 + $0x148] sm:$0xff] %v1968
      %1972 = vst [vmem:[#allocation2 + $0x150] sm:$0xff] %v1967
      %1973 = vst [vmem:[#allocation2 + $0x158] sm:$0xff] %v1966
      %1974 = vst [vmem:[#allocation2 + $0x160] sm:$0xff] %v1965
      %1975 = vst [vmem:[#allocation2 + $0x168] sm:$0xff] %v1964
      %1976 = vst [vmem:[#allocation2 + $0x170] sm:$0xff] %v1963
      %1977 = vst [vmem:[#allocation2 + $0x178] sm:$0xff] %v1962
      %1978 = vrot.lane.b32.xlu0 %v1778, 91
      %v1979 = vpop.permute.xlu0 %1978
      %1980 = vrot.lane.b32.xlu0 %v1779, 91
      %v1981 = vpop.permute.xlu0 %1980
      %1982 = vrot.lane.b32.xlu0 %v1780, 91
      %v1983 = vpop.permute.xlu0 %1982
      %1984 = vrot.lane.b32.xlu0 %v1781, 91
      %v1985 = vpop.permute.xlu0 %1984
      %1986 = vrot.lane.b32.xlu0 %v1782, 91
      %v1987 = vpop.permute.xlu0 %1986
      %1988 = vrot.lane.b32.xlu0 %v1783, 91
      %v1989 = vpop.permute.xlu0 %1988
      %1990 = vrot.lane.b32.xlu0 %v1784, 91
      %v1991 = vpop.permute.xlu0 %1990
      %1992 = vrot.lane.b32.xlu0 %v1785, 91
      %v1993 = vpop.permute.xlu0 %1992
      %v1994 = vsel %vm531, %v1991, %v1993
      %v1995 = vsel %vm531, %v1989, %v1991
      %v1996 = vsel %vm531, %v1987, %v1989
      %v1997 = vsel %vm531, %v1985, %v1987
      %v1998 = vsel %vm531, %v1983, %v1985
      %v1999 = vsel %vm531, %v1981, %v1983
      %v2000 = vsel %vm531, %v1979, %v1981
      %v2001 = vsel %vm531, %v1993, %v1979
      %2002 = vst [vmem:[#allocation2 + $0x180] sm:$0xff] %v2001
      %2003 = vst [vmem:[#allocation2 + $0x188] sm:$0xff] %v2000
      %2004 = vst [vmem:[#allocation2 + $0x190] sm:$0xff] %v1999
      %2005 = vst [vmem:[#allocation2 + $0x198] sm:$0xff] %v1998
      %2006 = vst [vmem:[#allocation2 + $0x1a0] sm:$0xff] %v1997
      %2007 = vst [vmem:[#allocation2 + $0x1a8] sm:$0xff] %v1996
      %2008 = vst [vmem:[#allocation2 + $0x1b0] sm:$0xff] %v1995
      %2009 = vst [vmem:[#allocation2 + $0x1b8] sm:$0xff] %v1994
      %2010 = vrot.lane.b32.xlu0 %v1778, 90
      %v2011 = vpop.permute.xlu0 %2010
      %2012 = vrot.lane.b32.xlu0 %v1779, 90
      %v2013 = vpop.permute.xlu0 %2012
      %2014 = vrot.lane.b32.xlu0 %v1780, 90
      %v2015 = vpop.permute.xlu0 %2014
      %2016 = vrot.lane.b32.xlu0 %v1781, 90
      %v2017 = vpop.permute.xlu0 %2016
      %2018 = vrot.lane.b32.xlu0 %v1782, 90
      %v2019 = vpop.permute.xlu0 %2018
      %2020 = vrot.lane.b32.xlu0 %v1783, 90
      %v2021 = vpop.permute.xlu0 %2020
      %2022 = vrot.lane.b32.xlu0 %v1784, 90
      %v2023 = vpop.permute.xlu0 %2022
      %2024 = vrot.lane.b32.xlu0 %v1785, 90
      %v2025 = vpop.permute.xlu0 %2024
      %v2026 = vsel %vm564, %v2023, %v2025
      %v2027 = vsel %vm564, %v2021, %v2023
      %v2028 = vsel %vm564, %v2019, %v2021
      %v2029 = vsel %vm564, %v2017, %v2019
      %v2030 = vsel %vm564, %v2015, %v2017
      %v2031 = vsel %vm564, %v2013, %v2015
      %v2032 = vsel %vm564, %v2011, %v2013
      %v2033 = vsel %vm564, %v2025, %v2011
      %2034 = vst [vmem:[#allocation2 + $0x1c0] sm:$0xff] %v2033
      %2035 = vst [vmem:[#allocation2 + $0x1c8] sm:$0xff] %v2032
      %2036 = vst [vmem:[#allocation2 + $0x1d0] sm:$0xff] %v2031
      %2037 = vst [vmem:[#allocation2 + $0x1d8] sm:$0xff] %v2030
      %2038 = vst [vmem:[#allocation2 + $0x1e0] sm:$0xff] %v2029
      %2039 = vst [vmem:[#allocation2 + $0x1e8] sm:$0xff] %v2028
      %2040 = vst [vmem:[#allocation2 + $0x1f0] sm:$0xff] %v2027
      %2041 = vst [vmem:[#allocation2 + $0x1f8] sm:$0xff] %v2026
      %2042 = vrot.lane.b32.xlu0 %v1778, 89
      %v2043 = vpop.permute.xlu0 %2042
      %2044 = vrot.lane.b32.xlu0 %v1779, 89
      %v2045 = vpop.permute.xlu0 %2044
      %2046 = vrot.lane.b32.xlu0 %v1780, 89
      %v2047 = vpop.permute.xlu0 %2046
      %2048 = vrot.lane.b32.xlu0 %v1781, 89
      %v2049 = vpop.permute.xlu0 %2048
      %2050 = vrot.lane.b32.xlu0 %v1782, 89
      %v2051 = vpop.permute.xlu0 %2050
      %2052 = vrot.lane.b32.xlu0 %v1783, 89
      %v2053 = vpop.permute.xlu0 %2052
      %2054 = vrot.lane.b32.xlu0 %v1784, 89
      %v2055 = vpop.permute.xlu0 %2054
      %2056 = vrot.lane.b32.xlu0 %v1785, 89
      %v2057 = vpop.permute.xlu0 %2056
      %v2058 = vsel %vm597, %v2055, %v2057
      %v2059 = vsel %vm597, %v2053, %v2055
      %v2060 = vsel %vm597, %v2051, %v2053
      %v2061 = vsel %vm597, %v2049, %v2051
      %v2062 = vsel %vm597, %v2047, %v2049
      %v2063 = vsel %vm597, %v2045, %v2047
      %v2064 = vsel %vm597, %v2043, %v2045
      %v2065 = vsel %vm597, %v2057, %v2043
      %2066 = vst [vmem:[#allocation2 + $0x200] sm:$0xff] %v2065
      %2067 = vst [vmem:[#allocation2 + $0x208] sm:$0xff] %v2064
      %2068 = vst [vmem:[#allocation2 + $0x210] sm:$0xff] %v2063
      %2069 = vst [vmem:[#allocation2 + $0x218] sm:$0xff] %v2062
      %2070 = vst [vmem:[#allocation2 + $0x220] sm:$0xff] %v2061
      %2071 = vst [vmem:[#allocation2 + $0x228] sm:$0xff] %v2060
      %2072 = vst [vmem:[#allocation2 + $0x230] sm:$0xff] %v2059
      %2073 = vst [vmem:[#allocation2 + $0x238] sm:$0xff] %v2058
      %2074 = vrot.lane.b32.xlu0 %v1778, 11
      %v2075 = vpop.permute.xlu0 %2074
      %2076 = vrot.lane.b32.xlu0 %v1779, 11
      %v2077 = vpop.permute.xlu0 %2076
      %2078 = vrot.lane.b32.xlu0 %v1780, 11
      %v2079 = vpop.permute.xlu0 %2078
      %2080 = vrot.lane.b32.xlu0 %v1781, 11
      %v2081 = vpop.permute.xlu0 %2080
      %2082 = vrot.lane.b32.xlu0 %v1782, 11
      %v2083 = vpop.permute.xlu0 %2082
      %2084 = vrot.lane.b32.xlu0 %v1783, 11
      %v2085 = vpop.permute.xlu0 %2084
      %2086 = vrot.lane.b32.xlu0 %v1784, 11
      %v2087 = vpop.permute.xlu0 %2086
      %2088 = vrot.lane.b32.xlu0 %v1785, 11
      %v2089 = vpop.permute.xlu0 %2088
      %v2090 = vsel %vm630, %v2087, %v2089
      %v2091 = vsel %vm630, %v2085, %v2087
      %v2092 = vsel %vm630, %v2083, %v2085
      %v2093 = vsel %vm630, %v2081, %v2083
      %v2094 = vsel %vm630, %v2079, %v2081
      %v2095 = vsel %vm630, %v2077, %v2079
      %v2096 = vsel %vm630, %v2075, %v2077
      %v2097 = vsel %vm630, %v2089, %v2075
      %2098 = vst [vmem:[#allocation2 + $0x240] sm:$0xff] %v2097
      %2099 = vst [vmem:[#allocation2 + $0x248] sm:$0xff] %v2096
      %2100 = vst [vmem:[#allocation2 + $0x250] sm:$0xff] %v2095
      %2101 = vst [vmem:[#allocation2 + $0x258] sm:$0xff] %v2094
      %2102 = vst [vmem:[#allocation2 + $0x260] sm:$0xff] %v2093
      %2103 = vst [vmem:[#allocation2 + $0x268] sm:$0xff] %v2092
      %2104 = vst [vmem:[#allocation2 + $0x270] sm:$0xff] %v2091
      %2105 = vst [vmem:[#allocation2 + $0x278] sm:$0xff] %v2090
      %2106 = vrot.lane.b32.xlu0 %v1778, 10
      %v2107 = vpop.permute.xlu0 %2106
      %2108 = vrot.lane.b32.xlu0 %v1779, 10
      %v2109 = vpop.permute.xlu0 %2108
      %2110 = vrot.lane.b32.xlu0 %v1780, 10
      %v2111 = vpop.permute.xlu0 %2110
      %2112 = vrot.lane.b32.xlu0 %v1781, 10
      %v2113 = vpop.permute.xlu0 %2112
      %2114 = vrot.lane.b32.xlu0 %v1782, 10
      %v2115 = vpop.permute.xlu0 %2114
      %2116 = vrot.lane.b32.xlu0 %v1783, 10
      %v2117 = vpop.permute.xlu0 %2116
      %2118 = vrot.lane.b32.xlu0 %v1784, 10
      %v2119 = vpop.permute.xlu0 %2118
      %2120 = vrot.lane.b32.xlu0 %v1785, 10
      %v2121 = vpop.permute.xlu0 %2120
      %v2122 = vsel %vm663, %v2119, %v2121
      %v2123 = vsel %vm663, %v2117, %v2119
      %v2124 = vsel %vm663, %v2115, %v2117
      %v2125 = vsel %vm663, %v2113, %v2115
      %v2126 = vsel %vm663, %v2111, %v2113
      %v2127 = vsel %vm663, %v2109, %v2111
      %v2128 = vsel %vm663, %v2107, %v2109
      %v2129 = vsel %vm663, %v2121, %v2107
      %2130 = vst [vmem:[#allocation2 + $0x280] sm:$0xff] %v2129
      %2131 = vst [vmem:[#allocation2 + $0x288] sm:$0xff] %v2128
      %2132 = vst [vmem:[#allocation2 + $0x290] sm:$0xff] %v2127
      %2133 = vst [vmem:[#allocation2 + $0x298] sm:$0xff] %v2126
      %2134 = vst [vmem:[#allocation2 + $0x2a0] sm:$0xff] %v2125
      %2135 = vst [vmem:[#allocation2 + $0x2a8] sm:$0xff] %v2124
      %2136 = vst [vmem:[#allocation2 + $0x2b0] sm:$0xff] %v2123
      %2137 = vst [vmem:[#allocation2 + $0x2b8] sm:$0xff] %v2122
      %2138 = vrot.lane.b32.xlu0 %v1778, 9
      %v2139 = vpop.permute.xlu0 %2138
      %2140 = vrot.lane.b32.xlu0 %v1779, 9
      %v2141 = vpop.permute.xlu0 %2140
      %2142 = vrot.lane.b32.xlu0 %v1780, 9
      %v2143 = vpop.permute.xlu0 %2142
      %2144 = vrot.lane.b32.xlu0 %v1781, 9
      %v2145 = vpop.permute.xlu0 %2144
      %2146 = vrot.lane.b32.xlu0 %v1782, 9
      %v2147 = vpop.permute.xlu0 %2146
      %2148 = vrot.lane.b32.xlu0 %v1783, 9
      %v2149 = vpop.permute.xlu0 %2148
      %2150 = vrot.lane.b32.xlu0 %v1784, 9
      %v2151 = vpop.permute.xlu0 %2150
      %2152 = vrot.lane.b32.xlu0 %v1785, 9
      %v2153 = vpop.permute.xlu0 %2152
      %v2154 = vsel %vm696, %v2151, %v2153
      %v2155 = vsel %vm696, %v2149, %v2151
      %v2156 = vsel %vm696, %v2147, %v2149
      %v2157 = vsel %vm696, %v2145, %v2147
      %v2158 = vsel %vm696, %v2143, %v2145
      %v2159 = vsel %vm696, %v2141, %v2143
      %v2160 = vsel %vm696, %v2139, %v2141
      %v2161 = vsel %vm696, %v2153, %v2139
      %2162 = vst [vmem:[#allocation2 + $0x2c0] sm:$0xff] %v2161
      %2163 = vst [vmem:[#allocation2 + $0x2c8] sm:$0xff] %v2160
      %2164 = vst [vmem:[#allocation2 + $0x2d0] sm:$0xff] %v2159
      %2165 = vst [vmem:[#allocation2 + $0x2d8] sm:$0xff] %v2158
      %2166 = vst [vmem:[#allocation2 + $0x2e0] sm:$0xff] %v2157
      %2167 = vst [vmem:[#allocation2 + $0x2e8] sm:$0xff] %v2156
      %2168 = vst [vmem:[#allocation2 + $0x2f0] sm:$0xff] %v2155
      %2169 = vst [vmem:[#allocation2 + $0x2f8] sm:$0xff] %v2154
      %2170 = vrot.lane.b32.xlu0 %v1778, 1
      %v2171 = vpop.permute.xlu0 %2170
      %2172 = vrot.lane.b32.xlu0 %v1779, 1
      %v2173 = vpop.permute.xlu0 %2172
      %2174 = vrot.lane.b32.xlu0 %v1780, 1
      %v2175 = vpop.permute.xlu0 %2174
      %2176 = vrot.lane.b32.xlu0 %v1781, 1
      %v2177 = vpop.permute.xlu0 %2176
      %2178 = vrot.lane.b32.xlu0 %v1782, 1
      %v2179 = vpop.permute.xlu0 %2178
      %2180 = vrot.lane.b32.xlu0 %v1783, 1
      %v2181 = vpop.permute.xlu0 %2180
      %2182 = vrot.lane.b32.xlu0 %v1784, 1
      %v2183 = vpop.permute.xlu0 %2182
      %2184 = vrot.lane.b32.xlu0 %v1785, 1
      %v2185 = vpop.permute.xlu0 %2184
      %v2186 = vsel %vm729, %v2183, %v2185
      %v2187 = vsel %vm729, %v2181, %v2183
      %v2188 = vsel %vm729, %v2179, %v2181
      %v2189 = vsel %vm729, %v2177, %v2179
      %v2190 = vsel %vm729, %v2175, %v2177
      %v2191 = vsel %vm729, %v2173, %v2175
      %v2192 = vsel %vm729, %v2171, %v2173
      %v2193 = vsel %vm729, %v2185, %v2171
      %2194 = vst [vmem:[#allocation2 + $0x300] sm:$0xff] %v2193
      %2195 = vst [vmem:[#allocation2 + $0x308] sm:$0xff] %v2192
      %2196 = vst [vmem:[#allocation2 + $0x310] sm:$0xff] %v2191
      %2197 = vst [vmem:[#allocation2 + $0x318] sm:$0xff] %v2190
      %2198 = vst [vmem:[#allocation2 + $0x320] sm:$0xff] %v2189
      %2199 = vst [vmem:[#allocation2 + $0x328] sm:$0xff] %v2188
      %2200 = vst [vmem:[#allocation2 + $0x330] sm:$0xff] %v2187
      %2201 = vst [vmem:[#allocation2 + $0x338] sm:$0xff] %v2186
      %2202 = vst [vmem:[#allocation2 + $0x340] sm:$0xff] %v1778
      %2203 = vst [vmem:[#allocation2 + $0x348] sm:$0xff] %v1779
      %2204 = vst [vmem:[#allocation2 + $0x350] sm:$0xff] %v1780
      %2205 = vst [vmem:[#allocation2 + $0x358] sm:$0xff] %v1781
      %2206 = vst [vmem:[#allocation2 + $0x360] sm:$0xff] %v1782
      %2207 = vst [vmem:[#allocation2 + $0x368] sm:$0xff] %v1783
      %2208 = vst [vmem:[#allocation2 + $0x370] sm:$0xff] %v1784
      %2209 = vst [vmem:[#allocation2 + $0x378] sm:$0xff] %v1785
      %2210 = vrot.lane.b32.xlu0 %v1778, 127
      %v2211 = vpop.permute.xlu0 %2210
      %2212 = vrot.lane.b32.xlu0 %v1779, 127
      %v2213 = vpop.permute.xlu0 %2212
      %2214 = vrot.lane.b32.xlu0 %v1780, 127
      %v2215 = vpop.permute.xlu0 %2214
      %2216 = vrot.lane.b32.xlu0 %v1781, 127
      %v2217 = vpop.permute.xlu0 %2216
      %2218 = vrot.lane.b32.xlu0 %v1782, 127
      %v2219 = vpop.permute.xlu0 %2218
      %2220 = vrot.lane.b32.xlu0 %v1783, 127
      %v2221 = vpop.permute.xlu0 %2220
      %2222 = vrot.lane.b32.xlu0 %v1784, 127
      %v2223 = vpop.permute.xlu0 %2222
      %2224 = vrot.lane.b32.xlu0 %v1785, 127
      %v2225 = vpop.permute.xlu0 %2224
      %v2226 = vsel %vm770, %v2223, %v2225
      %v2227 = vsel %vm770, %v2221, %v2223
      %v2228 = vsel %vm770, %v2219, %v2221
      %v2229 = vsel %vm770, %v2217, %v2219
      %v2230 = vsel %vm770, %v2215, %v2217
      %v2231 = vsel %vm770, %v2213, %v2215
      %v2232 = vsel %vm770, %v2211, %v2213
      %v2233 = vsel %vm770, %v2225, %v2211
      %2234 = vst [vmem:[#allocation2 + $0x380] sm:$0xff] %v2232
      %2235 = vst [vmem:[#allocation2 + $0x388] sm:$0xff] %v2231
      %2236 = vst [vmem:[#allocation2 + $0x390] sm:$0xff] %v2230
      %2237 = vst [vmem:[#allocation2 + $0x398] sm:$0xff] %v2229
      %2238 = vst [vmem:[#allocation2 + $0x3a0] sm:$0xff] %v2228
      %2239 = vst [vmem:[#allocation2 + $0x3a8] sm:$0xff] %v2227
      %2240 = vst [vmem:[#allocation2 + $0x3b0] sm:$0xff] %v2226
      %2241 = vst [vmem:[#allocation2 + $0x3b8] sm:$0xff] %v2233
      %2242 = vrot.lane.b32.xlu0 %v1778, 119
      %v2243 = vpop.permute.xlu0 %2242
      %2244 = vrot.lane.b32.xlu0 %v1779, 119
      %v2245 = vpop.permute.xlu0 %2244
      %2246 = vrot.lane.b32.xlu0 %v1780, 119
      %v2247 = vpop.permute.xlu0 %2246
      %2248 = vrot.lane.b32.xlu0 %v1781, 119
      %v2249 = vpop.permute.xlu0 %2248
      %2250 = vrot.lane.b32.xlu0 %v1782, 119
      %v2251 = vpop.permute.xlu0 %2250
      %2252 = vrot.lane.b32.xlu0 %v1783, 119
      %v2253 = vpop.permute.xlu0 %2252
      %2254 = vrot.lane.b32.xlu0 %v1784, 119
      %v2255 = vpop.permute.xlu0 %2254
      %2256 = vrot.lane.b32.xlu0 %v1785, 119
      %v2257 = vpop.permute.xlu0 %2256
      %v2258 = vsel %vm803, %v2255, %v2257
      %v2259 = vsel %vm803, %v2253, %v2255
      %v2260 = vsel %vm803, %v2251, %v2253
      %v2261 = vsel %vm803, %v2249, %v2251
      %v2262 = vsel %vm803, %v2247, %v2249
      %v2263 = vsel %vm803, %v2245, %v2247
      %v2264 = vsel %vm803, %v2243, %v2245
      %v2265 = vsel %vm803, %v2257, %v2243
      %2266 = vst [vmem:[#allocation2 + $0x3c0] sm:$0xff] %v2264
      %2267 = vst [vmem:[#allocation2 + $0x3c8] sm:$0xff] %v2263
      %2268 = vst [vmem:[#allocation2 + $0x3d0] sm:$0xff] %v2262
      %2269 = vst [vmem:[#allocation2 + $0x3d8] sm:$0xff] %v2261
      %2270 = vst [vmem:[#allocation2 + $0x3e0] sm:$0xff] %v2260
      %2271 = vst [vmem:[#allocation2 + $0x3e8] sm:$0xff] %v2259
      %2272 = vst [vmem:[#allocation2 + $0x3f0] sm:$0xff] %v2258
      %2273 = vst [vmem:[#allocation2 + $0x3f8] sm:$0xff] %v2265
      %2274 = vrot.lane.b32.xlu0 %v1778, 118
      %v2275 = vpop.permute.xlu0 %2274
      %2276 = vrot.lane.b32.xlu0 %v1779, 118
      %v2277 = vpop.permute.xlu0 %2276
      %2278 = vrot.lane.b32.xlu0 %v1780, 118
      %v2279 = vpop.permute.xlu0 %2278
      %2280 = vrot.lane.b32.xlu0 %v1781, 118
      %v2281 = vpop.permute.xlu0 %2280
      %2282 = vrot.lane.b32.xlu0 %v1782, 118
      %v2283 = vpop.permute.xlu0 %2282
      %2284 = vrot.lane.b32.xlu0 %v1783, 118
      %v2285 = vpop.permute.xlu0 %2284
      %2286 = vrot.lane.b32.xlu0 %v1784, 118
      %v2287 = vpop.permute.xlu0 %2286
      %2288 = vrot.lane.b32.xlu0 %v1785, 118
      %v2289 = vpop.permute.xlu0 %2288
      %v2290 = vsel %vm836, %v2287, %v2289
      %v2291 = vsel %vm836, %v2285, %v2287
      %v2292 = vsel %vm836, %v2283, %v2285
      %v2293 = vsel %vm836, %v2281, %v2283
      %v2294 = vsel %vm836, %v2279, %v2281
      %v2295 = vsel %vm836, %v2277, %v2279
      %v2296 = vsel %vm836, %v2275, %v2277
      %v2297 = vsel %vm836, %v2289, %v2275
      %2298 = vst [vmem:[#allocation2 + $0x400] sm:$0xff] %v2296
      %2299 = vst [vmem:[#allocation2 + $0x408] sm:$0xff] %v2295
      %2300 = vst [vmem:[#allocation2 + $0x410] sm:$0xff] %v2294
      %2301 = vst [vmem:[#allocation2 + $0x418] sm:$0xff] %v2293
      %2302 = vst [vmem:[#allocation2 + $0x420] sm:$0xff] %v2292
      %2303 = vst [vmem:[#allocation2 + $0x428] sm:$0xff] %v2291
      %2304 = vst [vmem:[#allocation2 + $0x430] sm:$0xff] %v2290
      %2305 = vst [vmem:[#allocation2 + $0x438] sm:$0xff] %v2297
      %2306 = vrot.lane.b32.xlu0 %v1778, 117
      %v2307 = vpop.permute.xlu0 %2306
      %2308 = vrot.lane.b32.xlu0 %v1779, 117
      %v2309 = vpop.permute.xlu0 %2308
      %2310 = vrot.lane.b32.xlu0 %v1780, 117
      %v2311 = vpop.permute.xlu0 %2310
      %2312 = vrot.lane.b32.xlu0 %v1781, 117
      %v2313 = vpop.permute.xlu0 %2312
      %2314 = vrot.lane.b32.xlu0 %v1782, 117
      %v2315 = vpop.permute.xlu0 %2314
      %2316 = vrot.lane.b32.xlu0 %v1783, 117
      %v2317 = vpop.permute.xlu0 %2316
      %2318 = vrot.lane.b32.xlu0 %v1784, 117
      %v2319 = vpop.permute.xlu0 %2318
      %2320 = vrot.lane.b32.xlu0 %v1785, 117
      %v2321 = vpop.permute.xlu0 %2320
      %v2322 = vsel %vm869, %v2319, %v2321
      %v2323 = vsel %vm869, %v2317, %v2319
      %v2324 = vsel %vm869, %v2315, %v2317
      %v2325 = vsel %vm869, %v2313, %v2315
      %v2326 = vsel %vm869, %v2311, %v2313
      %v2327 = vsel %vm869, %v2309, %v2311
      %v2328 = vsel %vm869, %v2307, %v2309
      %v2329 = vsel %vm869, %v2321, %v2307
      %2330 = vst [vmem:[#allocation2 + $0x440] sm:$0xff] %v2328
      %2331 = vst [vmem:[#allocation2 + $0x448] sm:$0xff] %v2327
      %2332 = vst [vmem:[#allocation2 + $0x450] sm:$0xff] %v2326
      %2333 = vst [vmem:[#allocation2 + $0x458] sm:$0xff] %v2325
      %2334 = vst [vmem:[#allocation2 + $0x460] sm:$0xff] %v2324
      %2335 = vst [vmem:[#allocation2 + $0x468] sm:$0xff] %v2323
      %2336 = vst [vmem:[#allocation2 + $0x470] sm:$0xff] %v2322
      %2337 = vst [vmem:[#allocation2 + $0x478] sm:$0xff] %v2329
      %2338 = vrot.lane.b32.xlu0 %v1778, 39
      %v2339 = vpop.permute.xlu0 %2338
      %2340 = vrot.lane.b32.xlu0 %v1779, 39
      %v2341 = vpop.permute.xlu0 %2340
      %2342 = vrot.lane.b32.xlu0 %v1780, 39
      %v2343 = vpop.permute.xlu0 %2342
      %2344 = vrot.lane.b32.xlu0 %v1781, 39
      %v2345 = vpop.permute.xlu0 %2344
      %2346 = vrot.lane.b32.xlu0 %v1782, 39
      %v2347 = vpop.permute.xlu0 %2346
      %2348 = vrot.lane.b32.xlu0 %v1783, 39
      %v2349 = vpop.permute.xlu0 %2348
      %2350 = vrot.lane.b32.xlu0 %v1784, 39
      %v2351 = vpop.permute.xlu0 %2350
      %2352 = vrot.lane.b32.xlu0 %v1785, 39
      %v2353 = vpop.permute.xlu0 %2352
      %v2354 = vsel %vm902, %v2351, %v2353
      %v2355 = vsel %vm902, %v2349, %v2351
      %v2356 = vsel %vm902, %v2347, %v2349
      %v2357 = vsel %vm902, %v2345, %v2347
      %v2358 = vsel %vm902, %v2343, %v2345
      %v2359 = vsel %vm902, %v2341, %v2343
      %v2360 = vsel %vm902, %v2339, %v2341
      %v2361 = vsel %vm902, %v2353, %v2339
      %2362 = vst [vmem:[#allocation2 + $0x480] sm:$0xff] %v2360
      %2363 = vst [vmem:[#allocation2 + $0x488] sm:$0xff] %v2359
      %2364 = vst [vmem:[#allocation2 + $0x490] sm:$0xff] %v2358
      %2365 = vst [vmem:[#allocation2 + $0x498] sm:$0xff] %v2357
      %2366 = vst [vmem:[#allocation2 + $0x4a0] sm:$0xff] %v2356
      %2367 = vst [vmem:[#allocation2 + $0x4a8] sm:$0xff] %v2355
      %2368 = vst [vmem:[#allocation2 + $0x4b0] sm:$0xff] %v2354
      %2369 = vst [vmem:[#allocation2 + $0x4b8] sm:$0xff] %v2361
      %2370 = vrot.lane.b32.xlu0 %v1778, 38
      %v2371 = vpop.permute.xlu0 %2370
      %2372 = vrot.lane.b32.xlu0 %v1779, 38
      %v2373 = vpop.permute.xlu0 %2372
      %2374 = vrot.lane.b32.xlu0 %v1780, 38
      %v2375 = vpop.permute.xlu0 %2374
      %2376 = vrot.lane.b32.xlu0 %v1781, 38
      %v2377 = vpop.permute.xlu0 %2376
      %2378 = vrot.lane.b32.xlu0 %v1782, 38
      %v2379 = vpop.permute.xlu0 %2378
      %2380 = vrot.lane.b32.xlu0 %v1783, 38
      %v2381 = vpop.permute.xlu0 %2380
      %2382 = vrot.lane.b32.xlu0 %v1784, 38
      %v2383 = vpop.permute.xlu0 %2382
      %2384 = vrot.lane.b32.xlu0 %v1785, 38
      %v2385 = vpop.permute.xlu0 %2384
      %v2386 = vsel %vm935, %v2383, %v2385
      %v2387 = vsel %vm935, %v2381, %v2383
      %v2388 = vsel %vm935, %v2379, %v2381
      %v2389 = vsel %vm935, %v2377, %v2379
      %v2390 = vsel %vm935, %v2375, %v2377
      %v2391 = vsel %vm935, %v2373, %v2375
      %v2392 = vsel %vm935, %v2371, %v2373
      %v2393 = vsel %vm935, %v2385, %v2371
      %2394 = vst [vmem:[#allocation2 + $0x4c0] sm:$0xff] %v2392
      %2395 = vst [vmem:[#allocation2 + $0x4c8] sm:$0xff] %v2391
      %2396 = vst [vmem:[#allocation2 + $0x4d0] sm:$0xff] %v2390
      %2397 = vst [vmem:[#allocation2 + $0x4d8] sm:$0xff] %v2389
      %2398 = vst [vmem:[#allocation2 + $0x4e0] sm:$0xff] %v2388
      %2399 = vst [vmem:[#allocation2 + $0x4e8] sm:$0xff] %v2387
      %2400 = vst [vmem:[#allocation2 + $0x4f0] sm:$0xff] %v2386
      %2401 = vst [vmem:[#allocation2 + $0x4f8] sm:$0xff] %v2393
      %2402 = vrot.lane.b32.xlu0 %v1778, 37
      %v2403 = vpop.permute.xlu0 %2402
      %2404 = vrot.lane.b32.xlu0 %v1779, 37
      %v2405 = vpop.permute.xlu0 %2404
      %2406 = vrot.lane.b32.xlu0 %v1780, 37
      %v2407 = vpop.permute.xlu0 %2406
      %2408 = vrot.lane.b32.xlu0 %v1781, 37
      %v2409 = vpop.permute.xlu0 %2408
      %2410 = vrot.lane.b32.xlu0 %v1782, 37
      %v2411 = vpop.permute.xlu0 %2410
      %2412 = vrot.lane.b32.xlu0 %v1783, 37
      %v2413 = vpop.permute.xlu0 %2412
      %2414 = vrot.lane.b32.xlu0 %v1784, 37
      %v2415 = vpop.permute.xlu0 %2414
      %2416 = vrot.lane.b32.xlu0 %v1785, 37
      %v2417 = vpop.permute.xlu0 %2416
      %v2418 = vsel %vm968, %v2415, %v2417
      %v2419 = vsel %vm968, %v2413, %v2415
      %v2420 = vsel %vm968, %v2411, %v2413
      %v2421 = vsel %vm968, %v2409, %v2411
      %v2422 = vsel %vm968, %v2407, %v2409
      %v2423 = vsel %vm968, %v2405, %v2407
      %v2424 = vsel %vm968, %v2403, %v2405
      %v2425 = vsel %vm968, %v2417, %v2403
      %2426 = vst [vmem:[#allocation2 + $0x500] sm:$0xff] %v2424
      %2427 = vst [vmem:[#allocation2 + $0x508] sm:$0xff] %v2423
      %2428 = vst [vmem:[#allocation2 + $0x510] sm:$0xff] %v2422
      %2429 = vst [vmem:[#allocation2 + $0x518] sm:$0xff] %v2421
      %2430 = vst [vmem:[#allocation2 + $0x520] sm:$0xff] %v2420
      %2431 = vst [vmem:[#allocation2 + $0x528] sm:$0xff] %v2419
      %2432 = vst [vmem:[#allocation2 + $0x530] sm:$0xff] %v2418
      %2433 = vst [vmem:[#allocation2 + $0x538] sm:$0xff] %v2425
      %2434 = vrot.lane.b32.xlu0 %v1778, 29
      %v2435 = vpop.permute.xlu0 %2434
      %2436 = vrot.lane.b32.xlu0 %v1779, 29
      %v2437 = vpop.permute.xlu0 %2436
      %2438 = vrot.lane.b32.xlu0 %v1780, 29
      %v2439 = vpop.permute.xlu0 %2438
      %2440 = vrot.lane.b32.xlu0 %v1781, 29
      %v2441 = vpop.permute.xlu0 %2440
      %2442 = vrot.lane.b32.xlu0 %v1782, 29
      %v2443 = vpop.permute.xlu0 %2442
      %2444 = vrot.lane.b32.xlu0 %v1783, 29
      %v2445 = vpop.permute.xlu0 %2444
      %2446 = vrot.lane.b32.xlu0 %v1784, 29
      %v2447 = vpop.permute.xlu0 %2446
      %2448 = vrot.lane.b32.xlu0 %v1785, 29
      %v2449 = vpop.permute.xlu0 %2448
      %v2450 = vsel %vm1001, %v2447, %v2449
      %v2451 = vsel %vm1001, %v2445, %v2447
      %v2452 = vsel %vm1001, %v2443, %v2445
      %v2453 = vsel %vm1001, %v2441, %v2443
      %v2454 = vsel %vm1001, %v2439, %v2441
      %v2455 = vsel %vm1001, %v2437, %v2439
      %v2456 = vsel %vm1001, %v2435, %v2437
      %v2457 = vsel %vm1001, %v2449, %v2435
      %2458 = vst [vmem:[#allocation2 + $0x540] sm:$0xff] %v2456
      %2459 = vst [vmem:[#allocation2 + $0x548] sm:$0xff] %v2455
      %2460 = vst [vmem:[#allocation2 + $0x550] sm:$0xff] %v2454
      %2461 = vst [vmem:[#allocation2 + $0x558] sm:$0xff] %v2453
      %2462 = vst [vmem:[#allocation2 + $0x560] sm:$0xff] %v2452
      %2463 = vst [vmem:[#allocation2 + $0x568] sm:$0xff] %v2451
      %2464 = vst [vmem:[#allocation2 + $0x570] sm:$0xff] %v2450
      %2465 = vst [vmem:[#allocation2 + $0x578] sm:$0xff] %v2457
      %2466 = vrot.lane.b32.xlu0 %v1778, 28
      %v2467 = vpop.permute.xlu0 %2466
      %2468 = vrot.lane.b32.xlu0 %v1779, 28
      %v2469 = vpop.permute.xlu0 %2468
      %2470 = vrot.lane.b32.xlu0 %v1780, 28
      %v2471 = vpop.permute.xlu0 %2470
      %2472 = vrot.lane.b32.xlu0 %v1781, 28
      %v2473 = vpop.permute.xlu0 %2472
      %2474 = vrot.lane.b32.xlu0 %v1782, 28
      %v2475 = vpop.permute.xlu0 %2474
      %2476 = vrot.lane.b32.xlu0 %v1783, 28
      %v2477 = vpop.permute.xlu0 %2476
      %2478 = vrot.lane.b32.xlu0 %v1784, 28
      %v2479 = vpop.permute.xlu0 %2478
      %2480 = vrot.lane.b32.xlu0 %v1785, 28
      %v2481 = vpop.permute.xlu0 %2480
      %v2482 = vsel %vm1034, %v2479, %v2481
      %v2483 = vsel %vm1034, %v2477, %v2479
      %v2484 = vsel %vm1034, %v2475, %v2477
      %v2485 = vsel %vm1034, %v2473, %v2475
      %v2486 = vsel %vm1034, %v2471, %v2473
      %v2487 = vsel %vm1034, %v2469, %v2471
      %v2488 = vsel %vm1034, %v2467, %v2469
      %v2489 = vsel %vm1034, %v2481, %v2467
      %2490 = vst [vmem:[#allocation2 + $0x580] sm:$0xff] %v2488
      %2491 = vst [vmem:[#allocation2 + $0x588] sm:$0xff] %v2487
      %2492 = vst [vmem:[#allocation2 + $0x590] sm:$0xff] %v2486
      %2493 = vst [vmem:[#allocation2 + $0x598] sm:$0xff] %v2485
      %2494 = vst [vmem:[#allocation2 + $0x5a0] sm:$0xff] %v2484
      %2495 = vst [vmem:[#allocation2 + $0x5a8] sm:$0xff] %v2483
      %2496 = vst [vmem:[#allocation2 + $0x5b0] sm:$0xff] %v2482
      %2497 = vst [vmem:[#allocation2 + $0x5b8] sm:$0xff] %v2489
      %2498 = vrot.lane.b32.xlu0 %v1778, 27
      %v2499 = vpop.permute.xlu0 %2498
      %2500 = vrot.lane.b32.xlu0 %v1779, 27
      %v2501 = vpop.permute.xlu0 %2500
      %2502 = vrot.lane.b32.xlu0 %v1780, 27
      %v2503 = vpop.permute.xlu0 %2502
      %2504 = vrot.lane.b32.xlu0 %v1781, 27
      %v2505 = vpop.permute.xlu0 %2504
      %2506 = vrot.lane.b32.xlu0 %v1782, 27
      %v2507 = vpop.permute.xlu0 %2506
      %2508 = vrot.lane.b32.xlu0 %v1783, 27
      %v2509 = vpop.permute.xlu0 %2508
      %2510 = vrot.lane.b32.xlu0 %v1784, 27
      %v2511 = vpop.permute.xlu0 %2510
      %2512 = vrot.lane.b32.xlu0 %v1785, 27
      %v2513 = vpop.permute.xlu0 %2512
      %v2514 = vsel %vm1067, %v2511, %v2513
      %v2515 = vsel %vm1067, %v2509, %v2511
      %v2516 = vsel %vm1067, %v2507, %v2509
      %v2517 = vsel %vm1067, %v2505, %v2507
      %v2518 = vsel %vm1067, %v2503, %v2505
      %v2519 = vsel %vm1067, %v2501, %v2503
      %v2520 = vsel %vm1067, %v2499, %v2501
      %v2521 = vsel %vm1067, %v2513, %v2499
      %2522 = vst [vmem:[#allocation2 + $0x5c0] sm:$0xff] %v2520
      %2523 = vst [vmem:[#allocation2 + $0x5c8] sm:$0xff] %v2519
      %2524 = vst [vmem:[#allocation2 + $0x5d0] sm:$0xff] %v2518
      %2525 = vst [vmem:[#allocation2 + $0x5d8] sm:$0xff] %v2517
      %2526 = vst [vmem:[#allocation2 + $0x5e0] sm:$0xff] %v2516
      %2527 = vst [vmem:[#allocation2 + $0x5e8] sm:$0xff] %v2515
      %2528 = vst [vmem:[#allocation2 + $0x5f0] sm:$0xff] %v2514
      %2529 = vst [vmem:[#allocation2 + $0x5f8] sm:$0xff] %v2521
      %2530 = vrot.lane.b32.xlu0 %v1778, 19
      %v2531 = vpop.permute.xlu0 %2530
      %2532 = vrot.lane.b32.xlu0 %v1779, 19
      %v2533 = vpop.permute.xlu0 %2532
      %2534 = vrot.lane.b32.xlu0 %v1780, 19
      %v2535 = vpop.permute.xlu0 %2534
      %2536 = vrot.lane.b32.xlu0 %v1781, 19
      %v2537 = vpop.permute.xlu0 %2536
      %2538 = vrot.lane.b32.xlu0 %v1782, 19
      %v2539 = vpop.permute.xlu0 %2538
      %2540 = vrot.lane.b32.xlu0 %v1783, 19
      %v2541 = vpop.permute.xlu0 %2540
      %2542 = vrot.lane.b32.xlu0 %v1784, 19
      %v2543 = vpop.permute.xlu0 %2542
      %2544 = vrot.lane.b32.xlu0 %v1785, 19
      %v2545 = vpop.permute.xlu0 %2544
      %v2546 = vsel %vm1100, %v2543, %v2545
      %v2547 = vsel %vm1100, %v2541, %v2543
      %v2548 = vsel %vm1100, %v2539, %v2541
      %v2549 = vsel %vm1100, %v2537, %v2539
      %v2550 = vsel %vm1100, %v2535, %v2537
      %v2551 = vsel %vm1100, %v2533, %v2535
      %v2552 = vsel %vm1100, %v2531, %v2533
      %v2553 = vsel %vm1100, %v2545, %v2531
      %2554 = vst [vmem:[#allocation2 + $0x600] sm:$0xff] %v2552
      %2555 = vst [vmem:[#allocation2 + $0x608] sm:$0xff] %v2551
      %2556 = vst [vmem:[#allocation2 + $0x610] sm:$0xff] %v2550
      %2557 = vst [vmem:[#allocation2 + $0x618] sm:$0xff] %v2549
      %2558 = vst [vmem:[#allocation2 + $0x620] sm:$0xff] %v2548
      %2559 = vst [vmem:[#allocation2 + $0x628] sm:$0xff] %v2547
      %2560 = vst [vmem:[#allocation2 + $0x630] sm:$0xff] %v2546
      %2561 = vst [vmem:[#allocation2 + $0x638] sm:$0xff] %v2553
      %2562 = vrot.lane.b32.xlu0 %v1778, 18
      %v2563 = vpop.permute.xlu0 %2562
      %2564 = vrot.lane.b32.xlu0 %v1779, 18
      %v2565 = vpop.permute.xlu0 %2564
      %2566 = vrot.lane.b32.xlu0 %v1780, 18
      %v2567 = vpop.permute.xlu0 %2566
      %2568 = vrot.lane.b32.xlu0 %v1781, 18
      %v2569 = vpop.permute.xlu0 %2568
      %2570 = vrot.lane.b32.xlu0 %v1782, 18
      %v2571 = vpop.permute.xlu0 %2570
      %2572 = vrot.lane.b32.xlu0 %v1783, 18
      %v2573 = vpop.permute.xlu0 %2572
      %2574 = vrot.lane.b32.xlu0 %v1784, 18
      %v2575 = vpop.permute.xlu0 %2574
      %2576 = vrot.lane.b32.xlu0 %v1785, 18
      %v2577 = vpop.permute.xlu0 %2576
      %v2578 = vsel %vm1133, %v2575, %v2577
      %v2579 = vsel %vm1133, %v2573, %v2575
      %v2580 = vsel %vm1133, %v2571, %v2573
      %v2581 = vsel %vm1133, %v2569, %v2571
      %v2582 = vsel %vm1133, %v2567, %v2569
      %v2583 = vsel %vm1133, %v2565, %v2567
      %v2584 = vsel %vm1133, %v2563, %v2565
      %v2585 = vsel %vm1133, %v2577, %v2563
      %2586 = vst [vmem:[#allocation2 + $0x640] sm:$0xff] %v2584
      %2587 = vst [vmem:[#allocation2 + $0x648] sm:$0xff] %v2583
      %2588 = vst [vmem:[#allocation2 + $0x650] sm:$0xff] %v2582
      %2589 = vst [vmem:[#allocation2 + $0x658] sm:$0xff] %v2581
      %2590 = vst [vmem:[#allocation2 + $0x660] sm:$0xff] %v2580
      %2591 = vst [vmem:[#allocation2 + $0x668] sm:$0xff] %v2579
      %2592 = vst [vmem:[#allocation2 + $0x670] sm:$0xff] %v2578
      %2593 = vst [vmem:[#allocation2 + $0x678] sm:$0xff] %v2585
      %2594 = vrot.lane.b32.xlu0 %v1778, 17
      %v2595 = vpop.permute.xlu0 %2594
      %2596 = vrot.lane.b32.xlu0 %v1779, 17
      %v2597 = vpop.permute.xlu0 %2596
      %2598 = vrot.lane.b32.xlu0 %v1780, 17
      %v2599 = vpop.permute.xlu0 %2598
      %2600 = vrot.lane.b32.xlu0 %v1781, 17
      %v2601 = vpop.permute.xlu0 %2600
      %2602 = vrot.lane.b32.xlu0 %v1782, 17
      %v2603 = vpop.permute.xlu0 %2602
      %2604 = vrot.lane.b32.xlu0 %v1783, 17
      %v2605 = vpop.permute.xlu0 %2604
      %2606 = vrot.lane.b32.xlu0 %v1784, 17
      %v2607 = vpop.permute.xlu0 %2606
      %2608 = vrot.lane.b32.xlu0 %v1785, 17
      %v2609 = vpop.permute.xlu0 %2608
      %v2610 = vsel %vm1166, %v2607, %v2609
      %v2611 = vsel %vm1166, %v2605, %v2607
      %v2612 = vsel %vm1166, %v2603, %v2605
      %v2613 = vsel %vm1166, %v2601, %v2603
      %v2614 = vsel %vm1166, %v2599, %v2601
      %v2615 = vsel %vm1166, %v2597, %v2599
      %v2616 = vsel %vm1166, %v2595, %v2597
      %v2617 = vsel %vm1166, %v2609, %v2595
      %2618 = vst [vmem:[#allocation2 + $0x680] sm:$0xff] %v2616
      %2619 = vst [vmem:[#allocation2 + $0x688] sm:$0xff] %v2615
      %2620 = vst [vmem:[#allocation2 + $0x690] sm:$0xff] %v2614
      %2621 = vst [vmem:[#allocation2 + $0x698] sm:$0xff] %v2613
      %2622 = vst [vmem:[#allocation2 + $0x6a0] sm:$0xff] %v2612
      %2623 = vst [vmem:[#allocation2 + $0x6a8] sm:$0xff] %v2611
      %2624 = vst [vmem:[#allocation2 + $0x6b0] sm:$0xff] %v2610
      %2625 = vst [vmem:[#allocation2 + $0x6b8] sm:$0xff] %v2617
      %v2626 = vld [vmem:[%s2] sm:$0xff]
      %v2627 = vld [vmem:[%s2 + $0x8] sm:$0xff]
      %v2628 = vld [vmem:[#allocation2] sm:$0xff]
      %v2629 = vld [vmem:[#allocation2 + $0x8] sm:$0xff]
      %v2630 = vld [vmem:[#allocation2 + $0x10] sm:$0xff]
      %v2631 = vld [vmem:[#allocation2 + $0x18] sm:$0xff]
      %v2632 = vld [vmem:[#allocation2 + $0x20] sm:$0xff]
      %v2633 = vld [vmem:[#allocation2 + $0x28] sm:$0xff]
      %v2634 = vld [vmem:[#allocation2 + $0x30] sm:$0xff]
      %v2635 = vld [vmem:[#allocation2 + $0x38] sm:$0xff]
      %v2636 = vld [vmem:[#allocation2 + $0x40] sm:$0xff]
      %v2637 = vld [vmem:[#allocation2 + $0x48] sm:$0xff]
      %v2638 = vld [vmem:[#allocation2 + $0x50] sm:$0xff]
      %v2639 = vld [vmem:[#allocation2 + $0x58] sm:$0xff]
      %v2640 = vld [vmem:[#allocation2 + $0x60] sm:$0xff]
      %v2641 = vld [vmem:[#allocation2 + $0x68] sm:$0xff]
      %v2642 = vld [vmem:[#allocation2 + $0x70] sm:$0xff]
      %v2643 = vld [vmem:[#allocation2 + $0x78] sm:$0xff]
      %v2644 = vld [vmem:[#allocation2 + $0x80] sm:$0xff]
      %v2645 = vld [vmem:[#allocation2 + $0x88] sm:$0xff]
      %v2646 = vld [vmem:[#allocation2 + $0x90] sm:$0xff]
      %v2647 = vld [vmem:[#allocation2 + $0x98] sm:$0xff]
      %v2648 = vld [vmem:[#allocation2 + $0xa0] sm:$0xff]
      %v2649 = vld [vmem:[#allocation2 + $0xa8] sm:$0xff]
      %v2650 = vld [vmem:[#allocation2 + $0xb0] sm:$0xff]
      %v2651 = vld [vmem:[#allocation2 + $0xb8] sm:$0xff]
      %v2652 = vld [vmem:[#allocation2 + $0xc0] sm:$0xff]
      %v2653 = vld [vmem:[#allocation2 + $0xc8] sm:$0xff]
      %v2654 = vld [vmem:[#allocation2 + $0xd0] sm:$0xff]
      %v2655 = vld [vmem:[#allocation2 + $0xd8] sm:$0xff]
      %v2656 = vld [vmem:[#allocation2 + $0xe0] sm:$0xff]
      %v2657 = vld [vmem:[#allocation2 + $0xe8] sm:$0xff]
      %v2658 = vld [vmem:[#allocation2 + $0xf0] sm:$0xff]
      %v2659 = vld [vmem:[#allocation2 + $0xf8] sm:$0xff]
      %v2660 = vld [vmem:[#allocation2 + $0x100] sm:$0xff]
      %v2661 = vld [vmem:[#allocation2 + $0x108] sm:$0xff]
      %v2662 = vld [vmem:[#allocation2 + $0x110] sm:$0xff]
      %v2663 = vld [vmem:[#allocation2 + $0x118] sm:$0xff]
      %v2664 = vld [vmem:[#allocation2 + $0x120] sm:$0xff]
      %v2665 = vld [vmem:[#allocation2 + $0x128] sm:$0xff]
      %v2666 = vld [vmem:[#allocation2 + $0x130] sm:$0xff]
      %v2667 = vld [vmem:[#allocation2 + $0x138] sm:$0xff]
      %v2668 = vld [vmem:[#allocation2 + $0x140] sm:$0xff]
      %v2669 = vld [vmem:[#allocation2 + $0x148] sm:$0xff]
      %v2670 = vld [vmem:[#allocation2 + $0x150] sm:$0xff]
      %v2671 = vld [vmem:[#allocation2 + $0x158] sm:$0xff]
      %v2672 = vld [vmem:[#allocation2 + $0x160] sm:$0xff]
      %v2673 = vld [vmem:[#allocation2 + $0x168] sm:$0xff]
      %v2674 = vld [vmem:[#allocation2 + $0x170] sm:$0xff]
      %v2675 = vld [vmem:[#allocation2 + $0x178] sm:$0xff]
      %v2676 = vld [vmem:[#allocation2 + $0x180] sm:$0xff]
      %v2677 = vld [vmem:[#allocation2 + $0x188] sm:$0xff]
      %v2678 = vld [vmem:[#allocation2 + $0x190] sm:$0xff]
      %v2679 = vld [vmem:[#allocation2 + $0x198] sm:$0xff]
      %v2680 = vld [vmem:[#allocation2 + $0x1a0] sm:$0xff]
      %v2681 = vld [vmem:[#allocation2 + $0x1a8] sm:$0xff]
      %v2682 = vld [vmem:[#allocation2 + $0x1b0] sm:$0xff]
      %v2683 = vld [vmem:[#allocation2 + $0x1b8] sm:$0xff]
      %v2684 = vld [vmem:[#allocation2 + $0x1c0] sm:$0xff]
      %v2685 = vld [vmem:[#allocation2 + $0x1c8] sm:$0xff]
      %v2686 = vld [vmem:[#allocation2 + $0x1d0] sm:$0xff]
      %v2687 = vld [vmem:[#allocation2 + $0x1d8] sm:$0xff]
      %v2688 = vld [vmem:[#allocation2 + $0x1e0] sm:$0xff]
      %v2689 = vld [vmem:[#allocation2 + $0x1e8] sm:$0xff]
      %v2690 = vld [vmem:[#allocation2 + $0x1f0] sm:$0xff]
      %v2691 = vld [vmem:[#allocation2 + $0x1f8] sm:$0xff]
      %v2692 = vld [vmem:[#allocation2 + $0x200] sm:$0xff]
      %v2693 = vld [vmem:[#allocation2 + $0x208] sm:$0xff]
      %v2694 = vld [vmem:[#allocation2 + $0x210] sm:$0xff]
      %v2695 = vld [vmem:[#allocation2 + $0x218] sm:$0xff]
      %v2696 = vld [vmem:[#allocation2 + $0x220] sm:$0xff]
      %v2697 = vld [vmem:[#allocation2 + $0x228] sm:$0xff]
      %v2698 = vld [vmem:[#allocation2 + $0x230] sm:$0xff]
      %v2699 = vld [vmem:[#allocation2 + $0x238] sm:$0xff]
      %v2700 = vld [vmem:[#allocation2 + $0x240] sm:$0xff]
      %v2701 = vld [vmem:[#allocation2 + $0x248] sm:$0xff]
      %v2702 = vld [vmem:[#allocation2 + $0x250] sm:$0xff]
      %v2703 = vld [vmem:[#allocation2 + $0x258] sm:$0xff]
      %v2704 = vld [vmem:[#allocation2 + $0x260] sm:$0xff]
      %v2705 = vld [vmem:[#allocation2 + $0x268] sm:$0xff]
      %v2706 = vld [vmem:[#allocation2 + $0x270] sm:$0xff]
      %v2707 = vld [vmem:[#allocation2 + $0x278] sm:$0xff]
      %v2708 = vld [vmem:[#allocation2 + $0x280] sm:$0xff]
      %v2709 = vld [vmem:[#allocation2 + $0x288] sm:$0xff]
      %v2710 = vld [vmem:[#allocation2 + $0x290] sm:$0xff]
      %v2711 = vld [vmem:[#allocation2 + $0x298] sm:$0xff]
      %v2712 = vld [vmem:[#allocation2 + $0x2a0] sm:$0xff]
      %v2713 = vld [vmem:[#allocation2 + $0x2a8] sm:$0xff]
      %v2714 = vld [vmem:[#allocation2 + $0x2b0] sm:$0xff]
      %v2715 = vld [vmem:[#allocation2 + $0x2b8] sm:$0xff]
      %v2716 = vld [vmem:[#allocation2 + $0x2c0] sm:$0xff]
      %v2717 = vld [vmem:[#allocation2 + $0x2c8] sm:$0xff]
      %v2718 = vld [vmem:[#allocation2 + $0x2d0] sm:$0xff]
      %v2719 = vld [vmem:[#allocation2 + $0x2d8] sm:$0xff]
      %v2720 = vld [vmem:[#allocation2 + $0x2e0] sm:$0xff]
      %v2721 = vld [vmem:[#allocation2 + $0x2e8] sm:$0xff]
      %v2722 = vld [vmem:[#allocation2 + $0x2f0] sm:$0xff]
      %v2723 = vld [vmem:[#allocation2 + $0x2f8] sm:$0xff]
      %v2724 = vld [vmem:[#allocation2 + $0x300] sm:$0xff]
      %v2725 = vld [vmem:[#allocation2 + $0x308] sm:$0xff]
      %v2726 = vld [vmem:[#allocation2 + $0x310] sm:$0xff]
      %v2727 = vld [vmem:[#allocation2 + $0x318] sm:$0xff]
      %v2728 = vld [vmem:[#allocation2 + $0x320] sm:$0xff]
      %v2729 = vld [vmem:[#allocation2 + $0x328] sm:$0xff]
      %v2730 = vld [vmem:[#allocation2 + $0x330] sm:$0xff]
      %v2731 = vld [vmem:[#allocation2 + $0x338] sm:$0xff]
      %v2732 = vld [vmem:[#allocation2 + $0x340] sm:$0xff]
      %v2733 = vld [vmem:[#allocation2 + $0x348] sm:$0xff]
      %v2734 = vld [vmem:[#allocation2 + $0x350] sm:$0xff]
      %v2735 = vld [vmem:[#allocation2 + $0x358] sm:$0xff]
      %v2736 = vld [vmem:[#allocation2 + $0x360] sm:$0xff]
      %v2737 = vld [vmem:[#allocation2 + $0x368] sm:$0xff]
      %v2738 = vld [vmem:[#allocation2 + $0x370] sm:$0xff]
      %v2739 = vld [vmem:[#allocation2 + $0x378] sm:$0xff]
      %v2740 = vld [vmem:[#allocation2 + $0x380] sm:$0xff]
      %v2741 = vld [vmem:[#allocation2 + $0x388] sm:$0xff]
      %v2742 = vld [vmem:[#allocation2 + $0x390] sm:$0xff]
      %v2743 = vld [vmem:[#allocation2 + $0x398] sm:$0xff]
      %v2744 = vld [vmem:[#allocation2 + $0x3a0] sm:$0xff]
      %v2745 = vld [vmem:[#allocation2 + $0x3a8] sm:$0xff]
      %v2746 = vld [vmem:[#allocation2 + $0x3b0] sm:$0xff]
      %v2747 = vld [vmem:[#allocation2 + $0x3b8] sm:$0xff]
      %v2748 = vld [vmem:[#allocation2 + $0x3c0] sm:$0xff]
      %v2749 = vld [vmem:[#allocation2 + $0x3c8] sm:$0xff]
      %v2750 = vld [vmem:[#allocation2 + $0x3d0] sm:$0xff]
      %v2751 = vld [vmem:[#allocation2 + $0x3d8] sm:$0xff]
      %v2752 = vld [vmem:[#allocation2 + $0x3e0] sm:$0xff]
      %v2753 = vld [vmem:[#allocation2 + $0x3e8] sm:$0xff]
      %v2754 = vld [vmem:[#allocation2 + $0x3f0] sm:$0xff]
      %v2755 = vld [vmem:[#allocation2 + $0x3f8] sm:$0xff]
      %v2756 = vld [vmem:[#allocation2 + $0x400] sm:$0xff]
      %v2757 = vld [vmem:[#allocation2 + $0x408] sm:$0xff]
      %v2758 = vld [vmem:[#allocation2 + $0x410] sm:$0xff]
      %v2759 = vld [vmem:[#allocation2 + $0x418] sm:$0xff]
      %v2760 = vld [vmem:[#allocation2 + $0x420] sm:$0xff]
      %v2761 = vld [vmem:[#allocation2 + $0x428] sm:$0xff]
      %v2762 = vld [vmem:[#allocation2 + $0x430] sm:$0xff]
      %v2763 = vld [vmem:[#allocation2 + $0x438] sm:$0xff]
      %v2764 = vld [vmem:[#allocation2 + $0x440] sm:$0xff]
      %v2765 = vld [vmem:[#allocation2 + $0x448] sm:$0xff]
      %v2766 = vld [vmem:[#allocation2 + $0x450] sm:$0xff]
      %v2767 = vld [vmem:[#allocation2 + $0x458] sm:$0xff]
      %v2768 = vld [vmem:[#allocation2 + $0x460] sm:$0xff]
      %v2769 = vld [vmem:[#allocation2 + $0x468] sm:$0xff]
      %v2770 = vld [vmem:[#allocation2 + $0x470] sm:$0xff]
      %v2771 = vld [vmem:[#allocation2 + $0x478] sm:$0xff]
      %v2772 = vld [vmem:[#allocation2 + $0x480] sm:$0xff]
      %v2773 = vld [vmem:[#allocation2 + $0x488] sm:$0xff]
      %v2774 = vld [vmem:[#allocation2 + $0x490] sm:$0xff]
      %v2775 = vld [vmem:[#allocation2 + $0x498] sm:$0xff]
      %v2776 = vld [vmem:[#allocation2 + $0x4a0] sm:$0xff]
      %v2777 = vld [vmem:[#allocation2 + $0x4a8] sm:$0xff]
      %v2778 = vld [vmem:[#allocation2 + $0x4b0] sm:$0xff]
      %v2779 = vld [vmem:[#allocation2 + $0x4b8] sm:$0xff]
      %v2780 = vld [vmem:[#allocation2 + $0x4c0] sm:$0xff]
      %v2781 = vld [vmem:[#allocation2 + $0x4c8] sm:$0xff]
      %v2782 = vld [vmem:[#allocation2 + $0x4d0] sm:$0xff]
      %v2783 = vld [vmem:[#allocation2 + $0x4d8] sm:$0xff]
      %v2784 = vld [vmem:[#allocation2 + $0x4e0] sm:$0xff]
      %v2785 = vld [vmem:[#allocation2 + $0x4e8] sm:$0xff]
      %v2786 = vld [vmem:[#allocation2 + $0x4f0] sm:$0xff]
      %v2787 = vld [vmem:[#allocation2 + $0x4f8] sm:$0xff]
      %v2788 = vld [vmem:[#allocation2 + $0x500] sm:$0xff]
      %v2789 = vld [vmem:[#allocation2 + $0x508] sm:$0xff]
      %v2790 = vld [vmem:[#allocation2 + $0x510] sm:$0xff]
      %v2791 = vld [vmem:[#allocation2 + $0x518] sm:$0xff]
      %v2792 = vld [vmem:[#allocation2 + $0x520] sm:$0xff]
      %v2793 = vld [vmem:[#allocation2 + $0x528] sm:$0xff]
      %v2794 = vld [vmem:[#allocation2 + $0x530] sm:$0xff]
      %v2795 = vld [vmem:[#allocation2 + $0x538] sm:$0xff]
      %v2796 = vld [vmem:[#allocation2 + $0x540] sm:$0xff]
      %v2797 = vld [vmem:[#allocation2 + $0x548] sm:$0xff]
      %v2798 = vld [vmem:[#allocation2 + $0x550] sm:$0xff]
      %v2799 = vld [vmem:[#allocation2 + $0x558] sm:$0xff]
      %v2800 = vld [vmem:[#allocation2 + $0x560] sm:$0xff]
      %v2801 = vld [vmem:[#allocation2 + $0x568] sm:$0xff]
      %v2802 = vld [vmem:[#allocation2 + $0x570] sm:$0xff]
      %v2803 = vld [vmem:[#allocation2 + $0x578] sm:$0xff]
      %v2804 = vld [vmem:[#allocation2 + $0x580] sm:$0xff]
      %v2805 = vld [vmem:[#allocation2 + $0x588] sm:$0xff]
      %v2806 = vld [vmem:[#allocation2 + $0x590] sm:$0xff]
      %v2807 = vld [vmem:[#allocation2 + $0x598] sm:$0xff]
      %v2808 = vld [vmem:[#allocation2 + $0x5a0] sm:$0xff]
      %v2809 = vld [vmem:[#allocation2 + $0x5a8] sm:$0xff]
      %v2810 = vld [vmem:[#allocation2 + $0x5b0] sm:$0xff]
      %v2811 = vld [vmem:[#allocation2 + $0x5b8] sm:$0xff]
      %v2812 = vld [vmem:[#allocation2 + $0x5c0] sm:$0xff]
      %v2813 = vld [vmem:[#allocation2 + $0x5c8] sm:$0xff]
      %v2814 = vld [vmem:[#allocation2 + $0x5d0] sm:$0xff]
      %v2815 = vld [vmem:[#allocation2 + $0x5d8] sm:$0xff]
      %v2816 = vld [vmem:[#allocation2 + $0x5e0] sm:$0xff]
      %v2817 = vld [vmem:[#allocation2 + $0x5e8] sm:$0xff]
      %v2818 = vld [vmem:[#allocation2 + $0x5f0] sm:$0xff]
      %v2819 = vld [vmem:[#allocation2 + $0x5f8] sm:$0xff]
      %v2820 = vld [vmem:[#allocation2 + $0x600] sm:$0xff]
      %v2821 = vld [vmem:[#allocation2 + $0x608] sm:$0xff]
      %v2822 = vld [vmem:[#allocation2 + $0x610] sm:$0xff]
      %v2823 = vld [vmem:[#allocation2 + $0x618] sm:$0xff]
      %v2824 = vld [vmem:[#allocation2 + $0x620] sm:$0xff]
      %v2825 = vld [vmem:[#allocation2 + $0x628] sm:$0xff]
      %v2826 = vld [vmem:[#allocation2 + $0x630] sm:$0xff]
      %v2827 = vld [vmem:[#allocation2 + $0x638] sm:$0xff]
      %v2828 = vld [vmem:[#allocation2 + $0x640] sm:$0xff]
      %v2829 = vld [vmem:[#allocation2 + $0x648] sm:$0xff]
      %v2830 = vld [vmem:[#allocation2 + $0x650] sm:$0xff]
      %v2831 = vld [vmem:[#allocation2 + $0x658] sm:$0xff]
      %v2832 = vld [vmem:[#allocation2 + $0x660] sm:$0xff]
      %v2833 = vld [vmem:[#allocation2 + $0x668] sm:$0xff]
      %v2834 = vld [vmem:[#allocation2 + $0x670] sm:$0xff]
      %v2835 = vld [vmem:[#allocation2 + $0x678] sm:$0xff]
      %v2836 = vld [vmem:[#allocation2 + $0x680] sm:$0xff]
      %v2837 = vld [vmem:[#allocation2 + $0x688] sm:$0xff]
      %v2838 = vld [vmem:[#allocation2 + $0x690] sm:$0xff]
      %v2839 = vld [vmem:[#allocation2 + $0x698] sm:$0xff]
      %v2840 = vld [vmem:[#allocation2 + $0x6a0] sm:$0xff]
      %v2841 = vld [vmem:[#allocation2 + $0x6a8] sm:$0xff]
      %v2842 = vld [vmem:[#allocation2 + $0x6b0] sm:$0xff]
      %v2843 = vld [vmem:[#allocation2 + $0x6b8] sm:$0xff]
      %v2845 = vsel %vm1401, %v2627, 0
      %2847 = vmatpush.msra.mxu0 %v2748
      %2848 = vmatpush.msra.mxu0 %v2740
      %2849 = vmatpush.msra.mxu0 %v2732
      %2850 = vmatpush.msra.mxu0 %v2724
      %2851 = vmatpush.msra.mxu0 %v2716
      %2852 = vmatpush.msra.mxu0 %v2708
      %2853 = vmatpush.msra.mxu0 %v2700
      %2854 = vmatpush.msra.mxu0 %v2692
      %2855 = vmatpush.msra.mxu0 %v2684
      %2856 = vmatpush.msra.mxu0 %v2676
      %2857 = vmatpush.msra.mxu0 %v2668
      %2858 = vmatpush.msra.mxu0 %v2660
      %2859 = vmatpush.msra.mxu0 %v2652
      %2860 = vmatpush.msra.mxu0 %v2644
      %2861 = vmatpush.msra.mxu0 %v2636
      %2862 = vmatpush.msra.mxu0 %v2628
      %2863 = vmatmul.f32.gmra.mxu0 %v2626
      %v2864 = vpop.f32.mrf.mxu0
      %v2865 = vadd.f32 0.0, %v2864
      %2866 = vdwg.mxu0
      %2867 = vmatpush.msra.mxu0 0.0
      %2868 = vmatpush.msra.mxu0 0.0
      %2869 = vmatpush.msra.mxu0 0.0
      %2870 = vmatpush.msra.mxu0 0.0
      %2871 = vmatpush.msra.mxu0 0.0
      %2872 = vmatpush.msra.mxu0 %v2836
      %2873 = vmatpush.msra.mxu0 %v2828
      %2874 = vmatpush.msra.mxu0 %v2820
      %2875 = vmatpush.msra.mxu0 %v2812
      %2876 = vmatpush.msra.mxu0 %v2804
      %2877 = vmatpush.msra.mxu0 %v2796
      %2878 = vmatpush.msra.mxu0 %v2788
      %2879 = vmatpush.msra.mxu0 %v2780
      %2880 = vmatpush.msra.mxu0 %v2772
      %2881 = vmatpush.msra.mxu0 %v2764
      %2882 = vmatpush.msra.mxu0 %v2756
      %2883 = vmatmul.f32.gmra.mxu0 %v2845
      %v2884 = vpop.f32.mrf.mxu0
      %v2885 = vadd.f32 %v2865, %v2884
      %2886 = vdwg.mxu0
      %2887 = vmatpush.msra.mxu0 %v2749
      %2888 = vmatpush.msra.mxu0 %v2741
      %2889 = vmatpush.msra.mxu0 %v2733
      %2890 = vmatpush.msra.mxu0 %v2725
      %2891 = vmatpush.msra.mxu0 %v2717
      %2892 = vmatpush.msra.mxu0 %v2709
      %2893 = vmatpush.msra.mxu0 %v2701
      %2894 = vmatpush.msra.mxu0 %v2693
      %2895 = vmatpush.msra.mxu0 %v2685
      %2896 = vmatpush.msra.mxu0 %v2677
      %2897 = vmatpush.msra.mxu0 %v2669
      %2898 = vmatpush.msra.mxu0 %v2661
      %2899 = vmatpush.msra.mxu0 %v2653
      %2900 = vmatpush.msra.mxu0 %v2645
      %2901 = vmatpush.msra.mxu0 %v2637
      %2902 = vmatpush.msra.mxu0 %v2629
      %2903 = vmatmul.f32.gmra.mxu0 %v2626
      %v2904 = vpop.f32.mrf.mxu0
      %v2905 = vadd.f32 0.0, %v2904
      %2906 = vdwg.mxu0
      %2907 = vmatpush.msra.mxu0 0.0
      %2908 = vmatpush.msra.mxu0 0.0
      %2909 = vmatpush.msra.mxu0 0.0
      %2910 = vmatpush.msra.mxu0 0.0
      %2911 = vmatpush.msra.mxu0 0.0
      %2912 = vmatpush.msra.mxu0 %v2837
      %2913 = vmatpush.msra.mxu0 %v2829
      %2914 = vmatpush.msra.mxu0 %v2821
      %2915 = vmatpush.msra.mxu0 %v2813
      %2916 = vmatpush.msra.mxu0 %v2805
      %2917 = vmatpush.msra.mxu0 %v2797
      %2918 = vmatpush.msra.mxu0 %v2789
      %2919 = vmatpush.msra.mxu0 %v2781
      %2920 = vmatpush.msra.mxu0 %v2773
      %2921 = vmatpush.msra.mxu0 %v2765
      %2922 = vmatpush.msra.mxu0 %v2757
      %2923 = vmatmul.f32.gmra.mxu0 %v2845
      %v2924 = vpop.f32.mrf.mxu0
      %v2925 = vadd.f32 %v2905, %v2924
      %2926 = vdwg.mxu0
      %2927 = vmatpush.msra.mxu0 %v2750
      %2928 = vmatpush.msra.mxu0 %v2742
      %2929 = vmatpush.msra.mxu0 %v2734
      %2930 = vmatpush.msra.mxu0 %v2726
      %2931 = vmatpush.msra.mxu0 %v2718
      %2932 = vmatpush.msra.mxu0 %v2710
      %2933 = vmatpush.msra.mxu0 %v2702
      %2934 = vmatpush.msra.mxu0 %v2694
      %2935 = vmatpush.msra.mxu0 %v2686
      %2936 = vmatpush.msra.mxu0 %v2678
      %2937 = vmatpush.msra.mxu0 %v2670
      %2938 = vmatpush.msra.mxu0 %v2662
      %2939 = vmatpush.msra.mxu0 %v2654
      %2940 = vmatpush.msra.mxu0 %v2646
      %2941 = vmatpush.msra.mxu0 %v2638
      %2942 = vmatpush.msra.mxu0 %v2630
      %2943 = vmatmul.f32.gmra.mxu0 %v2626
      %v2944 = vpop.f32.mrf.mxu0
      %v2945 = vadd.f32 0.0, %v2944
      %2946 = vdwg.mxu0
      %2947 = vmatpush.msra.mxu0 0.0
      %2948 = vmatpush.msra.mxu0 0.0
      %2949 = vmatpush.msra.mxu0 0.0
      %2950 = vmatpush.msra.mxu0 0.0
      %2951 = vmatpush.msra.mxu0 0.0
      %2952 = vmatpush.msra.mxu0 %v2838
      %2953 = vmatpush.msra.mxu0 %v2830
      %2954 = vmatpush.msra.mxu0 %v2822
      %2955 = vmatpush.msra.mxu0 %v2814
      %2956 = vmatpush.msra.mxu0 %v2806
      %2957 = vmatpush.msra.mxu0 %v2798
      %2958 = vmatpush.msra.mxu0 %v2790
      %2959 = vmatpush.msra.mxu0 %v2782
      %2960 = vmatpush.msra.mxu0 %v2774
      %2961 = vmatpush.msra.mxu0 %v2766
      %2962 = vmatpush.msra.mxu0 %v2758
      %2963 = vmatmul.f32.gmra.mxu0 %v2845
      %v2964 = vpop.f32.mrf.mxu0
      %v2965 = vadd.f32 %v2945, %v2964
      %2966 = vdwg.mxu0
      %2967 = vmatpush.msra.mxu0 %v2751
      %2968 = vmatpush.msra.mxu0 %v2743
      %2969 = vmatpush.msra.mxu0 %v2735
      %2970 = vmatpush.msra.mxu0 %v2727
      %2971 = vmatpush.msra.mxu0 %v2719
      %2972 = vmatpush.msra.mxu0 %v2711
      %2973 = vmatpush.msra.mxu0 %v2703
      %2974 = vmatpush.msra.mxu0 %v2695
      %2975 = vmatpush.msra.mxu0 %v2687
      %2976 = vmatpush.msra.mxu0 %v2679
      %2977 = vmatpush.msra.mxu0 %v2671
      %2978 = vmatpush.msra.mxu0 %v2663
      %2979 = vmatpush.msra.mxu0 %v2655
      %2980 = vmatpush.msra.mxu0 %v2647
      %2981 = vmatpush.msra.mxu0 %v2639
      %2982 = vmatpush.msra.mxu0 %v2631
      %2983 = vmatmul.f32.gmra.mxu0 %v2626
      %v2984 = vpop.f32.mrf.mxu0
      %v2985 = vadd.f32 0.0, %v2984
      %2986 = vdwg.mxu0
      %2987 = vmatpush.msra.mxu0 0.0
      %2988 = vmatpush.msra.mxu0 0.0
      %2989 = vmatpush.msra.mxu0 0.0
      %2990 = vmatpush.msra.mxu0 0.0
      %2991 = vmatpush.msra.mxu0 0.0
      %2992 = vmatpush.msra.mxu0 %v2839
      %2993 = vmatpush.msra.mxu0 %v2831
      %2994 = vmatpush.msra.mxu0 %v2823
      %2995 = vmatpush.msra.mxu0 %v2815
      %2996 = vmatpush.msra.mxu0 %v2807
      %2997 = vmatpush.msra.mxu0 %v2799
      %2998 = vmatpush.msra.mxu0 %v2791
      %2999 = vmatpush.msra.mxu0 %v2783
      %3000 = vmatpush.msra.mxu0 %v2775
      %3001 = vmatpush.msra.mxu0 %v2767
      %3002 = vmatpush.msra.mxu0 %v2759
      %3003 = vmatmul.f32.gmra.mxu0 %v2845
      %v3004 = vpop.f32.mrf.mxu0
      %v3005 = vadd.f32 %v2985, %v3004
      %3006 = vdwg.mxu0
      %3007 = vmatpush.msra.mxu0 %v2752
      %3008 = vmatpush.msra.mxu0 %v2744
      %3009 = vmatpush.msra.mxu0 %v2736
      %3010 = vmatpush.msra.mxu0 %v2728
      %3011 = vmatpush.msra.mxu0 %v2720
      %3012 = vmatpush.msra.mxu0 %v2712
      %3013 = vmatpush.msra.mxu0 %v2704
      %3014 = vmatpush.msra.mxu0 %v2696
      %3015 = vmatpush.msra.mxu0 %v2688
      %3016 = vmatpush.msra.mxu0 %v2680
      %3017 = vmatpush.msra.mxu0 %v2672
      %3018 = vmatpush.msra.mxu0 %v2664
      %3019 = vmatpush.msra.mxu0 %v2656
      %3020 = vmatpush.msra.mxu0 %v2648
      %3021 = vmatpush.msra.mxu0 %v2640
      %3022 = vmatpush.msra.mxu0 %v2632
      %3023 = vmatmul.f32.gmra.mxu0 %v2626
      %v3024 = vpop.f32.mrf.mxu0
      %v3025 = vadd.f32 0.0, %v3024
      %3026 = vdwg.mxu0
      %3027 = vmatpush.msra.mxu0 0.0
      %3028 = vmatpush.msra.mxu0 0.0
      %3029 = vmatpush.msra.mxu0 0.0
      %3030 = vmatpush.msra.mxu0 0.0
      %3031 = vmatpush.msra.mxu0 0.0
      %3032 = vmatpush.msra.mxu0 %v2840
      %3033 = vmatpush.msra.mxu0 %v2832
      %3034 = vmatpush.msra.mxu0 %v2824
      %3035 = vmatpush.msra.mxu0 %v2816
      %3036 = vmatpush.msra.mxu0 %v2808
      %3037 = vmatpush.msra.mxu0 %v2800
      %3038 = vmatpush.msra.mxu0 %v2792
      %3039 = vmatpush.msra.mxu0 %v2784
      %3040 = vmatpush.msra.mxu0 %v2776
      %3041 = vmatpush.msra.mxu0 %v2768
      %3042 = vmatpush.msra.mxu0 %v2760
      %3043 = vmatmul.f32.gmra.mxu0 %v2845
      %v3044 = vpop.f32.mrf.mxu0
      %v3045 = vadd.f32 %v3025, %v3044
      %3046 = vdwg.mxu0
      %3047 = vmatpush.msra.mxu0 %v2753
      %3048 = vmatpush.msra.mxu0 %v2745
      %3049 = vmatpush.msra.mxu0 %v2737
      %3050 = vmatpush.msra.mxu0 %v2729
      %3051 = vmatpush.msra.mxu0 %v2721
      %3052 = vmatpush.msra.mxu0 %v2713
      %3053 = vmatpush.msra.mxu0 %v2705
      %3054 = vmatpush.msra.mxu0 %v2697
      %3055 = vmatpush.msra.mxu0 %v2689
      %3056 = vmatpush.msra.mxu0 %v2681
      %3057 = vmatpush.msra.mxu0 %v2673
      %3058 = vmatpush.msra.mxu0 %v2665
      %3059 = vmatpush.msra.mxu0 %v2657
      %3060 = vmatpush.msra.mxu0 %v2649
      %3061 = vmatpush.msra.mxu0 %v2641
      %3062 = vmatpush.msra.mxu0 %v2633
      %3063 = vmatmul.f32.gmra.mxu0 %v2626
      %v3064 = vpop.f32.mrf.mxu0
      %v3065 = vadd.f32 0.0, %v3064
      %3066 = vdwg.mxu0
      %3067 = vmatpush.msra.mxu0 0.0
      %3068 = vmatpush.msra.mxu0 0.0
      %3069 = vmatpush.msra.mxu0 0.0
      %3070 = vmatpush.msra.mxu0 0.0
      %3071 = vmatpush.msra.mxu0 0.0
      %3072 = vmatpush.msra.mxu0 %v2841
      %3073 = vmatpush.msra.mxu0 %v2833
      %3074 = vmatpush.msra.mxu0 %v2825
      %3075 = vmatpush.msra.mxu0 %v2817
      %3076 = vmatpush.msra.mxu0 %v2809
      %3077 = vmatpush.msra.mxu0 %v2801
      %3078 = vmatpush.msra.mxu0 %v2793
      %3079 = vmatpush.msra.mxu0 %v2785
      %3080 = vmatpush.msra.mxu0 %v2777
      %3081 = vmatpush.msra.mxu0 %v2769
      %3082 = vmatpush.msra.mxu0 %v2761
      %3083 = vmatmul.f32.gmra.mxu0 %v2845
      %v3084 = vpop.f32.mrf.mxu0
      %v3085 = vadd.f32 %v3065, %v3084
      %3086 = vdwg.mxu0
      %3087 = vmatpush.msra.mxu0 %v2754
      %3088 = vmatpush.msra.mxu0 %v2746
      %3089 = vmatpush.msra.mxu0 %v2738
      %3090 = vmatpush.msra.mxu0 %v2730
      %3091 = vmatpush.msra.mxu0 %v2722
      %3092 = vmatpush.msra.mxu0 %v2714
      %3093 = vmatpush.msra.mxu0 %v2706
      %3094 = vmatpush.msra.mxu0 %v2698
      %3095 = vmatpush.msra.mxu0 %v2690
      %3096 = vmatpush.msra.mxu0 %v2682
      %3097 = vmatpush.msra.mxu0 %v2674
      %3098 = vmatpush.msra.mxu0 %v2666
      %3099 = vmatpush.msra.mxu0 %v2658
      %3100 = vmatpush.msra.mxu0 %v2650
      %3101 = vmatpush.msra.mxu0 %v2642
      %3102 = vmatpush.msra.mxu0 %v2634
      %3103 = vmatmul.f32.gmra.mxu0 %v2626
      %v3104 = vpop.f32.mrf.mxu0
      %v3105 = vadd.f32 0.0, %v3104
      %3106 = vdwg.mxu0
      %3107 = vmatpush.msra.mxu0 0.0
      %3108 = vmatpush.msra.mxu0 0.0
      %3109 = vmatpush.msra.mxu0 0.0
      %3110 = vmatpush.msra.mxu0 0.0
      %3111 = vmatpush.msra.mxu0 0.0
      %3112 = vmatpush.msra.mxu0 %v2842
      %3113 = vmatpush.msra.mxu0 %v2834
      %3114 = vmatpush.msra.mxu0 %v2826
      %3115 = vmatpush.msra.mxu0 %v2818
      %3116 = vmatpush.msra.mxu0 %v2810
      %3117 = vmatpush.msra.mxu0 %v2802
      %3118 = vmatpush.msra.mxu0 %v2794
      %3119 = vmatpush.msra.mxu0 %v2786
      %3120 = vmatpush.msra.mxu0 %v2778
      %3121 = vmatpush.msra.mxu0 %v2770
      %3122 = vmatpush.msra.mxu0 %v2762
      %3123 = vmatmul.f32.gmra.mxu0 %v2845
      %v3124 = vpop.f32.mrf.mxu0
      %v3125 = vadd.f32 %v3105, %v3124
      %3126 = vdwg.mxu0
      %3127 = vmatpush.msra.mxu0 %v2755
      %3128 = vmatpush.msra.mxu0 %v2747
      %3129 = vmatpush.msra.mxu0 %v2739
      %3130 = vmatpush.msra.mxu0 %v2731
      %3131 = vmatpush.msra.mxu0 %v2723
      %3132 = vmatpush.msra.mxu0 %v2715
      %3133 = vmatpush.msra.mxu0 %v2707
      %3134 = vmatpush.msra.mxu0 %v2699
      %3135 = vmatpush.msra.mxu0 %v2691
      %3136 = vmatpush.msra.mxu0 %v2683
      %3137 = vmatpush.msra.mxu0 %v2675
      %3138 = vmatpush.msra.mxu0 %v2667
      %3139 = vmatpush.msra.mxu0 %v2659
      %3140 = vmatpush.msra.mxu0 %v2651
      %3141 = vmatpush.msra.mxu0 %v2643
      %3142 = vmatpush.msra.mxu0 %v2635
      %3143 = vmatmul.f32.gmra.mxu0 %v2626
      %v3144 = vpop.f32.mrf.mxu0
      %v3145 = vadd.f32 0.0, %v3144
      %3146 = vdwg.mxu0
      %3147 = vmatpush.msra.mxu0 0.0
      %3148 = vmatpush.msra.mxu0 0.0
      %3149 = vmatpush.msra.mxu0 0.0
      %3150 = vmatpush.msra.mxu0 0.0
      %3151 = vmatpush.msra.mxu0 0.0
      %3152 = vmatpush.msra.mxu0 %v2843
      %3153 = vmatpush.msra.mxu0 %v2835
      %3154 = vmatpush.msra.mxu0 %v2827
      %3155 = vmatpush.msra.mxu0 %v2819
      %3156 = vmatpush.msra.mxu0 %v2811
      %3157 = vmatpush.msra.mxu0 %v2803
      %3158 = vmatpush.msra.mxu0 %v2795
      %3159 = vmatpush.msra.mxu0 %v2787
      %3160 = vmatpush.msra.mxu0 %v2779
      %3161 = vmatpush.msra.mxu0 %v2771
      %3162 = vmatpush.msra.mxu0 %v2763
      %3163 = vmatmul.f32.gmra.mxu0 %v2845
      %v3164 = vpop.f32.mrf.mxu0
      %v3165 = vadd.f32 %v3145, %v3164
      %3166 = vdwg.mxu0
      %v3167 = vld [vmem:[%s5] sm:$0xff]
      %3169 = vset.pattern.permute.xlu0 0
      %3170 = vperm.xlu0 %3169, %v3167
      %v3171 = vpop.permute.xlu0 %3170
      %v3173 = vmul.f32 %v2885, %v3171
      %v3174 = vmul.f32 %v2925, %v3171
      %v3175 = vmul.f32 %v2965, %v3171
      %v3176 = vmul.f32 %v3005, %v3171
      %v3177 = vmul.f32 %v3045, %v3171
      %v3178 = vmul.f32 %v3085, %v3171
      %v3179 = vmul.f32 %v3125, %v3171
      %v3180 = vmul.f32 %v3165, %v3171
      %v3181 = vld [vmem:[%s6] sm:$0xff]
      %3183 = vset.pattern.permute.xlu0 0
      %3184 = vperm.xlu0 %3183, %v3181
      %v3185 = vpop.permute.xlu0 %3184
      %v3187 = vadd.f32 %v3173, %v3185
      %v3188 = vadd.f32 %v3174, %v3185
      %v3189 = vadd.f32 %v3175, %v3185
      %v3190 = vadd.f32 %v3176, %v3185
      %v3191 = vadd.f32 %v3177, %v3185
      %v3192 = vadd.f32 %v3178, %v3185
      %v3193 = vadd.f32 %v3179, %v3185
      %v3194 = vadd.f32 %v3180, %v3185
      %v3195 = vadd.f32 %v3187, %v306
      %v3196 = vadd.f32 %v3188, %v307
      %v3197 = vadd.f32 %v3189, %v308
      %v3198 = vadd.f32 %v3190, %v309
      %v3199 = vadd.f32 %v3191, %v310
      %v3200 = vadd.f32 %v3192, %v311
      %v3201 = vadd.f32 %v3193, %v312
      %v3202 = vadd.f32 %v3194, %v313
      %v3203 = vmax.f32 %v3195, 0.0
      %v3204 = vmax.f32 %v3196, 0.0
      %v3205 = vmax.f32 %v3197, 0.0
      %v3206 = vmax.f32 %v3198, 0.0
      %v3207 = vmax.f32 %v3199, 0.0
      %v3208 = vmax.f32 %v3200, 0.0
      %v3209 = vmax.f32 %v3201, 0.0
      %v3210 = vmax.f32 %v3202, 0.0
      %3211 = vst [vmem:[%s305] sm:$0xff] %v3203
      %3212 = vst [vmem:[%s305 + $0x8] sm:$0xff] %v3204
      %3213 = vst [vmem:[%s305 + $0x10] sm:$0xff] %v3205
      %3214 = vst [vmem:[%s305 + $0x18] sm:$0xff] %v3206
      %3215 = vst [vmem:[%s305 + $0x20] sm:$0xff] %v3207
      %3216 = vst [vmem:[%s305 + $0x28] sm:$0xff] %v3208
      %3217 = vst [vmem:[%s305 + $0x30] sm:$0xff] %v3209
      %3218 = vst [vmem:[%s305 + $0x38] sm:$0xff] %v3210
      %p3219 = scmp.lt.s32.totalorder %s19, 1
      %s3220 = scalar_select %p3219, %s19, 1
      %s3221 = smul.addr %s3220, 8
      %s3222 = smul.addr %s3221, 8
      %s3223 = scalar_lea.vmem %s8, %s3222
      // Predicated region
      $region53: #{basic_block_forward.1} parent=51 // pred_check
        %p3224 = pneg %p210
      $region54: #{basic_block_forward.1} parent=51 // pred_check_branch
        %3226 = sbr.rel (%p3224) target = $region56
      $region55: #{basic_block_forward.1} parent=51 // pred_region
        _
      $region56: #{basic_block_forward.1} parent=51 // pred_fallthru
        _
    $region52: #{basic_block_forward.1} parent=5 // pred_fallthru
      _
    %p3227 = scmp.le.s32.totalorder 2, %s14
    // Predicated region
    $region57: #{basic_block_forward.1} parent=5 // pred_check
      %p3228 = pneg %p3227
    $region58: #{basic_block_forward.1} parent=5 // pred_check_branch
      %3230 = sbr.rel (%p3228) target = $region60
    $region59: #{basic_block_forward.1} parent=5 // pred_region
      %s3231 = ssub.s32 %s14, 2
      // Predicated region
      $region61: #{basic_block_forward.1} parent=59 // pred_check
        %p3232 = pneg %p216
      $region62: #{basic_block_forward.1} parent=59 // pred_check_branch
        %3234 = sbr.rel (%p3232) target = $region64
      $region63: #{basic_block_forward.1} parent=59 // pred_region
        %p3235 = scmp.lt.s32.totalorder %s20, 1
        %s3236 = scalar_select %p3235, %s20, 1
        %s3237 = smul.addr %s3236, 8
        %s3238 = smul.addr %s3237, 8
        %s3239 = scalar_lea.vmem %s8, %s3238
      $region64: #{basic_block_forward.1} parent=59 // pred_fallthru
        _
    $region60: #{basic_block_forward.1} parent=5 // pred_fallthru
      _
  $region6: #{basic_block_forward.1} parent=0 // loop_footer
    %s18 = sadd.s32 1, %s14
  $region7: #{basic_block_forward.1} parent=0 // loop_footer_branch
    %13 = sbr.rel target = $region3
  $region8: #{basic_block_forward.1} parent=0 // loop_exit
    _

</llo_original>
